<compile_context>
chip_gen: v6e
topology: v6e:2x2x1
jax: 0.10.0
libtpu: 0.0.40
codegen_flags: <defaults>
</compile_context>

<pallas_src>
import functools

import jax
import jax.numpy as jnp
from jax.experimental import pallas as pl
from jax.experimental.pallas import tpu as pltpu

_FALLBACK_VMEM_BUDGET = 48 << 20  # safe on every generation (v7x has 64 MiB / TC)


def _round_up(x, m):
    return ((x + m - 1) // m) * m


def _vmem_budget_bytes():
    """Per-generation VMEM budget (leaves headroom for compiler scratch)."""
    try:
        cap = int(pltpu.get_tpu_info().vmem_capacity_bytes)
    except Exception:
        return _FALLBACK_VMEM_BUDGET
    # v7x: 64 MiB/TC -> ~48 MiB budget; v5e/v6e: 128 MiB -> ~112 MiB budget.
    return min(max((cap * 3) // 4, cap - (16 << 20)), 112 << 20)


def _pick_tile(dim):
    """Largest tile in {512, 256, 128} dividing `dim` (dims are padded to 128 multiples)."""
    for t in (512, 256, 128):
        if dim % t == 0:
            return t
    return dim


def _kernel_silu(y_f32, *, approx):
    # SiLU(y) = y * sigmoid(y).  exp and the (approximate) reciprocal both land on the
    # EUP slot, keeping VALU slots free for the elementwise tail of the narrow layers.
    if approx:
        return y_f32 * pl.reciprocal(1.0 + jnp.exp(-y_f32), approx=True)
    return y_f32 * jax.nn.sigmoid(y_f32)


# ----------------------------- fully fused kernel ------------------------------------
def _make_fused_kernel(act_dtype, approx_silu):
    def kernel(x_ref,
               w1, b1, w2, b2, w3, b3, w4, b4, w5, b5, w6, b6,
               o_ref):
        def layer(h, w_ref, b_ref):
            y = jnp.dot(h.astype(w_ref.dtype), w_ref[...],
                        preferred_element_type=jnp.float32) + b_ref[...]
            # SiLU kept in f32 (v5e has no bf16 VPU/EUP); carry optionally bf16.
            return _kernel_silu(y, approx=approx_silu).astype(act_dtype)

        h = x_ref[...]
        for w_ref, b_ref in ((w1, b1), (w2, b2), (w3, b3),
                             (w4, b4), (w5, b5), (w6, b6)):
            h = layer(h, w_ref, b_ref)
        o_ref[...] = h.astype(o_ref.dtype)

    return kernel


# --------------------- streamed fallback: one tiled layer per call -------------------
def _make_layer_kernel(approx_silu):
    def kernel(x_ref, w_ref, b_ref, o_ref, acc_ref):
        @pl.when(pl.program_id(2) == 0)
        def _():
            acc_ref[...] = jnp.zeros_like(acc_ref)

        acc_ref[...] += jnp.dot(x_ref[...].astype(w_ref.dtype), w_ref[...],
                                preferred_element_type=jnp.float32)

        @pl.when(pl.program_id(2) == pl.num_programs(2) - 1)
        def _():
            y = acc_ref[...] + b_ref[...]
            o_ref[...] = _kernel_silu(y, approx=approx_silu).astype(o_ref.dtype)

    return kernel


def _streamed_layer(h, w, b, *, bm, budget, approx_silu):
    """K/N-tiled matmul + bias + SiLU; weights streamed, f32 accumulator in VMEM."""
    M, K = h.shape
    N = w.shape[1]
    tk = _pick_tile(K)
    tn = _pick_tile(N)
    return pl.pallas_call(
        _make_layer_kernel(approx_silu),
        out_shape=jax.ShapeDtypeStruct((M, N), jnp.float32),
        grid_spec=pltpu.PrefetchScalarGridSpec(
            num_scalar_prefetch=0,
            grid=(M // bm, N // tn, K // tk),
            in_specs=[
                pl.BlockSpec((bm, tk), lambda i, j, k: (i, k)),
                pl.BlockSpec((tk, tn), lambda i, j, k: (k, j)),
                pl.BlockSpec((1, tn), lambda i, j, k: (0, j)),
            ],
            out_specs=pl.BlockSpec((bm, tn), lambda i, j, k: (i, j)),
            scratch_shapes=[pltpu.VMEM((bm, tn), jnp.float32)],
        ),
        compiler_params=pltpu.CompilerParams(
            dimension_semantics=("parallel", "parallel", "arbitrary"),
            vmem_limit_bytes=budget,
        ),
    )(h, w, b)


# ------------------------------------ wrapper ----------------------------------------
def network_forward(x, params, *,
                    block_m=512,
                    use_bf16_weights=True,
                    single_buffer_weights=True,
                    bf16_activations=False,
                    approx_silu=True,
                    force_streaming=False):
    """Forward pass of `Network` (6 x Linear + SiLU).

    x: [B, in_features] float32.
    params: list of 6 (W [in, out], b [1, out]) float32 pairs (W is the transpose of
    PyTorch's nn.Linear.weight).
    """
    B, in_features = x.shape
    out_features = params[-1][0].shape[1]
    dims = [in_features] + [w.shape[1] for (w, _) in params]
    pdims = [_round_up(d, 128) for d in dims]            # lane-dense everywhere

    w_dtype = jnp.bfloat16 if use_bf16_weights else jnp.float32
    act_dtype = jnp.bfloat16 if bf16_activations else jnp.float32

    # ---- Zero-pad every layer to 128-aligned widths, cast weights -------------------
    flat_params = []
    for i, (w, b) in enumerate(params):
        w = jnp.pad(w, ((0, pdims[i] - dims[i]), (0, pdims[i + 1] - dims[i + 1])))
        b = jnp.pad(b, ((0, 0), (0, pdims[i + 1] - dims[i + 1])))
        flat_params.extend([w.astype(w_dtype), b.astype(jnp.float32)])

    param_bytes = sum(a.size * a.dtype.itemsize for a in flat_params)
    weight_buffers = 1 if single_buffer_weights else 2
    budget = _vmem_budget_bytes()

    # ---- Batch tile ------------------------------------------------------------------
    b8 = _round_up(max(B, 1), 8)
    bm = min(block_m, b8)
    if b8 >= 16:
        # Guarantee >= 2 grid steps so ("parallel",) can feed both v7x TensorCores.
        bm = min(bm, _round_up((b8 + 1) // 2, 8))
    bm = max(8, _round_up(bm, 8))

    def fused_vmem_estimate(m):
        io = 4 * m * (pdims[0] + pdims[-1]) * 2           # double-buffered x / out tiles
        live = 4 * m * 2 * max(pdims)                     # rough live intermediates
        return param_bytes * weight_buffers + io + live

    use_fused = (not force_streaming) and fused_vmem_estimate(8) <= budget
    if use_fused:
        while bm > 8 and fused_vmem_estimate(bm) > budget:
            bm = max(8, _round_up(bm // 2, 8))            # keep tile 8-aligned

    B_padded = _round_up(B, bm)
    x_padded = jnp.pad(x, ((0, B_padded - B), (0, pdims[0] - in_features)))

    if not use_fused:
        # Streamed fallback: resident weights would exceed the VMEM budget (wide W2/W3),
        # so each layer runs as a K/N-tiled matmul + bias + SiLU with streamed weights.
        h = x_padded
        for li in range(6):
            h = _streamed_layer(h, flat_params[2 * li], flat_params[2 * li + 1],
                                bm=bm, budget=budget, approx_silu=approx_silu)
        return h[:B, :out_features]

    # ---- Fully fused path: all six layers in one kernel, weights resident in VMEM ----
    def weight_spec(shape):
        if single_buffer_weights:
            # Constant across the grid -> no point double-buffering resident weights.
            return pl.BlockSpec(shape, lambda i: (0, 0), pipeline_mode=pl.Buffered(1))
        # TODO(synk): guarantee a 1x weight footprint on JAX versions that reject
        # pl.Buffered(1) by passing weights with memory_space=pl.ANY and DMA-ing them
        # once per core into persistent VMEM scratch.
        return pl.BlockSpec(shape, lambda i: (0, 0))

    in_specs = [pl.BlockSpec((bm, pdims[0]), lambda i: (i, 0))]
    for a in flat_params:
        in_specs.append(weight_spec(a.shape))
    out_specs = pl.BlockSpec((bm, pdims[-1]), lambda i: (i, 0))

    flops = 2 * B_padded * sum(pdims[i] * pdims[i + 1] for i in range(6))
    transcendentals = 2 * B_padded * sum(pdims[1:])       # exp + reciprocal per element
    bytes_accessed = param_bytes + x_padded.size * 4 + B_padded * pdims[-1] * 4

    out_arr = pl.pallas_call(
        _make_fused_kernel(act_dtype, approx_silu),
        out_shape=jax.ShapeDtypeStruct((B_padded, pdims[-1]), jnp.float32),
        grid_spec=pltpu.PrefetchScalarGridSpec(
            num_scalar_prefetch=0,
            grid=(B_padded // bm,),
            in_specs=in_specs,
            out_specs=out_specs,
        ),
        compiler_params=pltpu.CompilerParams(
            dimension_semantics=("parallel",),
            vmem_limit_bytes=budget,
        ),
        cost_estimate=pl.CostEstimate(
            flops=int(flops),
            transcendentals=int(transcendentals),
            bytes_accessed=int(bytes_accessed),
        ),
    )(x_padded, *flat_params)

    return out_arr[:B, :out_features]


# ------------------------------ params + reference -----------------------------------
def init_params(key, in_features, hidden_dim_factor, out_features):
    """Deterministic synthetic init matching the PyTorch module's layer shapes."""
    h = hidden_dim_factor
    dims = [in_features, 4 * h, 8 * h, 4 * h, 2 * h, h, out_features]
    params = []
    for i in range(6):
        key, kw, kb = jax.random.split(key, 3)
        fan_in, fan_out = dims[i], dims[i + 1]
        scale = 1.0 / jnp.sqrt(jnp.float32(fan_in))
        # Stored as [in, out] (transpose of PyTorch nn.Linear.weight, which is [out, in]).
        w = jax.random.uniform(kw, (fan_in, fan_out), jnp.float32, -scale, scale)
        b = jax.random.uniform(kb, (1, fan_out), jnp.float32, -scale, scale)
        params.append((w, b))
    return params


def reference_forward(x, params):
    h = x
    for (w, b) in params:
        y = jnp.dot(h, w, precision=jax.lax.Precision.HIGHEST) + b
        h = y * jax.nn.sigmoid(y)          # PyTorch Network activates the output layer too
    return h


if __name__ == "__main__":
    key = jax.random.PRNGKey(0)

    batch = 64
    in_features = 8
    hidden_dim_factor = 32
    out_features = 4

    key, kx = jax.random.split(key)
    x = jax.random.normal(kx, (batch, in_features), jnp.float32)
    params = init_params(key, in_features, hidden_dim_factor, out_features)

    def run(**kw):
        fwd = jax.jit(functools.partial(network_forward, **kw))
        return jax.block_until_ready(fwd(x, params))

    ref = reference_forward(x, params)

    # 1) Default fast path: bf16 weights resident in VMEM, approx-EUP SiLU, fused.
    single_buffer = True
    try:
        out = run()
    except Exception:
        # Fallback for JAX versions where pl.Buffered(1) is rejected by the classic
        # pallas_call pipeline; identical math, default double-buffered weight blocks
        # (the VMEM estimate accounts for the 2x weight footprint).
        single_buffer = False
        out = run(single_buffer_weights=False)
    assert out.shape == (batch, out_features)
    assert jnp.allclose(out, ref, atol=1e-2, rtol=2e-2), "bf16 fused path mismatch"

    # 2) Exact f32 path: matches the PyTorch module to float32 accuracy.
    out_exact = run(use_bf16_weights=False, approx_silu=False,
                    single_buffer_weights=single_buffer)
    assert jnp.allclose(out_exact, ref, atol=1e-4, rtol=1e-4), "f32 fused path mismatch"

    # 3) Streamed (K/N-tiled per-layer) fallback path, forced here at small shapes to
    #    keep it covered; used automatically when resident weights exceed the VMEM budget.
    out_stream = run(force_streaming=True)
    assert out_stream.shape == (batch, out_features)
    assert jnp.allclose(out_stream, ref, atol=1e-2, rtol=2e-2), "streamed path mismatch"

    print("KERNEL_OK")
</pallas_src>

<mosaic_0001>
module attributes {stable_mosaic.version = 11 : i64} {
  func.func @kernel(%arg0: i32, %arg1: memref<32x128xf32, #tpu.memory_space<vmem>>, %arg2: memref<128x128xbf16, #tpu.memory_space<vmem>>, %arg3: memref<1x128xf32, #tpu.memory_space<vmem>>, %arg4: memref<128x256xbf16, #tpu.memory_space<vmem>>, %arg5: memref<1x256xf32, #tpu.memory_space<vmem>>, %arg6: memref<256x128xbf16, #tpu.memory_space<vmem>>, %arg7: memref<1x128xf32, #tpu.memory_space<vmem>>, %arg8: memref<128x128xbf16, #tpu.memory_space<vmem>>, %arg9: memref<1x128xf32, #tpu.memory_space<vmem>>, %arg10: memref<128x128xbf16, #tpu.memory_space<vmem>>, %arg11: memref<1x128xf32, #tpu.memory_space<vmem>>, %arg12: memref<128x128xbf16, #tpu.memory_space<vmem>>, %arg13: memref<1x128xf32, #tpu.memory_space<vmem>>, %arg14: memref<32x128xf32, #tpu.memory_space<vmem>>) attributes {dimension_semantics = [#tpu.dimension_semantics<parallel>], iteration_bounds = array<i64: 2>, scalar_prefetch = 0 : i64, scratch_operands = 0 : i64, tpu.core_type = #tpu.core_type<tc>, window_params = [{transform_indices = @transform_0, window_bounds = array<i64: 32, 128>}, {pipeline_mode = #tpu.pipeline_mode<synchronous>, transform_indices = @transform_1, window_bounds = array<i64: 128, 128>}, {pipeline_mode = #tpu.pipeline_mode<synchronous>, transform_indices = @transform_2, window_bounds = array<i64: 1, 128>}, {pipeline_mode = #tpu.pipeline_mode<synchronous>, transform_indices = @transform_3, window_bounds = array<i64: 128, 256>}, {pipeline_mode = #tpu.pipeline_mode<synchronous>, transform_indices = @transform_4, window_bounds = array<i64: 1, 256>}, {pipeline_mode = #tpu.pipeline_mode<synchronous>, transform_indices = @transform_5, window_bounds = array<i64: 256, 128>}, {pipeline_mode = #tpu.pipeline_mode<synchronous>, transform_indices = @transform_6, window_bounds = array<i64: 1, 128>}, {pipeline_mode = #tpu.pipeline_mode<synchronous>, transform_indices = @transform_7, window_bounds = array<i64: 128, 128>}, {pipeline_mode = #tpu.pipeline_mode<synchronous>, transform_indices = @transform_8, window_bounds = array<i64: 1, 128>}, {pipeline_mode = #tpu.pipeline_mode<synchronous>, transform_indices = @transform_9, window_bounds = array<i64: 128, 128>}, {pipeline_mode = #tpu.pipeline_mode<synchronous>, transform_indices = @transform_10, window_bounds = array<i64: 1, 128>}, {pipeline_mode = #tpu.pipeline_mode<synchronous>, transform_indices = @transform_11, window_bounds = array<i64: 128, 128>}, {pipeline_mode = #tpu.pipeline_mode<synchronous>, transform_indices = @transform_12, window_bounds = array<i64: 1, 128>}, {transform_indices = @transform_13, window_bounds = array<i64: 32, 128>}]} {
    %c0 = arith.constant 0 : index
    %c0_0 = arith.constant 0 : index
    %0 = vector.load %arg1[%c0, %c0_0] : memref<32x128xf32, #tpu.memory_space<vmem>>, vector<32x128xf32>
    %1 = arith.truncf %0 : vector<32x128xf32> to vector<32x128xbf16>
    %c0_1 = arith.constant 0 : index
    %c0_2 = arith.constant 0 : index
    %2 = vector.load %arg2[%c0_1, %c0_2] : memref<128x128xbf16, #tpu.memory_space<vmem>>, vector<128x128xbf16>
    %cst = arith.constant dense<0.000000e+00> : vector<32x128xf32>
    %3 = tpu.matmul %1, %2, %cst {dimension_numbers = #tpu.dot_dimension_numbers<[1], [0], [0], [1], [0, 0, 1, 1], [], []>} : vector<32x128xbf16>, vector<128x128xbf16>, vector<32x128xf32> -> vector<32x128xf32>
    %c0_3 = arith.constant 0 : index
    %c0_4 = arith.constant 0 : index
    %4 = vector.load %arg3[%c0_3, %c0_4] : memref<1x128xf32, #tpu.memory_space<vmem>>, vector<1x128xf32>
    %5 = vector.broadcast %4 : vector<1x128xf32> to vector<32x128xf32>
    %6 = arith.addf %3, %5 : vector<32x128xf32>
    %cst_5 = arith.constant 0.000000e+00 : f32
    %7 = vector.broadcast %cst_5 : f32 to vector<32x128xf32>
    %8 = arith.subf %7, %6 : vector<32x128xf32>
    %9 = math.exp %8 : vector<32x128xf32>
    %cst_6 = arith.constant 1.000000e+00 : f32
    %10 = vector.broadcast %cst_6 : f32 to vector<32x128xf32>
    %11 = arith.addf %10, %9 : vector<32x128xf32>
    %12 = tpu.reciprocal %11 {approx = true} : vector<32x128xf32> -> vector<32x128xf32>
    %13 = arith.mulf %6, %12 : vector<32x128xf32>
    %14 = arith.truncf %13 : vector<32x128xf32> to vector<32x128xbf16>
    %c0_7 = arith.constant 0 : index
    %c0_8 = arith.constant 0 : index
    %15 = vector.load %arg4[%c0_7, %c0_8] : memref<128x256xbf16, #tpu.memory_space<vmem>>, vector<128x256xbf16>
    %cst_9 = arith.constant dense<0.000000e+00> : vector<32x256xf32>
    %16 = tpu.matmul %14, %15, %cst_9 {dimension_numbers = #tpu.dot_dimension_numbers<[1], [0], [0], [1], [0, 0, 1, 1], [], []>} : vector<32x128xbf16>, vector<128x256xbf16>, vector<32x256xf32> -> vector<32x256xf32>
    %c0_10 = arith.constant 0 : index
    %c0_11 = arith.constant 0 : index
    %17 = vector.load %arg5[%c0_10, %c0_11] : memref<1x256xf32, #tpu.memory_space<vmem>>, vector<1x256xf32>
    %18 = vector.broadcast %17 : vector<1x256xf32> to vector<32x256xf32>
    %19 = arith.addf %16, %18 : vector<32x256xf32>
    %cst_12 = arith.constant 0.000000e+00 : f32
    %20 = vector.broadcast %cst_12 : f32 to vector<32x256xf32>
    %21 = arith.subf %20, %19 : vector<32x256xf32>
    %22 = math.exp %21 : vector<32x256xf32>
    %cst_13 = arith.constant 1.000000e+00 : f32
    %23 = vector.broadcast %cst_13 : f32 to vector<32x256xf32>
    %24 = arith.addf %23, %22 : vector<32x256xf32>
    %25 = tpu.reciprocal %24 {approx = true} : vector<32x256xf32> -> vector<32x256xf32>
    %26 = arith.mulf %19, %25 : vector<32x256xf32>
    %27 = arith.truncf %26 : vector<32x256xf32> to vector<32x256xbf16>
    %c0_14 = arith.constant 0 : index
    %c0_15 = arith.constant 0 : index
    %28 = vector.load %arg6[%c0_14, %c0_15] : memref<256x128xbf16, #tpu.memory_space<vmem>>, vector<256x128xbf16>
    %cst_16 = arith.constant dense<0.000000e+00> : vector<32x128xf32>
    %29 = tpu.matmul %27, %28, %cst_16 {dimension_numbers = #tpu.dot_dimension_numbers<[1], [0], [0], [1], [0, 0, 1, 1], [], []>} : vector<32x256xbf16>, vector<256x128xbf16>, vector<32x128xf32> -> vector<32x128xf32>
    %c0_17 = arith.constant 0 : index
    %c0_18 = arith.constant 0 : index
    %30 = vector.load %arg7[%c0_17, %c0_18] : memref<1x128xf32, #tpu.memory_space<vmem>>, vector<1x128xf32>
    %31 = vector.broadcast %30 : vector<1x128xf32> to vector<32x128xf32>
    %32 = arith.addf %29, %31 : vector<32x128xf32>
    %cst_19 = arith.constant 0.000000e+00 : f32
    %33 = vector.broadcast %cst_19 : f32 to vector<32x128xf32>
    %34 = arith.subf %33, %32 : vector<32x128xf32>
    %35 = math.exp %34 : vector<32x128xf32>
    %cst_20 = arith.constant 1.000000e+00 : f32
    %36 = vector.broadcast %cst_20 : f32 to vector<32x128xf32>
    %37 = arith.addf %36, %35 : vector<32x128xf32>
    %38 = tpu.reciprocal %37 {approx = true} : vector<32x128xf32> -> vector<32x128xf32>
    %39 = arith.mulf %32, %38 : vector<32x128xf32>
    %40 = arith.truncf %39 : vector<32x128xf32> to vector<32x128xbf16>
    %c0_21 = arith.constant 0 : index
    %c0_22 = arith.constant 0 : index
    %41 = vector.load %arg8[%c0_21, %c0_22] : memref<128x128xbf16, #tpu.memory_space<vmem>>, vector<128x128xbf16>
    %cst_23 = arith.constant dense<0.000000e+00> : vector<32x128xf32>
    %42 = tpu.matmul %40, %41, %cst_23 {dimension_numbers = #tpu.dot_dimension_numbers<[1], [0], [0], [1], [0, 0, 1, 1], [], []>} : vector<32x128xbf16>, vector<128x128xbf16>, vector<32x128xf32> -> vector<32x128xf32>
    %c0_24 = arith.constant 0 : index
    %c0_25 = arith.constant 0 : index
    %43 = vector.load %arg9[%c0_24, %c0_25] : memref<1x128xf32, #tpu.memory_space<vmem>>, vector<1x128xf32>
    %44 = vector.broadcast %43 : vector<1x128xf32> to vector<32x128xf32>
    %45 = arith.addf %42, %44 : vector<32x128xf32>
    %cst_26 = arith.constant 0.000000e+00 : f32
    %46 = vector.broadcast %cst_26 : f32 to vector<32x128xf32>
    %47 = arith.subf %46, %45 : vector<32x128xf32>
    %48 = math.exp %47 : vector<32x128xf32>
    %cst_27 = arith.constant 1.000000e+00 : f32
    %49 = vector.broadcast %cst_27 : f32 to vector<32x128xf32>
    %50 = arith.addf %49, %48 : vector<32x128xf32>
    %51 = tpu.reciprocal %50 {approx = true} : vector<32x128xf32> -> vector<32x128xf32>
    %52 = arith.mulf %45, %51 : vector<32x128xf32>
    %53 = arith.truncf %52 : vector<32x128xf32> to vector<32x128xbf16>
    %c0_28 = arith.constant 0 : index
    %c0_29 = arith.constant 0 : index
    %54 = vector.load %arg10[%c0_28, %c0_29] : memref<128x128xbf16, #tpu.memory_space<vmem>>, vector<128x128xbf16>
    %cst_30 = arith.constant dense<0.000000e+00> : vector<32x128xf32>
    %55 = tpu.matmul %53, %54, %cst_30 {dimension_numbers = #tpu.dot_dimension_numbers<[1], [0], [0], [1], [0, 0, 1, 1], [], []>} : vector<32x128xbf16>, vector<128x128xbf16>, vector<32x128xf32> -> vector<32x128xf32>
    %c0_31 = arith.constant 0 : index
    %c0_32 = arith.constant 0 : index
    %56 = vector.load %arg11[%c0_31, %c0_32] : memref<1x128xf32, #tpu.memory_space<vmem>>, vector<1x128xf32>
    %57 = vector.broadcast %56 : vector<1x128xf32> to vector<32x128xf32>
    %58 = arith.addf %55, %57 : vector<32x128xf32>
    %cst_33 = arith.constant 0.000000e+00 : f32
    %59 = vector.broadcast %cst_33 : f32 to vector<32x128xf32>
    %60 = arith.subf %59, %58 : vector<32x128xf32>
    %61 = math.exp %60 : vector<32x128xf32>
    %cst_34 = arith.constant 1.000000e+00 : f32
    %62 = vector.broadcast %cst_34 : f32 to vector<32x128xf32>
    %63 = arith.addf %62, %61 : vector<32x128xf32>
    %64 = tpu.reciprocal %63 {approx = true} : vector<32x128xf32> -> vector<32x128xf32>
    %65 = arith.mulf %58, %64 : vector<32x128xf32>
    %66 = arith.truncf %65 : vector<32x128xf32> to vector<32x128xbf16>
    %c0_35 = arith.constant 0 : index
    %c0_36 = arith.constant 0 : index
    %67 = vector.load %arg12[%c0_35, %c0_36] : memref<128x128xbf16, #tpu.memory_space<vmem>>, vector<128x128xbf16>
    %cst_37 = arith.constant dense<0.000000e+00> : vector<32x128xf32>
    %68 = tpu.matmul %66, %67, %cst_37 {dimension_numbers = #tpu.dot_dimension_numbers<[1], [0], [0], [1], [0, 0, 1, 1], [], []>} : vector<32x128xbf16>, vector<128x128xbf16>, vector<32x128xf32> -> vector<32x128xf32>
    %c0_38 = arith.constant 0 : index
    %c0_39 = arith.constant 0 : index
    %69 = vector.load %arg13[%c0_38, %c0_39] : memref<1x128xf32, #tpu.memory_space<vmem>>, vector<1x128xf32>
    %70 = vector.broadcast %69 : vector<1x128xf32> to vector<32x128xf32>
    %71 = arith.addf %68, %70 : vector<32x128xf32>
    %cst_40 = arith.constant 0.000000e+00 : f32
    %72 = vector.broadcast %cst_40 : f32 to vector<32x128xf32>
    %73 = arith.subf %72, %71 : vector<32x128xf32>
    %74 = math.exp %73 : vector<32x128xf32>
    %cst_41 = arith.constant 1.000000e+00 : f32
    %75 = vector.broadcast %cst_41 : f32 to vector<32x128xf32>
    %76 = arith.addf %75, %74 : vector<32x128xf32>
    %77 = tpu.reciprocal %76 {approx = true} : vector<32x128xf32> -> vector<32x128xf32>
    %78 = arith.mulf %71, %77 : vector<32x128xf32>
    %c0_42 = arith.constant 0 : index
    %c0_43 = arith.constant 0 : index
    %79 = vector.load %arg14[%c0_42, %c0_43] : memref<32x128xf32, #tpu.memory_space<vmem>>, vector<32x128xf32>
    tpu.vector_store %arg14[%c0_42, %c0_43], %78 {strides = array<i32>} : memref<32x128xf32, #tpu.memory_space<vmem>>, vector<32x128xf32>,
    return
  }
  func.func @transform_0(%arg0: i32) -> (i32, i32) {
    %c0_i32 = arith.constant 0 : i32
    %c0_i32_0 = arith.constant 0 : i32
    return %arg0, %c0_i32 : i32, i32
  }
  func.func @transform_1(%arg0: i32) -> (i32, i32) {
    %c0_i32 = arith.constant 0 : i32
    %c0_i32_0 = arith.constant 0 : i32
    %c0_i32_1 = arith.constant 0 : i32
    return %c0_i32, %c0_i32_0 : i32, i32
  }
  func.func @transform_2(%arg0: i32) -> (i32, i32) {
    %c0_i32 = arith.constant 0 : i32
    %c0_i32_0 = arith.constant 0 : i32
    %c0_i32_1 = arith.constant 0 : i32
    return %c0_i32, %c0_i32_0 : i32, i32
  }
  func.func @transform_3(%arg0: i32) -> (i32, i32) {
    %c0_i32 = arith.constant 0 : i32
    %c0_i32_0 = arith.constant 0 : i32
    %c0_i32_1 = arith.constant 0 : i32
    return %c0_i32, %c0_i32_0 : i32, i32
  }
  func.func @transform_4(%arg0: i32) -> (i32, i32) {
    %c0_i32 = arith.constant 0 : i32
    %c0_i32_0 = arith.constant 0 : i32
    %c0_i32_1 = arith.constant 0 : i32
    return %c0_i32, %c0_i32_0 : i32, i32
  }
  func.func @transform_5(%arg0: i32) -> (i32, i32) {
    %c0_i32 = arith.constant 0 : i32
    %c0_i32_0 = arith.constant 0 : i32
    %c0_i32_1 = arith.constant 0 : i32
    return %c0_i32, %c0_i32_0 : i32, i32
  }
  func.func @transform_6(%arg0: i32) -> (i32, i32) {
    %c0_i32 = arith.constant 0 : i32
    %c0_i32_0 = arith.constant 0 : i32
    %c0_i32_1 = arith.constant 0 : i32
    return %c0_i32, %c0_i32_0 : i32, i32
  }
  func.func @transform_7(%arg0: i32) -> (i32, i32) {
    %c0_i32 = arith.constant 0 : i32
    %c0_i32_0 = arith.constant 0 : i32
    %c0_i32_1 = arith.constant 0 : i32
    return %c0_i32, %c0_i32_0 : i32, i32
  }
  func.func @transform_8(%arg0: i32) -> (i32, i32) {
    %c0_i32 = arith.constant 0 : i32
    %c0_i32_0 = arith.constant 0 : i32
    %c0_i32_1 = arith.constant 0 : i32
    return %c0_i32, %c0_i32_0 : i32, i32
  }
  func.func @transform_9(%arg0: i32) -> (i32, i32) {
    %c0_i32 = arith.constant 0 : i32
    %c0_i32_0 = arith.constant 0 : i32
    %c0_i32_1 = arith.constant 0 : i32
    return %c0_i32, %c0_i32_0 : i32, i32
  }
  func.func @transform_10(%arg0: i32) -> (i32, i32) {
    %c0_i32 = arith.constant 0 : i32
    %c0_i32_0 = arith.constant 0 : i32
    %c0_i32_1 = arith.constant 0 : i32
    return %c0_i32, %c0_i32_0 : i32, i32
  }
  func.func @transform_11(%arg0: i32) -> (i32, i32) {
    %c0_i32 = arith.constant 0 : i32
    %c0_i32_0 = arith.constant 0 : i32
    %c0_i32_1 = arith.constant 0 : i32
    return %c0_i32, %c0_i32_0 : i32, i32
  }
  func.func @transform_12(%arg0: i32) -> (i32, i32) {
    %c0_i32 = arith.constant 0 : i32
    %c0_i32_0 = arith.constant 0 : i32
    %c0_i32_1 = arith.constant 0 : i32
    return %c0_i32, %c0_i32_0 : i32, i32
  }
  func.func @transform_13(%arg0: i32) -> (i32, i32) {
    %c0_i32 = arith.constant 0 : i32
    %c0_i32_0 = arith.constant 0 : i32
    return %arg0, %c0_i32 : i32, i32
  }
}

module attributes {stable_mosaic.version = 11 : i64} {
  func.func @kernel(%arg0: i32, %arg1: memref<32x128xf32, #tpu.memory_space<vmem>>, %arg2: memref<128x128xbf16, #tpu.memory_space<vmem>>, %arg3: memref<1x128xf32, #tpu.memory_space<vmem>>, %arg4: memref<128x256xbf16, #tpu.memory_space<vmem>>, %arg5: memref<1x256xf32, #tpu.memory_space<vmem>>, %arg6: memref<256x128xbf16, #tpu.memory_space<vmem>>, %arg7: memref<1x128xf32, #tpu.memory_space<vmem>>, %arg8: memref<128x128xbf16, #tpu.memory_space<vmem>>, %arg9: memref<1x128xf32, #tpu.memory_space<vmem>>, %arg10: memref<128x128xbf16, #tpu.memory_space<vmem>>, %arg11: memref<1x128xf32, #tpu.memory_space<vmem>>, %arg12: memref<128x128xbf16, #tpu.memory_space<vmem>>, %arg13: memref<1x128xf32, #tpu.memory_space<vmem>>, %arg14: memref<32x128xf32, #tpu.memory_space<vmem>>) attributes {dimension_semantics = [#tpu.dimension_semantics<parallel>], iteration_bounds = array<i64: 2>, scalar_prefetch = 0 : i64, scratch_operands = 0 : i64, tpu.core_type = #tpu.core_type<tc>, window_params = [{transform_indices = @transform_0, window_bounds = array<i64: 32, 128>}, {pipeline_mode = #tpu.pipeline_mode<synchronous>, transform_indices = @transform_1, window_bounds = array<i64: 128, 128>}, {pipeline_mode = #tpu.pipeline_mode<synchronous>, transform_indices = @transform_2, window_bounds = array<i64: 1, 128>}, {pipeline_mode = #tpu.pipeline_mode<synchronous>, transform_indices = @transform_3, window_bounds = array<i64: 128, 256>}, {pipeline_mode = #tpu.pipeline_mode<synchronous>, transform_indices = @transform_4, window_bounds = array<i64: 1, 256>}, {pipeline_mode = #tpu.pipeline_mode<synchronous>, transform_indices = @transform_5, window_bounds = array<i64: 256, 128>}, {pipeline_mode = #tpu.pipeline_mode<synchronous>, transform_indices = @transform_6, window_bounds = array<i64: 1, 128>}, {pipeline_mode = #tpu.pipeline_mode<synchronous>, transform_indices = @transform_7, window_bounds = array<i64: 128, 128>}, {pipeline_mode = #tpu.pipeline_mode<synchronous>, transform_indices = @transform_8, window_bounds = array<i64: 1, 128>}, {pipeline_mode = #tpu.pipeline_mode<synchronous>, transform_indices = @transform_9, window_bounds = array<i64: 128, 128>}, {pipeline_mode = #tpu.pipeline_mode<synchronous>, transform_indices = @transform_10, window_bounds = array<i64: 1, 128>}, {pipeline_mode = #tpu.pipeline_mode<synchronous>, transform_indices = @transform_11, window_bounds = array<i64: 128, 128>}, {pipeline_mode = #tpu.pipeline_mode<synchronous>, transform_indices = @transform_12, window_bounds = array<i64: 1, 128>}, {transform_indices = @transform_13, window_bounds = array<i64: 32, 128>}]} {
    %c0 = arith.constant 0 : index
    %c0_0 = arith.constant 0 : index
    %0 = vector.load %arg1[%c0, %c0_0] : memref<32x128xf32, #tpu.memory_space<vmem>>, vector<32x128xf32>
    %1 = arith.truncf %0 : vector<32x128xf32> to vector<32x128xbf16>
    %c0_1 = arith.constant 0 : index
    %c0_2 = arith.constant 0 : index
    %2 = vector.load %arg2[%c0_1, %c0_2] : memref<128x128xbf16, #tpu.memory_space<vmem>>, vector<128x128xbf16>
    %cst = arith.constant dense<0.000000e+00> : vector<32x128xf32>
    %3 = tpu.matmul %1, %2, %cst {dimension_numbers = #tpu.dot_dimension_numbers<[1], [0], [0], [1], [0, 0, 1, 1], [], []>} : vector<32x128xbf16>, vector<128x128xbf16>, vector<32x128xf32> -> vector<32x128xf32>
    %c0_3 = arith.constant 0 : index
    %c0_4 = arith.constant 0 : index
    %4 = vector.load %arg3[%c0_3, %c0_4] : memref<1x128xf32, #tpu.memory_space<vmem>>, vector<1x128xf32>
    %5 = vector.broadcast %4 : vector<1x128xf32> to vector<32x128xf32>
    %6 = arith.addf %3, %5 : vector<32x128xf32>
    %cst_5 = arith.constant 0.000000e+00 : f32
    %7 = vector.broadcast %cst_5 : f32 to vector<32x128xf32>
    %8 = arith.subf %7, %6 : vector<32x128xf32>
    %9 = math.exp %8 : vector<32x128xf32>
    %cst_6 = arith.constant 1.000000e+00 : f32
    %10 = vector.broadcast %cst_6 : f32 to vector<32x128xf32>
    %11 = arith.addf %10, %9 : vector<32x128xf32>
    %12 = tpu.reciprocal %11 {approx = true} : vector<32x128xf32> -> vector<32x128xf32>
    %13 = arith.mulf %6, %12 : vector<32x128xf32>
    %14 = arith.truncf %13 : vector<32x128xf32> to vector<32x128xbf16>
    %c0_7 = arith.constant 0 : index
    %c0_8 = arith.constant 0 : index
    %15 = vector.load %arg4[%c0_7, %c0_8] : memref<128x256xbf16, #tpu.memory_space<vmem>>, vector<128x256xbf16>
    %cst_9 = arith.constant dense<0.000000e+00> : vector<32x256xf32>
    %16 = tpu.matmul %14, %15, %cst_9 {dimension_numbers = #tpu.dot_dimension_numbers<[1], [0], [0], [1], [0, 0, 1, 1], [], []>} : vector<32x128xbf16>, vector<128x256xbf16>, vector<32x256xf32> -> vector<32x256xf32>
    %c0_10 = arith.constant 0 : index
    %c0_11 = arith.constant 0 : index
    %17 = vector.load %arg5[%c0_10, %c0_11] : memref<1x256xf32, #tpu.memory_space<vmem>>, vector<1x256xf32>
    %18 = vector.broadcast %17 : vector<1x256xf32> to vector<32x256xf32>
    %19 = arith.addf %16, %18 : vector<32x256xf32>
    %cst_12 = arith.constant 0.000000e+00 : f32
    %20 = vector.broadcast %cst_12 : f32 to vector<32x256xf32>
    %21 = arith.subf %20, %19 : vector<32x256xf32>
    %22 = math.exp %21 : vector<32x256xf32>
    %cst_13 = arith.constant 1.000000e+00 : f32
    %23 = vector.broadcast %cst_13 : f32 to vector<32x256xf32>
    %24 = arith.addf %23, %22 : vector<32x256xf32>
    %25 = tpu.reciprocal %24 {approx = true} : vector<32x256xf32> -> vector<32x256xf32>
    %26 = arith.mulf %19, %25 : vector<32x256xf32>
    %27 = arith.truncf %26 : vector<32x256xf32> to vector<32x256xbf16>
    %c0_14 = arith.constant 0 : index
    %c0_15 = arith.constant 0 : index
    %28 = vector.load %arg6[%c0_14, %c0_15] : memref<256x128xbf16, #tpu.memory_space<vmem>>, vector<256x128xbf16>
    %cst_16 = arith.constant dense<0.000000e+00> : vector<32x128xf32>
    %29 = tpu.matmul %27, %28, %cst_16 {dimension_numbers = #tpu.dot_dimension_numbers<[1], [0], [0], [1], [0, 0, 1, 1], [], []>} : vector<32x256xbf16>, vector<256x128xbf16>, vector<32x128xf32> -> vector<32x128xf32>
    %c0_17 = arith.constant 0 : index
    %c0_18 = arith.constant 0 : index
    %30 = vector.load %arg7[%c0_17, %c0_18] : memref<1x128xf32, #tpu.memory_space<vmem>>, vector<1x128xf32>
    %31 = vector.broadcast %30 : vector<1x128xf32> to vector<32x128xf32>
    %32 = arith.addf %29, %31 : vector<32x128xf32>
    %cst_19 = arith.constant 0.000000e+00 : f32
    %33 = vector.broadcast %cst_19 : f32 to vector<32x128xf32>
    %34 = arith.subf %33, %32 : vector<32x128xf32>
    %35 = math.exp %34 : vector<32x128xf32>
    %cst_20 = arith.constant 1.000000e+00 : f32
    %36 = vector.broadcast %cst_20 : f32 to vector<32x128xf32>
    %37 = arith.addf %36, %35 : vector<32x128xf32>
    %38 = tpu.reciprocal %37 {approx = true} : vector<32x128xf32> -> vector<32x128xf32>
    %39 = arith.mulf %32, %38 : vector<32x128xf32>
    %40 = arith.truncf %39 : vector<32x128xf32> to vector<32x128xbf16>
    %c0_21 = arith.constant 0 : index
    %c0_22 = arith.constant 0 : index
    %41 = vector.load %arg8[%c0_21, %c0_22] : memref<128x128xbf16, #tpu.memory_space<vmem>>, vector<128x128xbf16>
    %cst_23 = arith.constant dense<0.000000e+00> : vector<32x128xf32>
    %42 = tpu.matmul %40, %41, %cst_23 {dimension_numbers = #tpu.dot_dimension_numbers<[1], [0], [0], [1], [0, 0, 1, 1], [], []>} : vector<32x128xbf16>, vector<128x128xbf16>, vector<32x128xf32> -> vector<32x128xf32>
    %c0_24 = arith.constant 0 : index
    %c0_25 = arith.constant 0 : index
    %43 = vector.load %arg9[%c0_24, %c0_25] : memref<1x128xf32, #tpu.memory_space<vmem>>, vector<1x128xf32>
    %44 = vector.broadcast %43 : vector<1x128xf32> to vector<32x128xf32>
    %45 = arith.addf %42, %44 : vector<32x128xf32>
    %cst_26 = arith.constant 0.000000e+00 : f32
    %46 = vector.broadcast %cst_26 : f32 to vector<32x128xf32>
    %47 = arith.subf %46, %45 : vector<32x128xf32>
    %48 = math.exp %47 : vector<32x128xf32>
    %cst_27 = arith.constant 1.000000e+00 : f32
    %49 = vector.broadcast %cst_27 : f32 to vector<32x128xf32>
    %50 = arith.addf %49, %48 : vector<32x128xf32>
    %51 = tpu.reciprocal %50 {approx = true} : vector<32x128xf32> -> vector<32x128xf32>
    %52 = arith.mulf %45, %51 : vector<32x128xf32>
    %53 = arith.truncf %52 : vector<32x128xf32> to vector<32x128xbf16>
    %c0_28 = arith.constant 0 : index
    %c0_29 = arith.constant 0 : index
    %54 = vector.load %arg10[%c0_28, %c0_29] : memref<128x128xbf16, #tpu.memory_space<vmem>>, vector<128x128xbf16>
    %cst_30 = arith.constant dense<0.000000e+00> : vector<32x128xf32>
    %55 = tpu.matmul %53, %54, %cst_30 {dimension_numbers = #tpu.dot_dimension_numbers<[1], [0], [0], [1], [0, 0, 1, 1], [], []>} : vector<32x128xbf16>, vector<128x128xbf16>, vector<32x128xf32> -> vector<32x128xf32>
    %c0_31 = arith.constant 0 : index
    %c0_32 = arith.constant 0 : index
    %56 = vector.load %arg11[%c0_31, %c0_32] : memref<1x128xf32, #tpu.memory_space<vmem>>, vector<1x128xf32>
    %57 = vector.broadcast %56 : vector<1x128xf32> to vector<32x128xf32>
    %58 = arith.addf %55, %57 : vector<32x128xf32>
    %cst_33 = arith.constant 0.000000e+00 : f32
    %59 = vector.broadcast %cst_33 : f32 to vector<32x128xf32>
    %60 = arith.subf %59, %58 : vector<32x128xf32>
    %61 = math.exp %60 : vector<32x128xf32>
    %cst_34 = arith.constant 1.000000e+00 : f32
    %62 = vector.broadcast %cst_34 : f32 to vector<32x128xf32>
    %63 = arith.addf %62, %61 : vector<32x128xf32>
    %64 = tpu.reciprocal %63 {approx = true} : vector<32x128xf32> -> vector<32x128xf32>
    %65 = arith.mulf %58, %64 : vector<32x128xf32>
    %66 = arith.truncf %65 : vector<32x128xf32> to vector<32x128xbf16>
    %c0_35 = arith.constant 0 : index
    %c0_36 = arith.constant 0 : index
    %67 = vector.load %arg12[%c0_35, %c0_36] : memref<128x128xbf16, #tpu.memory_space<vmem>>, vector<128x128xbf16>
    %cst_37 = arith.constant dense<0.000000e+00> : vector<32x128xf32>
    %68 = tpu.matmul %66, %67, %cst_37 {dimension_numbers = #tpu.dot_dimension_numbers<[1], [0], [0], [1], [0, 0, 1, 1], [], []>} : vector<32x128xbf16>, vector<128x128xbf16>, vector<32x128xf32> -> vector<32x128xf32>
    %c0_38 = arith.constant 0 : index
    %c0_39 = arith.constant 0 : index
    %69 = vector.load %arg13[%c0_38, %c0_39] : memref<1x128xf32, #tpu.memory_space<vmem>>, vector<1x128xf32>
    %70 = vector.broadcast %69 : vector<1x128xf32> to vector<32x128xf32>
    %71 = arith.addf %68, %70 : vector<32x128xf32>
    %cst_40 = arith.constant 0.000000e+00 : f32
    %72 = vector.broadcast %cst_40 : f32 to vector<32x128xf32>
    %73 = arith.subf %72, %71 : vector<32x128xf32>
    %74 = math.exp %73 : vector<32x128xf32>
    %cst_41 = arith.constant 1.000000e+00 : f32
    %75 = vector.broadcast %cst_41 : f32 to vector<32x128xf32>
    %76 = arith.addf %75, %74 : vector<32x128xf32>
    %77 = tpu.reciprocal %76 {approx = true} : vector<32x128xf32> -> vector<32x128xf32>
    %78 = arith.mulf %71, %77 : vector<32x128xf32>
    %c0_42 = arith.constant 0 : index
    %c0_43 = arith.constant 0 : index
    %79 = vector.load %arg14[%c0_42, %c0_43] : memref<32x128xf32, #tpu.memory_space<vmem>>, vector<32x128xf32>
    tpu.vector_store %arg14[%c0_42, %c0_43], %78 {strides = array<i32>} : memref<32x128xf32, #tpu.memory_space<vmem>>, vector<32x128xf32>,
    return
  }
  func.func @transform_0(%arg0: i32) -> (i32, i32) {
    %c0_i32 = arith.constant 0 : i32
    %c0_i32_0 = arith.constant 0 : i32
    return %arg0, %c0_i32 : i32, i32
  }
  func.func @transform_1(%arg0: i32) -> (i32, i32) {
    %c0_i32 = arith.constant 0 : i32
    %c0_i32_0 = arith.constant 0 : i32
    %c0_i32_1 = arith.constant 0 : i32
    return %c0_i32, %c0_i32_0 : i32, i32
  }
  func.func @transform_2(%arg0: i32) -> (i32, i32) {
    %c0_i32 = arith.constant 0 : i32
    %c0_i32_0 = arith.constant 0 : i32
    %c0_i32_1 = arith.constant 0 : i32
    return %c0_i32, %c0_i32_0 : i32, i32
  }
  func.func @transform_3(%arg0: i32) -> (i32, i32) {
    %c0_i32 = arith.constant 0 : i32
    %c0_i32_0 = arith.constant 0 : i32
    %c0_i32_1 = arith.constant 0 : i32
    return %c0_i32, %c0_i32_0 : i32, i32
  }
  func.func @transform_4(%arg0: i32) -> (i32, i32) {
    %c0_i32 = arith.constant 0 : i32
    %c0_i32_0 = arith.constant 0 : i32
    %c0_i32_1 = arith.constant 0 : i32
    return %c0_i32, %c0_i32_0 : i32, i32
  }
  func.func @transform_5(%arg0: i32) -> (i32, i32) {
    %c0_i32 = arith.constant 0 : i32
    %c0_i32_0 = arith.constant 0 : i32
    %c0_i32_1 = arith.constant 0 : i32
    return %c0_i32, %c0_i32_0 : i32, i32
  }
  func.func @transform_6(%arg0: i32) -> (i32, i32) {
    %c0_i32 = arith.constant 0 : i32
    %c0_i32_0 = arith.constant 0 : i32
    %c0_i32_1 = arith.constant 0 : i32
    return %c0_i32, %c0_i32_0 : i32, i32
  }
  func.func @transform_7(%arg0: i32) -> (i32, i32) {
    %c0_i32 = arith.constant 0 : i32
    %c0_i32_0 = arith.constant 0 : i32
    %c0_i32_1 = arith.constant 0 : i32
    return %c0_i32, %c0_i32_0 : i32, i32
  }
  func.func @transform_8(%arg0: i32) -> (i32, i32) {
    %c0_i32 = arith.constant 0 : i32
    %c0_i32_0 = arith.constant 0 : i32
    %c0_i32_1 = arith.constant 0 : i32
    return %c0_i32, %c0_i32_0 : i32, i32
  }
  func.func @transform_9(%arg0: i32) -> (i32, i32) {
    %c0_i32 = arith.constant 0 : i32
    %c0_i32_0 = arith.constant 0 : i32
    %c0_i32_1 = arith.constant 0 : i32
    return %c0_i32, %c0_i32_0 : i32, i32
  }
  func.func @transform_10(%arg0: i32) -> (i32, i32) {
    %c0_i32 = arith.constant 0 : i32
    %c0_i32_0 = arith.constant 0 : i32
    %c0_i32_1 = arith.constant 0 : i32
    return %c0_i32, %c0_i32_0 : i32, i32
  }
  func.func @transform_11(%arg0: i32) -> (i32, i32) {
    %c0_i32 = arith.constant 0 : i32
    %c0_i32_0 = arith.constant 0 : i32
    %c0_i32_1 = arith.constant 0 : i32
    return %c0_i32, %c0_i32_0 : i32, i32
  }
  func.func @transform_12(%arg0: i32) -> (i32, i32) {
    %c0_i32 = arith.constant 0 : i32
    %c0_i32_0 = arith.constant 0 : i32
    %c0_i32_1 = arith.constant 0 : i32
    return %c0_i32, %c0_i32_0 : i32, i32
  }
  func.func @transform_13(%arg0: i32) -> (i32, i32) {
    %c0_i32 = arith.constant 0 : i32
    %c0_i32_0 = arith.constant 0 : i32
    return %arg0, %c0_i32 : i32, i32
  }
}

</mosaic_0001>

<llo_original>
// kernel: network_forward.1
$region0: #{network_forward.1}
  #allocation0 [shape = 'u32[]', space=smem, size = 0x4, offset = 0x4, fixed_abs, tag = 'smem constant byte address 0x4 - core index']
  #allocation1 [shape = 'u32[144,128]{1,0:T(1,128)}', space=vmem, size = 0x12000, scoped, tag = 'internal scratch']
  %s0 = inlined_call_operand.vmem [shape: f32[64,128], index: 0, kind: input, shape index: {}]
  %s1 = inlined_call_operand.vmem [shape: bf16[128,128], index: 1, kind: input, shape index: {}]
  %s2 = inlined_call_operand.vmem [shape: f32[1,128], index: 2, kind: input, shape index: {}]
  %s3 = inlined_call_operand.vmem [shape: bf16[128,256], index: 3, kind: input, shape index: {}]
  %s4 = inlined_call_operand.vmem [shape: f32[1,256], index: 4, kind: input, shape index: {}]
  %s5 = inlined_call_operand.vmem [shape: bf16[256,128], index: 5, kind: input, shape index: {}]
  %s6 = inlined_call_operand.vmem [shape: f32[1,128], index: 6, kind: input, shape index: {}]
  %s7 = inlined_call_operand.vmem [shape: bf16[128,128], index: 7, kind: input, shape index: {}]
  %s8 = inlined_call_operand.vmem [shape: f32[1,128], index: 8, kind: input, shape index: {}]
  %s9 = inlined_call_operand.vmem [shape: bf16[128,128], index: 9, kind: input, shape index: {}]
  %s10 = inlined_call_operand.vmem [shape: f32[1,128], index: 10, kind: input, shape index: {}]
  %s11 = inlined_call_operand.vmem [shape: bf16[128,128], index: 11, kind: input, shape index: {}]
  %s12 = inlined_call_operand.vmem [shape: f32[1,128], index: 12, kind: input, shape index: {}]
  %s13 = inlined_call_operand.vmem [shape: f32[64,128], index: 13, kind: output, shape index: {}]
  %s14 = sld [smem:[#allocation0]]
  $region85: #{network_forward.1} parent=0
    _
  %s16 = ssub.s32 1, %s14
  %s17 = scalar_select 0, %s16, %s14
  loop: start=0, step=1, limit=4
  $region2: #{network_forward.1} parent=0 // loop_pre_header
    _
  $region3: #{network_forward.1} parent=0 // loop_header
    %s19 = sphi 0, %s23
    %p20 = scmp.ge.s32.totalorder %s19, 4
    %s29 = sphi 0, %s31
    %s32 = sphi 0, %s29
    %s33 = sphi 0, %s32
    %s49 = sphi 0, %s33
    %s53 = sphi 0, %s53
    %s55 = sphi 0, %s53
    %s56 = sphi 0, %s55
    %s70 = sphi 0, %s56
    %s74 = sphi 0, %s74
    %s76 = sphi 0, %s74
    %s77 = sphi 0, %s76
    %s91 = sphi 0, %s77
    %s95 = sphi 0, %s95
    %s97 = sphi 0, %s95
    %s98 = sphi 0, %s97
    %s112 = sphi 0, %s98
    %s116 = sphi 0, %s116
    %s118 = sphi 0, %s116
    %s119 = sphi 0, %s118
    %s133 = sphi 0, %s119
    %s137 = sphi 0, %s137
    %s139 = sphi 0, %s137
    %s140 = sphi 0, %s139
    %s154 = sphi 0, %s140
    %s158 = sphi 0, %s158
    %s160 = sphi 0, %s158
    %s161 = sphi 0, %s160
    %s175 = sphi 0, %s161
    %s179 = sphi 0, %s179
    %s181 = sphi 0, %s179
    %s182 = sphi 0, %s181
    %s196 = sphi 0, %s182
    %s200 = sphi 0, %s200
    %s202 = sphi 0, %s200
    %s203 = sphi 0, %s202
    %s217 = sphi 0, %s203
    %s221 = sphi 0, %s221
    %s223 = sphi 0, %s221
    %s224 = sphi 0, %s223
    %s238 = sphi 0, %s224
    %s242 = sphi 0, %s242
    %s244 = sphi 0, %s242
    %s245 = sphi 0, %s244
    %s259 = sphi 0, %s245
    %s263 = sphi 0, %s263
    %s265 = sphi 0, %s263
    %s266 = sphi 0, %s265
    %s280 = sphi 0, %s266
    %s284 = sphi 0, %s284
    %s286 = sphi 0, %s284
    %s287 = sphi 0, %s286
    %s301 = sphi 0, %s287
    %s307 = sphi 0, %s309
    %s310 = sphi 0, %s307
    %s311 = sphi 0, %s310
    %s327 = sphi 0, %s311
  $region4: #{network_forward.1} parent=0 // loop_header_branch
    %22 = sbr.rel (%p20) target = $region8
  $region5: #{network_forward.1} parent=0 // loop_body
    %s24 = ssub.s32 %s19, 1
    %s25 = ssub.s32 %s19, 2
    %s26 = sadd.s32 %s19, 1
    %s27 = ssub.s32 %s19, %s26
    %p28 = scmp.eq.s32.totalorder %s27, 0
    %s30 = sadd.s32 %s29, 1
    %s31 = scalar_select %p28, %s29, %s30
    %p34 = pneg %p28
    %p35 = scmp.eq.s32.totalorder %s19, 1
    %p36 = por %p34, %p35
    %p37 = scmp.ne.s32.totalorder %s29, %s32
    %p38 = scmp.eq.s32.totalorder %s19, 0
    %p39 = por %p37, %p38
    %p40 = scmp.ne.s32.totalorder %s29, %s32
    %p41 = scmp.eq.s32.totalorder %s24, 1
    %p42 = por %p40, %p41
    %p43 = scmp.ne.s32.totalorder %s32, %s33
    %p44 = scmp.eq.s32.totalorder %s24, 0
    %p45 = por %p43, %p44
    %p46 = scmp.ne.s32.totalorder %s32, %s33
    %p47 = scmp.eq.s32.totalorder %s25, 1
    %p48 = por %p46, %p47
    %p50 = scmp.ne.s32.totalorder %s33, %s49
    %p51 = scmp.eq.s32.totalorder %s25, 0
    %p52 = por %p50, %p51
    %s54 = sadd.s32 %s53, 1
    %p57 = scmp.eq.s32.totalorder %s19, 1
    %p58 = scmp.ne.s32.totalorder %s53, %s55
    %p59 = scmp.eq.s32.totalorder %s19, 0
    %p60 = por %p58, %p59
    %p61 = scmp.ne.s32.totalorder %s53, %s55
    %p62 = scmp.eq.s32.totalorder %s24, 1
    %p63 = por %p61, %p62
    %p64 = scmp.ne.s32.totalorder %s55, %s56
    %p65 = scmp.eq.s32.totalorder %s24, 0
    %p66 = por %p64, %p65
    %p67 = scmp.ne.s32.totalorder %s55, %s56
    %p68 = scmp.eq.s32.totalorder %s25, 1
    %p69 = por %p67, %p68
    %p71 = scmp.ne.s32.totalorder %s56, %s70
    %p72 = scmp.eq.s32.totalorder %s25, 0
    %p73 = por %p71, %p72
    %s75 = sadd.s32 %s74, 1
    %p78 = scmp.eq.s32.totalorder %s19, 1
    %p79 = scmp.ne.s32.totalorder %s74, %s76
    %p80 = scmp.eq.s32.totalorder %s19, 0
    %p81 = por %p79, %p80
    %p82 = scmp.ne.s32.totalorder %s74, %s76
    %p83 = scmp.eq.s32.totalorder %s24, 1
    %p84 = por %p82, %p83
    %p85 = scmp.ne.s32.totalorder %s76, %s77
    %p86 = scmp.eq.s32.totalorder %s24, 0
    %p87 = por %p85, %p86
    %p88 = scmp.ne.s32.totalorder %s76, %s77
    %p89 = scmp.eq.s32.totalorder %s25, 1
    %p90 = por %p88, %p89
    %p92 = scmp.ne.s32.totalorder %s77, %s91
    %p93 = scmp.eq.s32.totalorder %s25, 0
    %p94 = por %p92, %p93
    %s96 = sadd.s32 %s95, 1
    %p99 = scmp.eq.s32.totalorder %s19, 1
    %p100 = scmp.ne.s32.totalorder %s95, %s97
    %p101 = scmp.eq.s32.totalorder %s19, 0
    %p102 = por %p100, %p101
    %p103 = scmp.ne.s32.totalorder %s95, %s97
    %p104 = scmp.eq.s32.totalorder %s24, 1
    %p105 = por %p103, %p104
    %p106 = scmp.ne.s32.totalorder %s97, %s98
    %p107 = scmp.eq.s32.totalorder %s24, 0
    %p108 = por %p106, %p107
    %p109 = scmp.ne.s32.totalorder %s97, %s98
    %p110 = scmp.eq.s32.totalorder %s25, 1
    %p111 = por %p109, %p110
    %p113 = scmp.ne.s32.totalorder %s98, %s112
    %p114 = scmp.eq.s32.totalorder %s25, 0
    %p115 = por %p113, %p114
    %s117 = sadd.s32 %s116, 1
    %p120 = scmp.eq.s32.totalorder %s19, 1
    %p121 = scmp.ne.s32.totalorder %s116, %s118
    %p122 = scmp.eq.s32.totalorder %s19, 0
    %p123 = por %p121, %p122
    %p124 = scmp.ne.s32.totalorder %s116, %s118
    %p125 = scmp.eq.s32.totalorder %s24, 1
    %p126 = por %p124, %p125
    %p127 = scmp.ne.s32.totalorder %s118, %s119
    %p128 = scmp.eq.s32.totalorder %s24, 0
    %p129 = por %p127, %p128
    %p130 = scmp.ne.s32.totalorder %s118, %s119
    %p131 = scmp.eq.s32.totalorder %s25, 1
    %p132 = por %p130, %p131
    %p134 = scmp.ne.s32.totalorder %s119, %s133
    %p135 = scmp.eq.s32.totalorder %s25, 0
    %p136 = por %p134, %p135
    %s138 = sadd.s32 %s137, 1
    %p141 = scmp.eq.s32.totalorder %s19, 1
    %p142 = scmp.ne.s32.totalorder %s137, %s139
    %p143 = scmp.eq.s32.totalorder %s19, 0
    %p144 = por %p142, %p143
    %p145 = scmp.ne.s32.totalorder %s137, %s139
    %p146 = scmp.eq.s32.totalorder %s24, 1
    %p147 = por %p145, %p146
    %p148 = scmp.ne.s32.totalorder %s139, %s140
    %p149 = scmp.eq.s32.totalorder %s24, 0
    %p150 = por %p148, %p149
    %p151 = scmp.ne.s32.totalorder %s139, %s140
    %p152 = scmp.eq.s32.totalorder %s25, 1
    %p153 = por %p151, %p152
    %p155 = scmp.ne.s32.totalorder %s140, %s154
    %p156 = scmp.eq.s32.totalorder %s25, 0
    %p157 = por %p155, %p156
    %s159 = sadd.s32 %s158, 1
    %p162 = scmp.eq.s32.totalorder %s19, 1
    %p163 = scmp.ne.s32.totalorder %s158, %s160
    %p164 = scmp.eq.s32.totalorder %s19, 0
    %p165 = por %p163, %p164
    %p166 = scmp.ne.s32.totalorder %s158, %s160
    %p167 = scmp.eq.s32.totalorder %s24, 1
    %p168 = por %p166, %p167
    %p169 = scmp.ne.s32.totalorder %s160, %s161
    %p170 = scmp.eq.s32.totalorder %s24, 0
    %p171 = por %p169, %p170
    %p172 = scmp.ne.s32.totalorder %s160, %s161
    %p173 = scmp.eq.s32.totalorder %s25, 1
    %p174 = por %p172, %p173
    %p176 = scmp.ne.s32.totalorder %s161, %s175
    %p177 = scmp.eq.s32.totalorder %s25, 0
    %p178 = por %p176, %p177
    %s180 = sadd.s32 %s179, 1
    %p183 = scmp.eq.s32.totalorder %s19, 1
    %p184 = scmp.ne.s32.totalorder %s179, %s181
    %p185 = scmp.eq.s32.totalorder %s19, 0
    %p186 = por %p184, %p185
    %p187 = scmp.ne.s32.totalorder %s179, %s181
    %p188 = scmp.eq.s32.totalorder %s24, 1
    %p189 = por %p187, %p188
    %p190 = scmp.ne.s32.totalorder %s181, %s182
    %p191 = scmp.eq.s32.totalorder %s24, 0
    %p192 = por %p190, %p191
    %p193 = scmp.ne.s32.totalorder %s181, %s182
    %p194 = scmp.eq.s32.totalorder %s25, 1
    %p195 = por %p193, %p194
    %p197 = scmp.ne.s32.totalorder %s182, %s196
    %p198 = scmp.eq.s32.totalorder %s25, 0
    %p199 = por %p197, %p198
    %s201 = sadd.s32 %s200, 1
    %p204 = scmp.eq.s32.totalorder %s19, 1
    %p205 = scmp.ne.s32.totalorder %s200, %s202
    %p206 = scmp.eq.s32.totalorder %s19, 0
    %p207 = por %p205, %p206
    %p208 = scmp.ne.s32.totalorder %s200, %s202
    %p209 = scmp.eq.s32.totalorder %s24, 1
    %p210 = por %p208, %p209
    %p211 = scmp.ne.s32.totalorder %s202, %s203
    %p212 = scmp.eq.s32.totalorder %s24, 0
    %p213 = por %p211, %p212
    %p214 = scmp.ne.s32.totalorder %s202, %s203
    %p215 = scmp.eq.s32.totalorder %s25, 1
    %p216 = por %p214, %p215
    %p218 = scmp.ne.s32.totalorder %s203, %s217
    %p219 = scmp.eq.s32.totalorder %s25, 0
    %p220 = por %p218, %p219
    %s222 = sadd.s32 %s221, 1
    %p225 = scmp.eq.s32.totalorder %s19, 1
    %p226 = scmp.ne.s32.totalorder %s221, %s223
    %p227 = scmp.eq.s32.totalorder %s19, 0
    %p228 = por %p226, %p227
    %p229 = scmp.ne.s32.totalorder %s221, %s223
    %p230 = scmp.eq.s32.totalorder %s24, 1
    %p231 = por %p229, %p230
    %p232 = scmp.ne.s32.totalorder %s223, %s224
    %p233 = scmp.eq.s32.totalorder %s24, 0
    %p234 = por %p232, %p233
    %p235 = scmp.ne.s32.totalorder %s223, %s224
    %p236 = scmp.eq.s32.totalorder %s25, 1
    %p237 = por %p235, %p236
    %p239 = scmp.ne.s32.totalorder %s224, %s238
    %p240 = scmp.eq.s32.totalorder %s25, 0
    %p241 = por %p239, %p240
    %s243 = sadd.s32 %s242, 1
    %p246 = scmp.eq.s32.totalorder %s19, 1
    %p247 = scmp.ne.s32.totalorder %s242, %s244
    %p248 = scmp.eq.s32.totalorder %s19, 0
    %p249 = por %p247, %p248
    %p250 = scmp.ne.s32.totalorder %s242, %s244
    %p251 = scmp.eq.s32.totalorder %s24, 1
    %p252 = por %p250, %p251
    %p253 = scmp.ne.s32.totalorder %s244, %s245
    %p254 = scmp.eq.s32.totalorder %s24, 0
    %p255 = por %p253, %p254
    %p256 = scmp.ne.s32.totalorder %s244, %s245
    %p257 = scmp.eq.s32.totalorder %s25, 1
    %p258 = por %p256, %p257
    %p260 = scmp.ne.s32.totalorder %s245, %s259
    %p261 = scmp.eq.s32.totalorder %s25, 0
    %p262 = por %p260, %p261
    %s264 = sadd.s32 %s263, 1
    %p267 = scmp.eq.s32.totalorder %s19, 1
    %p268 = scmp.ne.s32.totalorder %s263, %s265
    %p269 = scmp.eq.s32.totalorder %s19, 0
    %p270 = por %p268, %p269
    %p271 = scmp.ne.s32.totalorder %s263, %s265
    %p272 = scmp.eq.s32.totalorder %s24, 1
    %p273 = por %p271, %p272
    %p274 = scmp.ne.s32.totalorder %s265, %s266
    %p275 = scmp.eq.s32.totalorder %s24, 0
    %p276 = por %p274, %p275
    %p277 = scmp.ne.s32.totalorder %s265, %s266
    %p278 = scmp.eq.s32.totalorder %s25, 1
    %p279 = por %p277, %p278
    %p281 = scmp.ne.s32.totalorder %s266, %s280
    %p282 = scmp.eq.s32.totalorder %s25, 0
    %p283 = por %p281, %p282
    %s285 = sadd.s32 %s284, 1
    %p288 = scmp.eq.s32.totalorder %s19, 1
    %p289 = scmp.ne.s32.totalorder %s284, %s286
    %p290 = scmp.eq.s32.totalorder %s19, 0
    %p291 = por %p289, %p290
    %p292 = scmp.ne.s32.totalorder %s284, %s286
    %p293 = scmp.eq.s32.totalorder %s24, 1
    %p294 = por %p292, %p293
    %p295 = scmp.ne.s32.totalorder %s286, %s287
    %p296 = scmp.eq.s32.totalorder %s24, 0
    %p297 = por %p295, %p296
    %p298 = scmp.ne.s32.totalorder %s286, %s287
    %p299 = scmp.eq.s32.totalorder %s25, 1
    %p300 = por %p298, %p299
    %p302 = scmp.ne.s32.totalorder %s287, %s301
    %p303 = scmp.eq.s32.totalorder %s25, 0
    %p304 = por %p302, %p303
    %s305 = ssub.s32 %s19, %s26
    %p306 = scmp.eq.s32.totalorder %s305, 0
    %s308 = sadd.s32 %s307, 1
    %s309 = scalar_select %p306, %s307, %s308
    %p312 = pneg %p306
    %p313 = scmp.eq.s32.totalorder %s19, 1
    %p314 = por %p312, %p313
    %p315 = scmp.ne.s32.totalorder %s307, %s310
    %p316 = scmp.eq.s32.totalorder %s19, 0
    %p317 = por %p315, %p316
    %p318 = scmp.ne.s32.totalorder %s307, %s310
    %p319 = scmp.eq.s32.totalorder %s24, 1
    %p320 = por %p318, %p319
    %p321 = scmp.ne.s32.totalorder %s310, %s311
    %p322 = scmp.eq.s32.totalorder %s24, 0
    %p323 = por %p321, %p322
    %p324 = scmp.ne.s32.totalorder %s310, %s311
    %p325 = scmp.eq.s32.totalorder %s25, 1
    %p326 = por %p324, %p325
    %p328 = scmp.ne.s32.totalorder %s311, %s327
    %p329 = scmp.eq.s32.totalorder %s25, 0
    %p330 = por %p328, %p329
    %p331 = scmp.le.s32.totalorder 1, %s19
    %p332 = scmp.lt.s32.totalorder %s19, 3
    %p333 = pnand %p331, %p332
    %p334 = pneg %p333
    // Predicated region
    $region9: #{network_forward.1} parent=5 // pred_check
      _
    $region10: #{network_forward.1} parent=5 // pred_check_branch
      %336 = sbr.rel (%p333) target = $region12
    $region11: #{network_forward.1} parent=5 // pred_region
      %s337 = ssub.s32 %s19, 1
      // Predicated region
      $region13: #{network_forward.1} parent=11 // pred_check
        %p338 = pneg %p66
      $region14: #{network_forward.1} parent=11 // pred_check_branch
        %340 = sbr.rel (%p338) target = $region16
      $region15: #{network_forward.1} parent=11 // pred_region
        _
      $region16: #{network_forward.1} parent=11 // pred_fallthru
        _
      // Predicated region
      $region17: #{network_forward.1} parent=11 // pred_check
        %p341 = pneg %p87
      $region18: #{network_forward.1} parent=11 // pred_check_branch
        %343 = sbr.rel (%p341) target = $region20
      $region19: #{network_forward.1} parent=11 // pred_region
        _
      $region20: #{network_forward.1} parent=11 // pred_fallthru
        _
      // Predicated region
      $region21: #{network_forward.1} parent=11 // pred_check
        %p344 = pneg %p108
      $region22: #{network_forward.1} parent=11 // pred_check_branch
        %346 = sbr.rel (%p344) target = $region24
      $region23: #{network_forward.1} parent=11 // pred_region
        _
      $region24: #{network_forward.1} parent=11 // pred_fallthru
        _
      // Predicated region
      $region25: #{network_forward.1} parent=11 // pred_check
        %p347 = pneg %p129
      $region26: #{network_forward.1} parent=11 // pred_check_branch
        %349 = sbr.rel (%p347) target = $region28
      $region27: #{network_forward.1} parent=11 // pred_region
        _
      $region28: #{network_forward.1} parent=11 // pred_fallthru
        _
      // Predicated region
      $region29: #{network_forward.1} parent=11 // pred_check
        %p350 = pneg %p150
      $region30: #{network_forward.1} parent=11 // pred_check_branch
        %352 = sbr.rel (%p350) target = $region32
      $region31: #{network_forward.1} parent=11 // pred_region
        _
      $region32: #{network_forward.1} parent=11 // pred_fallthru
        _
      // Predicated region
      $region33: #{network_forward.1} parent=11 // pred_check
        %p353 = pneg %p171
      $region34: #{network_forward.1} parent=11 // pred_check_branch
        %355 = sbr.rel (%p353) target = $region36
      $region35: #{network_forward.1} parent=11 // pred_region
        _
      $region36: #{network_forward.1} parent=11 // pred_fallthru
        _
      // Predicated region
      $region37: #{network_forward.1} parent=11 // pred_check
        %p356 = pneg %p192
      $region38: #{network_forward.1} parent=11 // pred_check_branch
        %358 = sbr.rel (%p356) target = $region40
      $region39: #{network_forward.1} parent=11 // pred_region
        _
      $region40: #{network_forward.1} parent=11 // pred_fallthru
        _
      // Predicated region
      $region41: #{network_forward.1} parent=11 // pred_check
        %p359 = pneg %p213
      $region42: #{network_forward.1} parent=11 // pred_check_branch
        %361 = sbr.rel (%p359) target = $region44
      $region43: #{network_forward.1} parent=11 // pred_region
        _
      $region44: #{network_forward.1} parent=11 // pred_fallthru
        _
      // Predicated region
      $region45: #{network_forward.1} parent=11 // pred_check
        %p362 = pneg %p234
      $region46: #{network_forward.1} parent=11 // pred_check_branch
        %364 = sbr.rel (%p362) target = $region48
      $region47: #{network_forward.1} parent=11 // pred_region
        _
      $region48: #{network_forward.1} parent=11 // pred_fallthru
        _
      // Predicated region
      $region49: #{network_forward.1} parent=11 // pred_check
        %p365 = pneg %p255
      $region50: #{network_forward.1} parent=11 // pred_check_branch
        %367 = sbr.rel (%p365) target = $region52
      $region51: #{network_forward.1} parent=11 // pred_region
        _
      $region52: #{network_forward.1} parent=11 // pred_fallthru
        _
      // Predicated region
      $region53: #{network_forward.1} parent=11 // pred_check
        %p368 = pneg %p276
      $region54: #{network_forward.1} parent=11 // pred_check_branch
        %370 = sbr.rel (%p368) target = $region56
      $region55: #{network_forward.1} parent=11 // pred_region
        _
      $region56: #{network_forward.1} parent=11 // pred_fallthru
        _
      // Predicated region
      $region57: #{network_forward.1} parent=11 // pred_check
        %p371 = pneg %p297
      $region58: #{network_forward.1} parent=11 // pred_check_branch
        %373 = sbr.rel (%p371) target = $region60
      $region59: #{network_forward.1} parent=11 // pred_region
        _
      $region60: #{network_forward.1} parent=11 // pred_fallthru
        _
    $region12: #{network_forward.1} parent=5 // pred_fallthru
      _
    %p374 = scmp.lt.s32.totalorder %s19, 2
    // Predicated region
    $region61: #{network_forward.1} parent=5 // pred_check
      %p375 = pneg %p374
    $region62: #{network_forward.1} parent=5 // pred_check_branch
      %377 = sbr.rel (%p375) target = $region64
    $region63: #{network_forward.1} parent=5 // pred_region
      // Predicated region
      $region65: #{network_forward.1} parent=63 // pred_check
        %p378 = pneg %p39
      $region66: #{network_forward.1} parent=63 // pred_check_branch
        %380 = sbr.rel (%p378) target = $region68
      $region67: #{network_forward.1} parent=63 // pred_region
        %s381 = smul.u32 4, %s19
        %p382 = scmp.lt.s32.totalorder %s381, 7
        %s383 = scalar_select %p382, %s381, 7
        %s384 = smul.addr %s383, 8
        %s385 = scalar_lea.vmem %s0, %s384
        %s386 = smul.u32 4, %s19
      $region68: #{network_forward.1} parent=63 // pred_fallthru
        _
    $region64: #{network_forward.1} parent=5 // pred_fallthru
      _
    %p387 = scmp.le.s32.totalorder 1, %s19
    %p388 = scmp.lt.s32.totalorder %s19, 3
    %p389 = pnand %p387, %p388
    %p390 = pneg %p389
    // Predicated region
    $region69: #{network_forward.1} parent=5 // pred_check
      _
    $region70: #{network_forward.1} parent=5 // pred_check_branch
      %392 = sbr.rel (%p389) target = $region72
    $region71: #{network_forward.1} parent=5 // pred_region
      %s393 = ssub.s32 %s19, 1
      %s394 = smul.u32 4, %s24
      %p395 = scmp.lt.s32.totalorder %s394, 7
      %s396 = scalar_select %p395, %s394, 7
      %s397 = smul.addr %s396, 8
      %s398 = scalar_lea.vmem %s0, %s397
      %p399 = pneg %p45
      %p400 = pneg %p42
      %p401 = pneg %p66
      %p402 = pneg %p63
      %p403 = pneg %p87
      %p404 = pneg %p84
      %p405 = pneg %p108
      %p406 = pneg %p105
      %p407 = pneg %p129
      %p408 = pneg %p126
      %p409 = pneg %p150
      %p410 = pneg %p147
      %p411 = pneg %p171
      %p412 = pneg %p168
      %p413 = pneg %p192
      %p414 = pneg %p189
      %p415 = pneg %p213
      %p416 = pneg %p210
      %p417 = pneg %p234
      %p418 = pneg %p231
      %p419 = pneg %p255
      %p420 = pneg %p252
      %p421 = pneg %p276
      %p422 = pneg %p273
      %p423 = pneg %p297
      %p424 = pneg %p294
      %p425 = pneg %p323
      %p426 = pneg %p320
      %s427 = smul.u32 4, %s24
      %p428 = scmp.lt.s32.totalorder %s427, 7
      %s429 = scalar_select %p428, %s427, 7
      %s430 = smul.addr %s429, 8
      %s431 = scalar_lea.vmem %s13, %s430
      %s432 = smul.u32 4, %s24
      %p433 = scmp.lt.s32.totalorder %s432, 7
      %s434 = scalar_select %p433, %s432, 7
      %s435 = smul.addr %s434, 8
      %s436 = scalar_lea.vmem %s0, %s435
      %s437 = smul.u32 4, %s24
      %s438 = smul.u32 4, %s24
      %p439 = scmp.lt.s32.totalorder %s438, 7
      %s440 = scalar_select %p439, %s438, 7
      %s441 = smul.addr %s440, 8
      %s442 = scalar_lea.vmem %s13, %s441
      %s443 = smul.u32 4, %s24
      %v445 = vld [vmem:[%s436] sm:$0xff]
      %v446 = vld [vmem:[%s436 + $0x8] sm:$0xff]
      %v447 = vld [vmem:[%s436 + $0x10] sm:$0xff]
      %v448 = vld [vmem:[%s436 + $0x18] sm:$0xff]
      %v449 = vpack.c.bf16 %v446, %v445
      %v450 = vpack.c.bf16 %v448, %v447
      %v451 = vld [vmem:[%s1] sm:$0xf]
      %v452 = vld [vmem:[%s1 + $0x4] sm:$0xf]
      %v453 = vld [vmem:[%s1 + $0x8] sm:$0xf]
      %v454 = vld [vmem:[%s1 + $0xc] sm:$0xf]
      %v455 = vld [vmem:[%s1 + $0x10] sm:$0xf]
      %v456 = vld [vmem:[%s1 + $0x14] sm:$0xf]
      %v457 = vld [vmem:[%s1 + $0x18] sm:$0xf]
      %v458 = vld [vmem:[%s1 + $0x1c] sm:$0xf]
      %v459 = vld [vmem:[%s1 + $0x20] sm:$0xf]
      %v460 = vld [vmem:[%s1 + $0x24] sm:$0xf]
      %v461 = vld [vmem:[%s1 + $0x28] sm:$0xf]
      %v462 = vld [vmem:[%s1 + $0x2c] sm:$0xf]
      %v463 = vld [vmem:[%s1 + $0x30] sm:$0xf]
      %v464 = vld [vmem:[%s1 + $0x34] sm:$0xf]
      %v465 = vld [vmem:[%s1 + $0x38] sm:$0xf]
      %v466 = vld [vmem:[%s1 + $0x3c] sm:$0xf]
      %v467 = vld [vmem:[%s2] sm:$0x1]
      %v469 = vlaneseq
      %v470 = vshrl.u32 %v469, 7
      %v471 = vsub.s32 0, %v470
      %v472 = vrot.slane %v467, %v471
      %v490 = vunpack.c.l.b16 %v451
      %v491 = vunpack.c.l.b16 %v452
      %v492 = vunpack.c.l.b16 %v453
      %v493 = vunpack.c.l.b16 %v454
      %v494 = vunpack.c.l.b16 %v455
      %v495 = vunpack.c.l.b16 %v456
      %v496 = vunpack.c.l.b16 %v457
      %v497 = vunpack.c.l.b16 %v458
      %v498 = vunpack.c.l.b16 %v459
      %v499 = vunpack.c.l.b16 %v460
      %v500 = vunpack.c.l.b16 %v461
      %v501 = vunpack.c.l.b16 %v462
      %v502 = vunpack.c.l.b16 %v463
      %v503 = vunpack.c.l.b16 %v464
      %v504 = vunpack.c.l.b16 %v465
      %v505 = vunpack.c.l.b16 %v466
      %v506 = vpack.c.b16 %v491, %v490
      %v507 = vpack.c.b16 %v493, %v492
      %v508 = vpack.c.b16 %v495, %v494
      %v509 = vpack.c.b16 %v497, %v496
      %v510 = vpack.c.b16 %v499, %v498
      %v511 = vpack.c.b16 %v501, %v500
      %v512 = vpack.c.b16 %v503, %v502
      %v513 = vpack.c.b16 %v505, %v504
      %522 = vmatprep.subr.bf16.mxu0 0
      %523 = vmatpush1.bf16.msra.mxu0 %v513
      %524 = vmatprep.subr.bf16.mxu0 0
      %525 = vmatpush1.bf16.msra.mxu0 %v512
      %526 = vmatprep.subr.bf16.mxu0 0
      %527 = vmatpush1.bf16.msra.mxu0 %v511
      %528 = vmatprep.subr.bf16.mxu0 0
      %529 = vmatpush1.bf16.msra.mxu0 %v510
      %530 = vmatprep.subr.bf16.mxu0 0
      %531 = vmatpush1.bf16.msra.mxu0 %v509
      %532 = vmatprep.subr.bf16.mxu0 0
      %533 = vmatpush1.bf16.msra.mxu0 %v508
      %534 = vmatprep.subr.bf16.mxu0 0
      %535 = vmatpush1.bf16.msra.mxu0 %v507
      %536 = vmatprep.subr.bf16.mxu0 0
      %537 = vmatpush1.bf16.msra.mxu0 %v506
      %538 = vmatprep.subr.bf16.mxu0 0
      %539 = vmatpush2.bf16.msra.mxu0 0
      %540 = vmatprep.subr.bf16.mxu0 0
      %541 = vmatpush2.bf16.msra.mxu0 0
      %542 = vmatprep.subr.bf16.mxu0 0
      %543 = vmatpush2.bf16.msra.mxu0 0
      %544 = vmatprep.subr.bf16.mxu0 0
      %545 = vmatpush2.bf16.msra.mxu0 0
      %546 = vmatprep.subr.bf16.mxu0 0
      %547 = vmatpush2.bf16.msra.mxu0 0
      %548 = vmatprep.subr.bf16.mxu0 0
      %549 = vmatpush2.bf16.msra.mxu0 0
      %550 = vmatprep.subr.bf16.mxu0 0
      %551 = vmatpush2.bf16.msra.mxu0 0
      %552 = vmatprep.subr.bf16.mxu0 0
      %553 = vmatpush2.bf16.msra.mxu0 0
      %554 = vmatprep.mubr.bf16.mxu0 0
      %555 = vmatmul.mubr.bf16.gmra.mxu0 %v449
      %v556 = vpop.f32.mrf.mxu0
      %v557 = vadd.f32 %v472, %v556
      %v558 = vpop.f32.mrf.mxu0
      %v559 = vpop.f32.mrf.mxu0
      %v560 = vadd.f32 %v472, %v559
      %v561 = vpop.f32.mrf.mxu0
      %562 = vmatprep.mubr.bf16.mxu0 0
      %563 = vmatmul.mubr.bf16.gmra.mxu0 %v450
      %v564 = vpop.f32.mrf.mxu0
      %v565 = vadd.f32 %v472, %v564
      %v566 = vpop.f32.mrf.mxu0
      %v567 = vpop.f32.mrf.mxu0
      %v568 = vadd.f32 %v472, %v567
      %v569 = vpop.f32.mrf.mxu0
      %570 = vdwg.mxu0
      %v571 = vsub.f32 0.0, %v557
      %v572 = vsub.f32 0.0, %v560
      %v573 = vsub.f32 0.0, %v565
      %v574 = vsub.f32 0.0, %v568
      %v575 = vmul.f32 %v571, 1.442695
      %v576 = vpow.pop %v575
      %v577 = vmul.f32 %v572, 1.442695
      %v578 = vpow.pop %v577
      %v579 = vmul.f32 %v573, 1.442695
      %v580 = vpow.pop %v579
      %v581 = vmul.f32 %v574, 1.442695
      %v582 = vpow.pop %v581
      %v583 = vadd.f32 %v576, 1.0
      %v584 = vadd.f32 %v578, 1.0
      %v585 = vadd.f32 %v580, 1.0
      %v586 = vadd.f32 %v582, 1.0
      %v587 = vrcp.pop %v583
      %v588 = vrcp.pop %v584
      %v589 = vrcp.pop %v585
      %v590 = vrcp.pop %v586
      %v591 = vmul.f32 %v557, %v587
      %v592 = vmul.f32 %v560, %v588
      %v593 = vmul.f32 %v565, %v589
      %v594 = vmul.f32 %v568, %v590
      %v595 = vpack.c.bf16 %v592, %v591
      %v596 = vpack.c.bf16 %v594, %v593
      %v597 = vld [vmem:[%s3] sm:$0xff]
      %v598 = vld [vmem:[%s3 + $0x8] sm:$0xff]
      %v599 = vld [vmem:[%s3 + $0x10] sm:$0xff]
      %v600 = vld [vmem:[%s3 + $0x18] sm:$0xff]
      %v601 = vld [vmem:[%s3 + $0x20] sm:$0xff]
      %v602 = vld [vmem:[%s3 + $0x28] sm:$0xff]
      %v603 = vld [vmem:[%s3 + $0x30] sm:$0xff]
      %v604 = vld [vmem:[%s3 + $0x38] sm:$0xff]
      %v605 = vld [vmem:[%s3 + $0x40] sm:$0xff]
      %v606 = vld [vmem:[%s3 + $0x48] sm:$0xff]
      %v607 = vld [vmem:[%s3 + $0x50] sm:$0xff]
      %v608 = vld [vmem:[%s3 + $0x58] sm:$0xff]
      %v609 = vld [vmem:[%s3 + $0x60] sm:$0xff]
      %v610 = vld [vmem:[%s3 + $0x68] sm:$0xff]
      %v611 = vld [vmem:[%s3 + $0x70] sm:$0xff]
      %v612 = vld [vmem:[%s3 + $0x78] sm:$0xff]
      %v613 = vld [vmem:[%s4] sm:$0x3]
      %v615 = vlaneseq
      %v616 = vshrl.u32 %v615, 7
      %v617 = vsub.s32 0, %v616
      %v618 = vrot.slane %v613, %v617
      %v619 = vlaneseq
      %v620 = vshrl.u32 %v619, 7
      %v621 = vsub.s32 1, %v620
      %v622 = vrot.slane %v613, %v621
      %v641 = vunpack.c.l.b16 %v597
      %v642 = vunpack.c.h.b16 %v597
      %v643 = vunpack.c.l.b16 %v598
      %v644 = vunpack.c.h.b16 %v598
      %v645 = vunpack.c.l.b16 %v599
      %v646 = vunpack.c.h.b16 %v599
      %v647 = vunpack.c.l.b16 %v600
      %v648 = vunpack.c.h.b16 %v600
      %v649 = vunpack.c.l.b16 %v601
      %v650 = vunpack.c.h.b16 %v601
      %v651 = vunpack.c.l.b16 %v602
      %v652 = vunpack.c.h.b16 %v602
      %v653 = vunpack.c.l.b16 %v603
      %v654 = vunpack.c.h.b16 %v603
      %v655 = vunpack.c.l.b16 %v604
      %v656 = vunpack.c.h.b16 %v604
      %v657 = vunpack.c.l.b16 %v605
      %v658 = vunpack.c.h.b16 %v605
      %v659 = vunpack.c.l.b16 %v606
      %v660 = vunpack.c.h.b16 %v606
      %v661 = vunpack.c.l.b16 %v607
      %v662 = vunpack.c.h.b16 %v607
      %v663 = vunpack.c.l.b16 %v608
      %v664 = vunpack.c.h.b16 %v608
      %v665 = vunpack.c.l.b16 %v609
      %v666 = vunpack.c.h.b16 %v609
      %v667 = vunpack.c.l.b16 %v610
      %v668 = vunpack.c.h.b16 %v610
      %v669 = vunpack.c.l.b16 %v611
      %v670 = vunpack.c.h.b16 %v611
      %v671 = vunpack.c.l.b16 %v612
      %v672 = vunpack.c.h.b16 %v612
      %v673 = vpack.c.b16 %v643, %v641
      %v674 = vpack.c.b16 %v644, %v642
      %v675 = vpack.c.b16 %v647, %v645
      %v676 = vpack.c.b16 %v648, %v646
      %v677 = vpack.c.b16 %v651, %v649
      %v678 = vpack.c.b16 %v652, %v650
      %v679 = vpack.c.b16 %v655, %v653
      %v680 = vpack.c.b16 %v656, %v654
      %v681 = vpack.c.b16 %v659, %v657
      %v682 = vpack.c.b16 %v660, %v658
      %v683 = vpack.c.b16 %v663, %v661
      %v684 = vpack.c.b16 %v664, %v662
      %v685 = vpack.c.b16 %v667, %v665
      %v686 = vpack.c.b16 %v668, %v666
      %v687 = vpack.c.b16 %v671, %v669
      %v688 = vpack.c.b16 %v672, %v670
      %705 = vmatprep.subr.bf16.mxu0 %v688
      %706 = vmatpush1.bf16.msra.mxu0 %v687
      %707 = vmatprep.subr.bf16.mxu0 %v686
      %708 = vmatpush1.bf16.msra.mxu0 %v685
      %709 = vmatprep.subr.bf16.mxu0 %v684
      %710 = vmatpush1.bf16.msra.mxu0 %v683
      %711 = vmatprep.subr.bf16.mxu0 %v682
      %712 = vmatpush1.bf16.msra.mxu0 %v681
      %713 = vmatprep.subr.bf16.mxu0 %v680
      %714 = vmatpush1.bf16.msra.mxu0 %v679
      %715 = vmatprep.subr.bf16.mxu0 %v678
      %716 = vmatpush1.bf16.msra.mxu0 %v677
      %717 = vmatprep.subr.bf16.mxu0 %v676
      %718 = vmatpush1.bf16.msra.mxu0 %v675
      %719 = vmatprep.subr.bf16.mxu0 %v674
      %720 = vmatpush1.bf16.msra.mxu0 %v673
      %721 = vmatprep.subr.bf16.mxu0 0
      %722 = vmatpush2.bf16.msra.mxu0 0
      %723 = vmatprep.subr.bf16.mxu0 0
      %724 = vmatpush2.bf16.msra.mxu0 0
      %725 = vmatprep.subr.bf16.mxu0 0
      %726 = vmatpush2.bf16.msra.mxu0 0
      %727 = vmatprep.subr.bf16.mxu0 0
      %728 = vmatpush2.bf16.msra.mxu0 0
      %729 = vmatprep.subr.bf16.mxu0 0
      %730 = vmatpush2.bf16.msra.mxu0 0
      %731 = vmatprep.subr.bf16.mxu0 0
      %732 = vmatpush2.bf16.msra.mxu0 0
      %733 = vmatprep.subr.bf16.mxu0 0
      %734 = vmatpush2.bf16.msra.mxu0 0
      %735 = vmatprep.subr.bf16.mxu0 0
      %736 = vmatpush2.bf16.msra.mxu0 0
      %737 = vmatprep.mubr.bf16.mxu0 0
      %738 = vmatmul.mubr.bf16.gmra.mxu0 %v595
      %v739 = vpop.f32.mrf.mxu0
      %v740 = vadd.f32 %v618, %v739
      %v741 = vpop.f32.mrf.mxu0
      %v742 = vadd.f32 %v622, %v741
      %v743 = vpop.f32.mrf.mxu0
      %v744 = vadd.f32 %v618, %v743
      %v745 = vpop.f32.mrf.mxu0
      %v746 = vadd.f32 %v622, %v745
      %747 = vmatprep.mubr.bf16.mxu0 0
      %748 = vmatmul.mubr.bf16.gmra.mxu0 %v596
      %v749 = vpop.f32.mrf.mxu0
      %v750 = vadd.f32 %v618, %v749
      %v751 = vpop.f32.mrf.mxu0
      %v752 = vadd.f32 %v622, %v751
      %v753 = vpop.f32.mrf.mxu0
      %v754 = vadd.f32 %v618, %v753
      %v755 = vpop.f32.mrf.mxu0
      %v756 = vadd.f32 %v622, %v755
      %757 = vdwg.mxu0
      %v758 = vsub.f32 0.0, %v740
      %v759 = vsub.f32 0.0, %v742
      %v760 = vsub.f32 0.0, %v744
      %v761 = vsub.f32 0.0, %v746
      %v762 = vsub.f32 0.0, %v750
      %v763 = vsub.f32 0.0, %v752
      %v764 = vsub.f32 0.0, %v754
      %v765 = vsub.f32 0.0, %v756
      %v766 = vmul.f32 %v758, 1.442695
      %v767 = vpow.pop %v766
      %v768 = vmul.f32 %v759, 1.442695
      %v769 = vpow.pop %v768
      %v770 = vmul.f32 %v760, 1.442695
      %v771 = vpow.pop %v770
      %v772 = vmul.f32 %v761, 1.442695
      %v773 = vpow.pop %v772
      %v774 = vmul.f32 %v762, 1.442695
      %v775 = vpow.pop %v774
      %v776 = vmul.f32 %v763, 1.442695
      %v777 = vpow.pop %v776
      %v778 = vmul.f32 %v764, 1.442695
      %v779 = vpow.pop %v778
      %v780 = vmul.f32 %v765, 1.442695
      %v781 = vpow.pop %v780
      %v782 = vadd.f32 %v767, 1.0
      %v783 = vadd.f32 %v769, 1.0
      %v784 = vadd.f32 %v771, 1.0
      %v785 = vadd.f32 %v773, 1.0
      %v786 = vadd.f32 %v775, 1.0
      %v787 = vadd.f32 %v777, 1.0
      %v788 = vadd.f32 %v779, 1.0
      %v789 = vadd.f32 %v781, 1.0
      %v790 = vrcp.pop %v782
      %v791 = vrcp.pop %v783
      %v792 = vrcp.pop %v784
      %v793 = vrcp.pop %v785
      %v794 = vrcp.pop %v786
      %v795 = vrcp.pop %v787
      %v796 = vrcp.pop %v788
      %v797 = vrcp.pop %v789
      %v798 = vmul.f32 %v740, %v790
      %v799 = vmul.f32 %v742, %v791
      %v800 = vmul.f32 %v744, %v792
      %v801 = vmul.f32 %v746, %v793
      %v802 = vmul.f32 %v750, %v794
      %v803 = vmul.f32 %v752, %v795
      %v804 = vmul.f32 %v754, %v796
      %v805 = vmul.f32 %v756, %v797
      %v806 = vpack.c.bf16 %v800, %v798
      %v807 = vpack.c.bf16 %v801, %v799
      %v808 = vpack.c.bf16 %v804, %v802
      %v809 = vpack.c.bf16 %v805, %v803
      %v810 = vld [vmem:[%s5] sm:$0xf]
      %v811 = vld [vmem:[%s5 + $0x4] sm:$0xf]
      %v812 = vld [vmem:[%s5 + $0x8] sm:$0xf]
      %v813 = vld [vmem:[%s5 + $0xc] sm:$0xf]
      %v814 = vld [vmem:[%s5 + $0x10] sm:$0xf]
      %v815 = vld [vmem:[%s5 + $0x14] sm:$0xf]
      %v816 = vld [vmem:[%s5 + $0x18] sm:$0xf]
      %v817 = vld [vmem:[%s5 + $0x1c] sm:$0xf]
      %v818 = vld [vmem:[%s5 + $0x20] sm:$0xf]
      %v819 = vld [vmem:[%s5 + $0x24] sm:$0xf]
      %v820 = vld [vmem:[%s5 + $0x28] sm:$0xf]
      %v821 = vld [vmem:[%s5 + $0x2c] sm:$0xf]
      %v822 = vld [vmem:[%s5 + $0x30] sm:$0xf]
      %v823 = vld [vmem:[%s5 + $0x34] sm:$0xf]
      %v824 = vld [vmem:[%s5 + $0x38] sm:$0xf]
      %v825 = vld [vmem:[%s5 + $0x3c] sm:$0xf]
      %v826 = vld [vmem:[%s5 + $0x40] sm:$0xf]
      %v827 = vld [vmem:[%s5 + $0x44] sm:$0xf]
      %v828 = vld [vmem:[%s5 + $0x48] sm:$0xf]
      %v829 = vld [vmem:[%s5 + $0x4c] sm:$0xf]
      %v830 = vld [vmem:[%s5 + $0x50] sm:$0xf]
      %v831 = vld [vmem:[%s5 + $0x54] sm:$0xf]
      %v832 = vld [vmem:[%s5 + $0x58] sm:$0xf]
      %v833 = vld [vmem:[%s5 + $0x5c] sm:$0xf]
      %v834 = vld [vmem:[%s5 + $0x60] sm:$0xf]
      %v835 = vld [vmem:[%s5 + $0x64] sm:$0xf]
      %v836 = vld [vmem:[%s5 + $0x68] sm:$0xf]
      %v837 = vld [vmem:[%s5 + $0x6c] sm:$0xf]
      %v838 = vld [vmem:[%s5 + $0x70] sm:$0xf]
      %v839 = vld [vmem:[%s5 + $0x74] sm:$0xf]
      %v840 = vld [vmem:[%s5 + $0x78] sm:$0xf]
      %v841 = vld [vmem:[%s5 + $0x7c] sm:$0xf]
      %v842 = vld [vmem:[%s6] sm:$0x1]
      %v844 = vlaneseq
      %v845 = vshrl.u32 %v844, 7
      %v846 = vsub.s32 0, %v845
      %v847 = vrot.slane %v842, %v846
      %v881 = vunpack.c.l.b16 %v810
      %v882 = vunpack.c.l.b16 %v811
      %v883 = vunpack.c.l.b16 %v812
      %v884 = vunpack.c.l.b16 %v813
      %v885 = vunpack.c.l.b16 %v814
      %v886 = vunpack.c.l.b16 %v815
      %v887 = vunpack.c.l.b16 %v816
      %v888 = vunpack.c.l.b16 %v817
      %v889 = vunpack.c.l.b16 %v818
      %v890 = vunpack.c.l.b16 %v819
      %v891 = vunpack.c.l.b16 %v820
      %v892 = vunpack.c.l.b16 %v821
      %v893 = vunpack.c.l.b16 %v822
      %v894 = vunpack.c.l.b16 %v823
      %v895 = vunpack.c.l.b16 %v824
      %v896 = vunpack.c.l.b16 %v825
      %v897 = vunpack.c.l.b16 %v826
      %v898 = vunpack.c.l.b16 %v827
      %v899 = vunpack.c.l.b16 %v828
      %v900 = vunpack.c.l.b16 %v829
      %v901 = vunpack.c.l.b16 %v830
      %v902 = vunpack.c.l.b16 %v831
      %v903 = vunpack.c.l.b16 %v832
      %v904 = vunpack.c.l.b16 %v833
      %v905 = vunpack.c.l.b16 %v834
      %v906 = vunpack.c.l.b16 %v835
      %v907 = vunpack.c.l.b16 %v836
      %v908 = vunpack.c.l.b16 %v837
      %v909 = vunpack.c.l.b16 %v838
      %v910 = vunpack.c.l.b16 %v839
      %v911 = vunpack.c.l.b16 %v840
      %v912 = vunpack.c.l.b16 %v841
      %v913 = vpack.c.b16 %v882, %v881
      %v914 = vpack.c.b16 %v884, %v883
      %v915 = vpack.c.b16 %v886, %v885
      %v916 = vpack.c.b16 %v888, %v887
      %v917 = vpack.c.b16 %v890, %v889
      %v918 = vpack.c.b16 %v892, %v891
      %v919 = vpack.c.b16 %v894, %v893
      %v920 = vpack.c.b16 %v896, %v895
      %v921 = vpack.c.b16 %v898, %v897
      %v922 = vpack.c.b16 %v900, %v899
      %v923 = vpack.c.b16 %v902, %v901
      %v924 = vpack.c.b16 %v904, %v903
      %v925 = vpack.c.b16 %v906, %v905
      %v926 = vpack.c.b16 %v908, %v907
      %v927 = vpack.c.b16 %v910, %v909
      %v928 = vpack.c.b16 %v912, %v911
      %945 = vmatprep.subr.bf16.mxu0 0
      %946 = vmatpush1.bf16.msra.mxu0 %v920
      %947 = vmatprep.subr.bf16.mxu0 0
      %948 = vmatpush1.bf16.msra.mxu0 %v919
      %949 = vmatprep.subr.bf16.mxu0 0
      %950 = vmatpush1.bf16.msra.mxu0 %v918
      %951 = vmatprep.subr.bf16.mxu0 0
      %952 = vmatpush1.bf16.msra.mxu0 %v917
      %953 = vmatprep.subr.bf16.mxu0 0
      %954 = vmatpush1.bf16.msra.mxu0 %v916
      %955 = vmatprep.subr.bf16.mxu0 0
      %956 = vmatpush1.bf16.msra.mxu0 %v915
      %957 = vmatprep.subr.bf16.mxu0 0
      %958 = vmatpush1.bf16.msra.mxu0 %v914
      %959 = vmatprep.subr.bf16.mxu0 0
      %960 = vmatpush1.bf16.msra.mxu0 %v913
      %961 = vmatprep.subr.bf16.mxu0 0
      %962 = vmatpush2.bf16.msra.mxu0 %v928
      %963 = vmatprep.subr.bf16.mxu0 0
      %964 = vmatpush2.bf16.msra.mxu0 %v927
      %965 = vmatprep.subr.bf16.mxu0 0
      %966 = vmatpush2.bf16.msra.mxu0 %v926
      %967 = vmatprep.subr.bf16.mxu0 0
      %968 = vmatpush2.bf16.msra.mxu0 %v925
      %969 = vmatprep.subr.bf16.mxu0 0
      %970 = vmatpush2.bf16.msra.mxu0 %v924
      %971 = vmatprep.subr.bf16.mxu0 0
      %972 = vmatpush2.bf16.msra.mxu0 %v923
      %973 = vmatprep.subr.bf16.mxu0 0
      %974 = vmatpush2.bf16.msra.mxu0 %v922
      %975 = vmatprep.subr.bf16.mxu0 0
      %976 = vmatpush2.bf16.msra.mxu0 %v921
      %977 = vmatprep.mubr.bf16.mxu0 %v807
      %978 = vmatmul.mubr.bf16.gmra.mxu0 %v806
      %v979 = vpop.f32.mrf.mxu0
      %v980 = vadd.f32 %v847, %v979
      %v981 = vpop.f32.mrf.mxu0
      %v982 = vpop.f32.mrf.mxu0
      %v983 = vadd.f32 %v847, %v982
      %v984 = vpop.f32.mrf.mxu0
      %985 = vmatprep.mubr.bf16.mxu0 %v809
      %986 = vmatmul.mubr.bf16.gmra.mxu0 %v808
      %v987 = vpop.f32.mrf.mxu0
      %v988 = vadd.f32 %v847, %v987
      %v989 = vpop.f32.mrf.mxu0
      %v990 = vpop.f32.mrf.mxu0
      %v991 = vadd.f32 %v847, %v990
      %v992 = vpop.f32.mrf.mxu0
      %993 = vdwg.mxu0
      %v994 = vsub.f32 0.0, %v980
      %v995 = vsub.f32 0.0, %v983
      %v996 = vsub.f32 0.0, %v988
      %v997 = vsub.f32 0.0, %v991
      %v998 = vmul.f32 %v994, 1.442695
      %v999 = vpow.pop %v998
      %v1000 = vmul.f32 %v995, 1.442695
      %v1001 = vpow.pop %v1000
      %v1002 = vmul.f32 %v996, 1.442695
      %v1003 = vpow.pop %v1002
      %v1004 = vmul.f32 %v997, 1.442695
      %v1005 = vpow.pop %v1004
      %v1006 = vadd.f32 %v999, 1.0
      %v1007 = vadd.f32 %v1001, 1.0
      %v1008 = vadd.f32 %v1003, 1.0
      %v1009 = vadd.f32 %v1005, 1.0
      %v1010 = vrcp.pop %v1006
      %v1011 = vrcp.pop %v1007
      %v1012 = vrcp.pop %v1008
      %v1013 = vrcp.pop %v1009
      %v1014 = vmul.f32 %v980, %v1010
      %v1015 = vmul.f32 %v983, %v1011
      %v1016 = vmul.f32 %v988, %v1012
      %v1017 = vmul.f32 %v991, %v1013
      %v1018 = vpack.c.bf16 %v1015, %v1014
      %v1019 = vpack.c.bf16 %v1017, %v1016
      %v1020 = vld [vmem:[%s7] sm:$0xf]
      %v1021 = vld [vmem:[%s7 + $0x4] sm:$0xf]
      %v1022 = vld [vmem:[%s7 + $0x8] sm:$0xf]
      %v1023 = vld [vmem:[%s7 + $0xc] sm:$0xf]
      %v1024 = vld [vmem:[%s7 + $0x10] sm:$0xf]
      %v1025 = vld [vmem:[%s7 + $0x14] sm:$0xf]
      %v1026 = vld [vmem:[%s7 + $0x18] sm:$0xf]
      %v1027 = vld [vmem:[%s7 + $0x1c] sm:$0xf]
      %v1028 = vld [vmem:[%s7 + $0x20] sm:$0xf]
      %v1029 = vld [vmem:[%s7 + $0x24] sm:$0xf]
      %v1030 = vld [vmem:[%s7 + $0x28] sm:$0xf]
      %v1031 = vld [vmem:[%s7 + $0x2c] sm:$0xf]
      %v1032 = vld [vmem:[%s7 + $0x30] sm:$0xf]
      %v1033 = vld [vmem:[%s7 + $0x34] sm:$0xf]
      %v1034 = vld [vmem:[%s7 + $0x38] sm:$0xf]
      %v1035 = vld [vmem:[%s7 + $0x3c] sm:$0xf]
      %v1036 = vld [vmem:[%s8] sm:$0x1]
      %v1038 = vlaneseq
      %v1039 = vshrl.u32 %v1038, 7
      %v1040 = vsub.s32 0, %v1039
      %v1041 = vrot.slane %v1036, %v1040
      %v1059 = vunpack.c.l.b16 %v1020
      %v1060 = vunpack.c.l.b16 %v1021
      %v1061 = vunpack.c.l.b16 %v1022
      %v1062 = vunpack.c.l.b16 %v1023
      %v1063 = vunpack.c.l.b16 %v1024
      %v1064 = vunpack.c.l.b16 %v1025
      %v1065 = vunpack.c.l.b16 %v1026
      %v1066 = vunpack.c.l.b16 %v1027
      %v1067 = vunpack.c.l.b16 %v1028
      %v1068 = vunpack.c.l.b16 %v1029
      %v1069 = vunpack.c.l.b16 %v1030
      %v1070 = vunpack.c.l.b16 %v1031
      %v1071 = vunpack.c.l.b16 %v1032
      %v1072 = vunpack.c.l.b16 %v1033
      %v1073 = vunpack.c.l.b16 %v1034
      %v1074 = vunpack.c.l.b16 %v1035
      %v1075 = vpack.c.b16 %v1060, %v1059
      %v1076 = vpack.c.b16 %v1062, %v1061
      %v1077 = vpack.c.b16 %v1064, %v1063
      %v1078 = vpack.c.b16 %v1066, %v1065
      %v1079 = vpack.c.b16 %v1068, %v1067
      %v1080 = vpack.c.b16 %v1070, %v1069
      %v1081 = vpack.c.b16 %v1072, %v1071
      %v1082 = vpack.c.b16 %v1074, %v1073
      %1091 = vmatprep.subr.bf16.mxu0 0
      %1092 = vmatpush1.bf16.msra.mxu0 %v1082
      %1093 = vmatprep.subr.bf16.mxu0 0
      %1094 = vmatpush1.bf16.msra.mxu0 %v1081
      %1095 = vmatprep.subr.bf16.mxu0 0
      %1096 = vmatpush1.bf16.msra.mxu0 %v1080
      %1097 = vmatprep.subr.bf16.mxu0 0
      %1098 = vmatpush1.bf16.msra.mxu0 %v1079
      %1099 = vmatprep.subr.bf16.mxu0 0
      %1100 = vmatpush1.bf16.msra.mxu0 %v1078
      %1101 = vmatprep.subr.bf16.mxu0 0
      %1102 = vmatpush1.bf16.msra.mxu0 %v1077
      %1103 = vmatprep.subr.bf16.mxu0 0
      %1104 = vmatpush1.bf16.msra.mxu0 %v1076
      %1105 = vmatprep.subr.bf16.mxu0 0
      %1106 = vmatpush1.bf16.msra.mxu0 %v1075
      %1107 = vmatprep.subr.bf16.mxu0 0
      %1108 = vmatpush2.bf16.msra.mxu0 0
      %1109 = vmatprep.subr.bf16.mxu0 0
      %1110 = vmatpush2.bf16.msra.mxu0 0
      %1111 = vmatprep.subr.bf16.mxu0 0
      %1112 = vmatpush2.bf16.msra.mxu0 0
      %1113 = vmatprep.subr.bf16.mxu0 0
      %1114 = vmatpush2.bf16.msra.mxu0 0
      %1115 = vmatprep.subr.bf16.mxu0 0
      %1116 = vmatpush2.bf16.msra.mxu0 0
      %1117 = vmatprep.subr.bf16.mxu0 0
      %1118 = vmatpush2.bf16.msra.mxu0 0
      %1119 = vmatprep.subr.bf16.mxu0 0
      %1120 = vmatpush2.bf16.msra.mxu0 0
      %1121 = vmatprep.subr.bf16.mxu0 0
      %1122 = vmatpush2.bf16.msra.mxu0 0
      %1123 = vmatprep.mubr.bf16.mxu0 0
      %1124 = vmatmul.mubr.bf16.gmra.mxu0 %v1018
      %v1125 = vpop.f32.mrf.mxu0
      %v1126 = vadd.f32 %v1041, %v1125
      %v1127 = vpop.f32.mrf.mxu0
      %v1128 = vpop.f32.mrf.mxu0
      %v1129 = vadd.f32 %v1041, %v1128
      %v1130 = vpop.f32.mrf.mxu0
      %1131 = vmatprep.mubr.bf16.mxu0 0
      %1132 = vmatmul.mubr.bf16.gmra.mxu0 %v1019
      %v1133 = vpop.f32.mrf.mxu0
      %v1134 = vadd.f32 %v1041, %v1133
      %v1135 = vpop.f32.mrf.mxu0
      %v1136 = vpop.f32.mrf.mxu0
      %v1137 = vadd.f32 %v1041, %v1136
      %v1138 = vpop.f32.mrf.mxu0
      %1139 = vdwg.mxu0
      %v1140 = vsub.f32 0.0, %v1126
      %v1141 = vsub.f32 0.0, %v1129
      %v1142 = vsub.f32 0.0, %v1134
      %v1143 = vsub.f32 0.0, %v1137
      %v1144 = vmul.f32 %v1140, 1.442695
      %v1145 = vpow.pop %v1144
      %v1146 = vmul.f32 %v1141, 1.442695
      %v1147 = vpow.pop %v1146
      %v1148 = vmul.f32 %v1142, 1.442695
      %v1149 = vpow.pop %v1148
      %v1150 = vmul.f32 %v1143, 1.442695
      %v1151 = vpow.pop %v1150
      %v1152 = vadd.f32 %v1145, 1.0
      %v1153 = vadd.f32 %v1147, 1.0
      %v1154 = vadd.f32 %v1149, 1.0
      %v1155 = vadd.f32 %v1151, 1.0
      %v1156 = vrcp.pop %v1152
      %v1157 = vrcp.pop %v1153
      %v1158 = vrcp.pop %v1154
      %v1159 = vrcp.pop %v1155
      %v1160 = vmul.f32 %v1126, %v1156
      %v1161 = vmul.f32 %v1129, %v1157
      %v1162 = vmul.f32 %v1134, %v1158
      %v1163 = vmul.f32 %v1137, %v1159
      %v1164 = vpack.c.bf16 %v1161, %v1160
      %v1165 = vpack.c.bf16 %v1163, %v1162
      %v1166 = vld [vmem:[%s9] sm:$0xf]
      %v1167 = vld [vmem:[%s9 + $0x4] sm:$0xf]
      %v1168 = vld [vmem:[%s9 + $0x8] sm:$0xf]
      %v1169 = vld [vmem:[%s9 + $0xc] sm:$0xf]
      %v1170 = vld [vmem:[%s9 + $0x10] sm:$0xf]
      %v1171 = vld [vmem:[%s9 + $0x14] sm:$0xf]
      %v1172 = vld [vmem:[%s9 + $0x18] sm:$0xf]
      %v1173 = vld [vmem:[%s9 + $0x1c] sm:$0xf]
      %v1174 = vld [vmem:[%s9 + $0x20] sm:$0xf]
      %v1175 = vld [vmem:[%s9 + $0x24] sm:$0xf]
      %v1176 = vld [vmem:[%s9 + $0x28] sm:$0xf]
      %v1177 = vld [vmem:[%s9 + $0x2c] sm:$0xf]
      %v1178 = vld [vmem:[%s9 + $0x30] sm:$0xf]
      %v1179 = vld [vmem:[%s9 + $0x34] sm:$0xf]
      %v1180 = vld [vmem:[%s9 + $0x38] sm:$0xf]
      %v1181 = vld [vmem:[%s9 + $0x3c] sm:$0xf]
      %v1182 = vld [vmem:[%s10] sm:$0x1]
      %v1184 = vlaneseq
      %v1185 = vshrl.u32 %v1184, 7
      %v1186 = vsub.s32 0, %v1185
      %v1187 = vrot.slane %v1182, %v1186
      %v1205 = vunpack.c.l.b16 %v1166
      %v1206 = vunpack.c.l.b16 %v1167
      %v1207 = vunpack.c.l.b16 %v1168
      %v1208 = vunpack.c.l.b16 %v1169
      %v1209 = vunpack.c.l.b16 %v1170
      %v1210 = vunpack.c.l.b16 %v1171
      %v1211 = vunpack.c.l.b16 %v1172
      %v1212 = vunpack.c.l.b16 %v1173
      %v1213 = vunpack.c.l.b16 %v1174
      %v1214 = vunpack.c.l.b16 %v1175
      %v1215 = vunpack.c.l.b16 %v1176
      %v1216 = vunpack.c.l.b16 %v1177
      %v1217 = vunpack.c.l.b16 %v1178
      %v1218 = vunpack.c.l.b16 %v1179
      %v1219 = vunpack.c.l.b16 %v1180
      %v1220 = vunpack.c.l.b16 %v1181
      %v1221 = vpack.c.b16 %v1206, %v1205
      %v1222 = vpack.c.b16 %v1208, %v1207
      %v1223 = vpack.c.b16 %v1210, %v1209
      %v1224 = vpack.c.b16 %v1212, %v1211
      %v1225 = vpack.c.b16 %v1214, %v1213
      %v1226 = vpack.c.b16 %v1216, %v1215
      %v1227 = vpack.c.b16 %v1218, %v1217
      %v1228 = vpack.c.b16 %v1220, %v1219
      %1237 = vmatprep.subr.bf16.mxu0 0
      %1238 = vmatpush1.bf16.msra.mxu0 %v1228
      %1239 = vmatprep.subr.bf16.mxu0 0
      %1240 = vmatpush1.bf16.msra.mxu0 %v1227
      %1241 = vmatprep.subr.bf16.mxu0 0
      %1242 = vmatpush1.bf16.msra.mxu0 %v1226
      %1243 = vmatprep.subr.bf16.mxu0 0
      %1244 = vmatpush1.bf16.msra.mxu0 %v1225
      %1245 = vmatprep.subr.bf16.mxu0 0
      %1246 = vmatpush1.bf16.msra.mxu0 %v1224
      %1247 = vmatprep.subr.bf16.mxu0 0
      %1248 = vmatpush1.bf16.msra.mxu0 %v1223
      %1249 = vmatprep.subr.bf16.mxu0 0
      %1250 = vmatpush1.bf16.msra.mxu0 %v1222
      %1251 = vmatprep.subr.bf16.mxu0 0
      %1252 = vmatpush1.bf16.msra.mxu0 %v1221
      %1253 = vmatprep.subr.bf16.mxu0 0
      %1254 = vmatpush2.bf16.msra.mxu0 0
      %1255 = vmatprep.subr.bf16.mxu0 0
      %1256 = vmatpush2.bf16.msra.mxu0 0
      %1257 = vmatprep.subr.bf16.mxu0 0
      %1258 = vmatpush2.bf16.msra.mxu0 0
      %1259 = vmatprep.subr.bf16.mxu0 0
      %1260 = vmatpush2.bf16.msra.mxu0 0
      %1261 = vmatprep.subr.bf16.mxu0 0
      %1262 = vmatpush2.bf16.msra.mxu0 0
      %1263 = vmatprep.subr.bf16.mxu0 0
      %1264 = vmatpush2.bf16.msra.mxu0 0
      %1265 = vmatprep.subr.bf16.mxu0 0
      %1266 = vmatpush2.bf16.msra.mxu0 0
      %1267 = vmatprep.subr.bf16.mxu0 0
      %1268 = vmatpush2.bf16.msra.mxu0 0
      %1269 = vmatprep.mubr.bf16.mxu0 0
      %1270 = vmatmul.mubr.bf16.gmra.mxu0 %v1164
      %v1271 = vpop.f32.mrf.mxu0
      %v1272 = vadd.f32 %v1187, %v1271
      %v1273 = vpop.f32.mrf.mxu0
      %v1274 = vpop.f32.mrf.mxu0
      %v1275 = vadd.f32 %v1187, %v1274
      %v1276 = vpop.f32.mrf.mxu0
      %1277 = vmatprep.mubr.bf16.mxu0 0
      %1278 = vmatmul.mubr.bf16.gmra.mxu0 %v1165
      %v1279 = vpop.f32.mrf.mxu0
      %v1280 = vadd.f32 %v1187, %v1279
      %v1281 = vpop.f32.mrf.mxu0
      %v1282 = vpop.f32.mrf.mxu0
      %v1283 = vadd.f32 %v1187, %v1282
      %v1284 = vpop.f32.mrf.mxu0
      %1285 = vdwg.mxu0
      %v1286 = vsub.f32 0.0, %v1272
      %v1287 = vsub.f32 0.0, %v1275
      %v1288 = vsub.f32 0.0, %v1280
      %v1289 = vsub.f32 0.0, %v1283
      %v1290 = vmul.f32 %v1286, 1.442695
      %v1291 = vpow.pop %v1290
      %v1292 = vmul.f32 %v1287, 1.442695
      %v1293 = vpow.pop %v1292
      %v1294 = vmul.f32 %v1288, 1.442695
      %v1295 = vpow.pop %v1294
      %v1296 = vmul.f32 %v1289, 1.442695
      %v1297 = vpow.pop %v1296
      %v1298 = vadd.f32 %v1291, 1.0
      %v1299 = vadd.f32 %v1293, 1.0
      %v1300 = vadd.f32 %v1295, 1.0
      %v1301 = vadd.f32 %v1297, 1.0
      %v1302 = vrcp.pop %v1298
      %v1303 = vrcp.pop %v1299
      %v1304 = vrcp.pop %v1300
      %v1305 = vrcp.pop %v1301
      %v1306 = vmul.f32 %v1272, %v1302
      %v1307 = vmul.f32 %v1275, %v1303
      %v1308 = vmul.f32 %v1280, %v1304
      %v1309 = vmul.f32 %v1283, %v1305
      %v1310 = vpack.c.bf16 %v1307, %v1306
      %v1311 = vpack.c.bf16 %v1309, %v1308
      %v1312 = vld [vmem:[%s11] sm:$0xf]
      %v1313 = vld [vmem:[%s11 + $0x4] sm:$0xf]
      %v1314 = vld [vmem:[%s11 + $0x8] sm:$0xf]
      %v1315 = vld [vmem:[%s11 + $0xc] sm:$0xf]
      %v1316 = vld [vmem:[%s11 + $0x10] sm:$0xf]
      %v1317 = vld [vmem:[%s11 + $0x14] sm:$0xf]
      %v1318 = vld [vmem:[%s11 + $0x18] sm:$0xf]
      %v1319 = vld [vmem:[%s11 + $0x1c] sm:$0xf]
      %v1320 = vld [vmem:[%s11 + $0x20] sm:$0xf]
      %v1321 = vld [vmem:[%s11 + $0x24] sm:$0xf]
      %v1322 = vld [vmem:[%s11 + $0x28] sm:$0xf]
      %v1323 = vld [vmem:[%s11 + $0x2c] sm:$0xf]
      %v1324 = vld [vmem:[%s11 + $0x30] sm:$0xf]
      %v1325 = vld [vmem:[%s11 + $0x34] sm:$0xf]
      %v1326 = vld [vmem:[%s11 + $0x38] sm:$0xf]
      %v1327 = vld [vmem:[%s11 + $0x3c] sm:$0xf]
      %v1328 = vld [vmem:[%s12] sm:$0x1]
      %v1330 = vlaneseq
      %v1331 = vshrl.u32 %v1330, 7
      %v1332 = vsub.s32 0, %v1331
      %v1333 = vrot.slane %v1328, %v1332
      %v1351 = vunpack.c.l.b16 %v1312
      %v1352 = vunpack.c.l.b16 %v1313
      %v1353 = vunpack.c.l.b16 %v1314
      %v1354 = vunpack.c.l.b16 %v1315
      %v1355 = vunpack.c.l.b16 %v1316
      %v1356 = vunpack.c.l.b16 %v1317
      %v1357 = vunpack.c.l.b16 %v1318
      %v1358 = vunpack.c.l.b16 %v1319
      %v1359 = vunpack.c.l.b16 %v1320
      %v1360 = vunpack.c.l.b16 %v1321
      %v1361 = vunpack.c.l.b16 %v1322
      %v1362 = vunpack.c.l.b16 %v1323
      %v1363 = vunpack.c.l.b16 %v1324
      %v1364 = vunpack.c.l.b16 %v1325
      %v1365 = vunpack.c.l.b16 %v1326
      %v1366 = vunpack.c.l.b16 %v1327
      %v1367 = vpack.c.b16 %v1352, %v1351
      %v1368 = vpack.c.b16 %v1354, %v1353
      %v1369 = vpack.c.b16 %v1356, %v1355
      %v1370 = vpack.c.b16 %v1358, %v1357
      %v1371 = vpack.c.b16 %v1360, %v1359
      %v1372 = vpack.c.b16 %v1362, %v1361
      %v1373 = vpack.c.b16 %v1364, %v1363
      %v1374 = vpack.c.b16 %v1366, %v1365
      %1383 = vmatprep.subr.bf16.mxu0 0
      %1384 = vmatpush1.bf16.msra.mxu0 %v1374
      %1385 = vmatprep.subr.bf16.mxu0 0
      %1386 = vmatpush1.bf16.msra.mxu0 %v1373
      %1387 = vmatprep.subr.bf16.mxu0 0
      %1388 = vmatpush1.bf16.msra.mxu0 %v1372
      %1389 = vmatprep.subr.bf16.mxu0 0
      %1390 = vmatpush1.bf16.msra.mxu0 %v1371
      %1391 = vmatprep.subr.bf16.mxu0 0
      %1392 = vmatpush1.bf16.msra.mxu0 %v1370
      %1393 = vmatprep.subr.bf16.mxu0 0
      %1394 = vmatpush1.bf16.msra.mxu0 %v1369
      %1395 = vmatprep.subr.bf16.mxu0 0
      %1396 = vmatpush1.bf16.msra.mxu0 %v1368
      %1397 = vmatprep.subr.bf16.mxu0 0
      %1398 = vmatpush1.bf16.msra.mxu0 %v1367
      %1399 = vmatprep.subr.bf16.mxu0 0
      %1400 = vmatpush2.bf16.msra.mxu0 0
      %1401 = vmatprep.subr.bf16.mxu0 0
      %1402 = vmatpush2.bf16.msra.mxu0 0
      %1403 = vmatprep.subr.bf16.mxu0 0
      %1404 = vmatpush2.bf16.msra.mxu0 0
      %1405 = vmatprep.subr.bf16.mxu0 0
      %1406 = vmatpush2.bf16.msra.mxu0 0
      %1407 = vmatprep.subr.bf16.mxu0 0
      %1408 = vmatpush2.bf16.msra.mxu0 0
      %1409 = vmatprep.subr.bf16.mxu0 0
      %1410 = vmatpush2.bf16.msra.mxu0 0
      %1411 = vmatprep.subr.bf16.mxu0 0
      %1412 = vmatpush2.bf16.msra.mxu0 0
      %1413 = vmatprep.subr.bf16.mxu0 0
      %1414 = vmatpush2.bf16.msra.mxu0 0
      %1415 = vmatprep.mubr.bf16.mxu0 0
      %1416 = vmatmul.mubr.bf16.gmra.mxu0 %v1310
      %v1417 = vpop.f32.mrf.mxu0
      %v1418 = vadd.f32 %v1333, %v1417
      %v1419 = vpop.f32.mrf.mxu0
      %v1420 = vpop.f32.mrf.mxu0
      %v1421 = vadd.f32 %v1333, %v1420
      %v1422 = vpop.f32.mrf.mxu0
      %1423 = vmatprep.mubr.bf16.mxu0 0
      %1424 = vmatmul.mubr.bf16.gmra.mxu0 %v1311
      %v1425 = vpop.f32.mrf.mxu0
      %v1426 = vadd.f32 %v1333, %v1425
      %v1427 = vpop.f32.mrf.mxu0
      %v1428 = vpop.f32.mrf.mxu0
      %v1429 = vadd.f32 %v1333, %v1428
      %v1430 = vpop.f32.mrf.mxu0
      %1431 = vdwg.mxu0
      %v1432 = vsub.f32 0.0, %v1418
      %v1433 = vsub.f32 0.0, %v1421
      %v1434 = vsub.f32 0.0, %v1426
      %v1435 = vsub.f32 0.0, %v1429
      %v1436 = vmul.f32 %v1432, 1.442695
      %v1437 = vpow.pop %v1436
      %v1438 = vmul.f32 %v1433, 1.442695
      %v1439 = vpow.pop %v1438
      %v1440 = vmul.f32 %v1434, 1.442695
      %v1441 = vpow.pop %v1440
      %v1442 = vmul.f32 %v1435, 1.442695
      %v1443 = vpow.pop %v1442
      %v1444 = vadd.f32 %v1437, 1.0
      %v1445 = vadd.f32 %v1439, 1.0
      %v1446 = vadd.f32 %v1441, 1.0
      %v1447 = vadd.f32 %v1443, 1.0
      %v1448 = vrcp.pop %v1444
      %v1449 = vrcp.pop %v1445
      %v1450 = vrcp.pop %v1446
      %v1451 = vrcp.pop %v1447
      %v1452 = vmul.f32 %v1418, %v1448
      %v1453 = vmul.f32 %v1421, %v1449
      %v1454 = vmul.f32 %v1426, %v1450
      %v1455 = vmul.f32 %v1429, %v1451
      %1456 = vst [vmem:[%s442] sm:$0xff] %v1452
      %1457 = vst [vmem:[%s442 + $0x8] sm:$0xff] %v1453
      %1458 = vst [vmem:[%s442 + $0x10] sm:$0xff] %v1454
      %1459 = vst [vmem:[%s442 + $0x18] sm:$0xff] %v1455
      %s1460 = smul.u32 4, %s24
      %p1461 = scmp.lt.s32.totalorder %s1460, 7
      %s1462 = scalar_select %p1461, %s1460, 7
      %s1463 = smul.addr %s1462, 8
      %s1464 = scalar_lea.vmem %s13, %s1463
      // Predicated region
      $region73: #{network_forward.1} parent=71 // pred_check
        %p1465 = pneg %p320
      $region74: #{network_forward.1} parent=71 // pred_check_branch
        %1467 = sbr.rel (%p1465) target = $region76
      $region75: #{network_forward.1} parent=71 // pred_region
        %s1468 = smul.u32 4, %s24
      $region76: #{network_forward.1} parent=71 // pred_fallthru
        _
    $region72: #{network_forward.1} parent=5 // pred_fallthru
      _
    %p1469 = scmp.le.s32.totalorder 2, %s19
    // Predicated region
    $region77: #{network_forward.1} parent=5 // pred_check
      %p1470 = pneg %p1469
    $region78: #{network_forward.1} parent=5 // pred_check_branch
      %1472 = sbr.rel (%p1470) target = $region80
    $region79: #{network_forward.1} parent=5 // pred_region
      %s1473 = ssub.s32 %s19, 2
      // Predicated region
      $region81: #{network_forward.1} parent=79 // pred_check
        %p1474 = pneg %p326
      $region82: #{network_forward.1} parent=79 // pred_check_branch
        %1476 = sbr.rel (%p1474) target = $region84
      $region83: #{network_forward.1} parent=79 // pred_region
        %s1477 = smul.u32 4, %s25
        %p1478 = scmp.lt.s32.totalorder %s1477, 7
        %s1479 = scalar_select %p1478, %s1477, 7
        %s1480 = smul.addr %s1479, 8
        %s1481 = scalar_lea.vmem %s13, %s1480
      $region84: #{network_forward.1} parent=79 // pred_fallthru
        _
    $region80: #{network_forward.1} parent=5 // pred_fallthru
      _
  $region6: #{network_forward.1} parent=0 // loop_footer
    %s23 = sadd.s32 1, %s19
  $region7: #{network_forward.1} parent=0 // loop_footer_branch
    %18 = sbr.rel target = $region3
  $region8: #{network_forward.1} parent=0 // loop_exit
    _

// kernel: network_forward.1
$region0: #{network_forward.1}
  #allocation0 [shape = 'u32[]', space=smem, size = 0x4, offset = 0x4, fixed_abs, tag = 'smem constant byte address 0x4 - core index']
  #allocation1 [shape = 'u32[144,128]{1,0:T(1,128)}', space=vmem, size = 0x12000, scoped, tag = 'internal scratch']
  %s0 = inlined_call_operand.vmem [shape: f32[64,128], index: 0, kind: input, shape index: {}]
  %s1 = inlined_call_operand.vmem [shape: bf16[128,128], index: 1, kind: input, shape index: {}]
  %s2 = inlined_call_operand.vmem [shape: f32[1,128], index: 2, kind: input, shape index: {}]
  %s3 = inlined_call_operand.vmem [shape: bf16[128,256], index: 3, kind: input, shape index: {}]
  %s4 = inlined_call_operand.vmem [shape: f32[1,256], index: 4, kind: input, shape index: {}]
  %s5 = inlined_call_operand.vmem [shape: bf16[256,128], index: 5, kind: input, shape index: {}]
  %s6 = inlined_call_operand.vmem [shape: f32[1,128], index: 6, kind: input, shape index: {}]
  %s7 = inlined_call_operand.vmem [shape: bf16[128,128], index: 7, kind: input, shape index: {}]
  %s8 = inlined_call_operand.vmem [shape: f32[1,128], index: 8, kind: input, shape index: {}]
  %s9 = inlined_call_operand.vmem [shape: bf16[128,128], index: 9, kind: input, shape index: {}]
  %s10 = inlined_call_operand.vmem [shape: f32[1,128], index: 10, kind: input, shape index: {}]
  %s11 = inlined_call_operand.vmem [shape: bf16[128,128], index: 11, kind: input, shape index: {}]
  %s12 = inlined_call_operand.vmem [shape: f32[1,128], index: 12, kind: input, shape index: {}]
  %s13 = inlined_call_operand.vmem [shape: f32[64,128], index: 13, kind: output, shape index: {}]
  %s14 = sld [smem:[#allocation0]]
  $region85: #{network_forward.1} parent=0
    _
  %s16 = ssub.s32 1, %s14
  %s17 = scalar_select 0, %s16, %s14
  loop: start=0, step=1, limit=4
  $region2: #{network_forward.1} parent=0 // loop_pre_header
    _
  $region3: #{network_forward.1} parent=0 // loop_header
    %s19 = sphi 0, %s23
    %p20 = scmp.ge.s32.totalorder %s19, 4
    %s29 = sphi 0, %s31
    %s32 = sphi 0, %s29
    %s33 = sphi 0, %s32
    %s49 = sphi 0, %s33
    %s53 = sphi 0, %s53
    %s55 = sphi 0, %s53
    %s56 = sphi 0, %s55
    %s70 = sphi 0, %s56
    %s74 = sphi 0, %s74
    %s76 = sphi 0, %s74
    %s77 = sphi 0, %s76
    %s91 = sphi 0, %s77
    %s95 = sphi 0, %s95
    %s97 = sphi 0, %s95
    %s98 = sphi 0, %s97
    %s112 = sphi 0, %s98
    %s116 = sphi 0, %s116
    %s118 = sphi 0, %s116
    %s119 = sphi 0, %s118
    %s133 = sphi 0, %s119
    %s137 = sphi 0, %s137
    %s139 = sphi 0, %s137
    %s140 = sphi 0, %s139
    %s154 = sphi 0, %s140
    %s158 = sphi 0, %s158
    %s160 = sphi 0, %s158
    %s161 = sphi 0, %s160
    %s175 = sphi 0, %s161
    %s179 = sphi 0, %s179
    %s181 = sphi 0, %s179
    %s182 = sphi 0, %s181
    %s196 = sphi 0, %s182
    %s200 = sphi 0, %s200
    %s202 = sphi 0, %s200
    %s203 = sphi 0, %s202
    %s217 = sphi 0, %s203
    %s221 = sphi 0, %s221
    %s223 = sphi 0, %s221
    %s224 = sphi 0, %s223
    %s238 = sphi 0, %s224
    %s242 = sphi 0, %s242
    %s244 = sphi 0, %s242
    %s245 = sphi 0, %s244
    %s259 = sphi 0, %s245
    %s263 = sphi 0, %s263
    %s265 = sphi 0, %s263
    %s266 = sphi 0, %s265
    %s280 = sphi 0, %s266
    %s284 = sphi 0, %s284
    %s286 = sphi 0, %s284
    %s287 = sphi 0, %s286
    %s301 = sphi 0, %s287
    %s307 = sphi 0, %s309
    %s310 = sphi 0, %s307
    %s311 = sphi 0, %s310
    %s327 = sphi 0, %s311
  $region4: #{network_forward.1} parent=0 // loop_header_branch
    %22 = sbr.rel (%p20) target = $region8
  $region5: #{network_forward.1} parent=0 // loop_body
    %s24 = ssub.s32 %s19, 1
    %s25 = ssub.s32 %s19, 2
    %s26 = sadd.s32 %s19, 1
    %s27 = ssub.s32 %s19, %s26
    %p28 = scmp.eq.s32.totalorder %s27, 0
    %s30 = sadd.s32 %s29, 1
    %s31 = scalar_select %p28, %s29, %s30
    %p34 = pneg %p28
    %p35 = scmp.eq.s32.totalorder %s19, 1
    %p36 = por %p34, %p35
    %p37 = scmp.ne.s32.totalorder %s29, %s32
    %p38 = scmp.eq.s32.totalorder %s19, 0
    %p39 = por %p37, %p38
    %p40 = scmp.ne.s32.totalorder %s29, %s32
    %p41 = scmp.eq.s32.totalorder %s24, 1
    %p42 = por %p40, %p41
    %p43 = scmp.ne.s32.totalorder %s32, %s33
    %p44 = scmp.eq.s32.totalorder %s24, 0
    %p45 = por %p43, %p44
    %p46 = scmp.ne.s32.totalorder %s32, %s33
    %p47 = scmp.eq.s32.totalorder %s25, 1
    %p48 = por %p46, %p47
    %p50 = scmp.ne.s32.totalorder %s33, %s49
    %p51 = scmp.eq.s32.totalorder %s25, 0
    %p52 = por %p50, %p51
    %s54 = sadd.s32 %s53, 1
    %p57 = scmp.eq.s32.totalorder %s19, 1
    %p58 = scmp.ne.s32.totalorder %s53, %s55
    %p59 = scmp.eq.s32.totalorder %s19, 0
    %p60 = por %p58, %p59
    %p61 = scmp.ne.s32.totalorder %s53, %s55
    %p62 = scmp.eq.s32.totalorder %s24, 1
    %p63 = por %p61, %p62
    %p64 = scmp.ne.s32.totalorder %s55, %s56
    %p65 = scmp.eq.s32.totalorder %s24, 0
    %p66 = por %p64, %p65
    %p67 = scmp.ne.s32.totalorder %s55, %s56
    %p68 = scmp.eq.s32.totalorder %s25, 1
    %p69 = por %p67, %p68
    %p71 = scmp.ne.s32.totalorder %s56, %s70
    %p72 = scmp.eq.s32.totalorder %s25, 0
    %p73 = por %p71, %p72
    %s75 = sadd.s32 %s74, 1
    %p78 = scmp.eq.s32.totalorder %s19, 1
    %p79 = scmp.ne.s32.totalorder %s74, %s76
    %p80 = scmp.eq.s32.totalorder %s19, 0
    %p81 = por %p79, %p80
    %p82 = scmp.ne.s32.totalorder %s74, %s76
    %p83 = scmp.eq.s32.totalorder %s24, 1
    %p84 = por %p82, %p83
    %p85 = scmp.ne.s32.totalorder %s76, %s77
    %p86 = scmp.eq.s32.totalorder %s24, 0
    %p87 = por %p85, %p86
    %p88 = scmp.ne.s32.totalorder %s76, %s77
    %p89 = scmp.eq.s32.totalorder %s25, 1
    %p90 = por %p88, %p89
    %p92 = scmp.ne.s32.totalorder %s77, %s91
    %p93 = scmp.eq.s32.totalorder %s25, 0
    %p94 = por %p92, %p93
    %s96 = sadd.s32 %s95, 1
    %p99 = scmp.eq.s32.totalorder %s19, 1
    %p100 = scmp.ne.s32.totalorder %s95, %s97
    %p101 = scmp.eq.s32.totalorder %s19, 0
    %p102 = por %p100, %p101
    %p103 = scmp.ne.s32.totalorder %s95, %s97
    %p104 = scmp.eq.s32.totalorder %s24, 1
    %p105 = por %p103, %p104
    %p106 = scmp.ne.s32.totalorder %s97, %s98
    %p107 = scmp.eq.s32.totalorder %s24, 0
    %p108 = por %p106, %p107
    %p109 = scmp.ne.s32.totalorder %s97, %s98
    %p110 = scmp.eq.s32.totalorder %s25, 1
    %p111 = por %p109, %p110
    %p113 = scmp.ne.s32.totalorder %s98, %s112
    %p114 = scmp.eq.s32.totalorder %s25, 0
    %p115 = por %p113, %p114
    %s117 = sadd.s32 %s116, 1
    %p120 = scmp.eq.s32.totalorder %s19, 1
    %p121 = scmp.ne.s32.totalorder %s116, %s118
    %p122 = scmp.eq.s32.totalorder %s19, 0
    %p123 = por %p121, %p122
    %p124 = scmp.ne.s32.totalorder %s116, %s118
    %p125 = scmp.eq.s32.totalorder %s24, 1
    %p126 = por %p124, %p125
    %p127 = scmp.ne.s32.totalorder %s118, %s119
    %p128 = scmp.eq.s32.totalorder %s24, 0
    %p129 = por %p127, %p128
    %p130 = scmp.ne.s32.totalorder %s118, %s119
    %p131 = scmp.eq.s32.totalorder %s25, 1
    %p132 = por %p130, %p131
    %p134 = scmp.ne.s32.totalorder %s119, %s133
    %p135 = scmp.eq.s32.totalorder %s25, 0
    %p136 = por %p134, %p135
    %s138 = sadd.s32 %s137, 1
    %p141 = scmp.eq.s32.totalorder %s19, 1
    %p142 = scmp.ne.s32.totalorder %s137, %s139
    %p143 = scmp.eq.s32.totalorder %s19, 0
    %p144 = por %p142, %p143
    %p145 = scmp.ne.s32.totalorder %s137, %s139
    %p146 = scmp.eq.s32.totalorder %s24, 1
    %p147 = por %p145, %p146
    %p148 = scmp.ne.s32.totalorder %s139, %s140
    %p149 = scmp.eq.s32.totalorder %s24, 0
    %p150 = por %p148, %p149
    %p151 = scmp.ne.s32.totalorder %s139, %s140
    %p152 = scmp.eq.s32.totalorder %s25, 1
    %p153 = por %p151, %p152
    %p155 = scmp.ne.s32.totalorder %s140, %s154
    %p156 = scmp.eq.s32.totalorder %s25, 0
    %p157 = por %p155, %p156
    %s159 = sadd.s32 %s158, 1
    %p162 = scmp.eq.s32.totalorder %s19, 1
    %p163 = scmp.ne.s32.totalorder %s158, %s160
    %p164 = scmp.eq.s32.totalorder %s19, 0
    %p165 = por %p163, %p164
    %p166 = scmp.ne.s32.totalorder %s158, %s160
    %p167 = scmp.eq.s32.totalorder %s24, 1
    %p168 = por %p166, %p167
    %p169 = scmp.ne.s32.totalorder %s160, %s161
    %p170 = scmp.eq.s32.totalorder %s24, 0
    %p171 = por %p169, %p170
    %p172 = scmp.ne.s32.totalorder %s160, %s161
    %p173 = scmp.eq.s32.totalorder %s25, 1
    %p174 = por %p172, %p173
    %p176 = scmp.ne.s32.totalorder %s161, %s175
    %p177 = scmp.eq.s32.totalorder %s25, 0
    %p178 = por %p176, %p177
    %s180 = sadd.s32 %s179, 1
    %p183 = scmp.eq.s32.totalorder %s19, 1
    %p184 = scmp.ne.s32.totalorder %s179, %s181
    %p185 = scmp.eq.s32.totalorder %s19, 0
    %p186 = por %p184, %p185
    %p187 = scmp.ne.s32.totalorder %s179, %s181
    %p188 = scmp.eq.s32.totalorder %s24, 1
    %p189 = por %p187, %p188
    %p190 = scmp.ne.s32.totalorder %s181, %s182
    %p191 = scmp.eq.s32.totalorder %s24, 0
    %p192 = por %p190, %p191
    %p193 = scmp.ne.s32.totalorder %s181, %s182
    %p194 = scmp.eq.s32.totalorder %s25, 1
    %p195 = por %p193, %p194
    %p197 = scmp.ne.s32.totalorder %s182, %s196
    %p198 = scmp.eq.s32.totalorder %s25, 0
    %p199 = por %p197, %p198
    %s201 = sadd.s32 %s200, 1
    %p204 = scmp.eq.s32.totalorder %s19, 1
    %p205 = scmp.ne.s32.totalorder %s200, %s202
    %p206 = scmp.eq.s32.totalorder %s19, 0
    %p207 = por %p205, %p206
    %p208 = scmp.ne.s32.totalorder %s200, %s202
    %p209 = scmp.eq.s32.totalorder %s24, 1
    %p210 = por %p208, %p209
    %p211 = scmp.ne.s32.totalorder %s202, %s203
    %p212 = scmp.eq.s32.totalorder %s24, 0
    %p213 = por %p211, %p212
    %p214 = scmp.ne.s32.totalorder %s202, %s203
    %p215 = scmp.eq.s32.totalorder %s25, 1
    %p216 = por %p214, %p215
    %p218 = scmp.ne.s32.totalorder %s203, %s217
    %p219 = scmp.eq.s32.totalorder %s25, 0
    %p220 = por %p218, %p219
    %s222 = sadd.s32 %s221, 1
    %p225 = scmp.eq.s32.totalorder %s19, 1
    %p226 = scmp.ne.s32.totalorder %s221, %s223
    %p227 = scmp.eq.s32.totalorder %s19, 0
    %p228 = por %p226, %p227
    %p229 = scmp.ne.s32.totalorder %s221, %s223
    %p230 = scmp.eq.s32.totalorder %s24, 1
    %p231 = por %p229, %p230
    %p232 = scmp.ne.s32.totalorder %s223, %s224
    %p233 = scmp.eq.s32.totalorder %s24, 0
    %p234 = por %p232, %p233
    %p235 = scmp.ne.s32.totalorder %s223, %s224
    %p236 = scmp.eq.s32.totalorder %s25, 1
    %p237 = por %p235, %p236
    %p239 = scmp.ne.s32.totalorder %s224, %s238
    %p240 = scmp.eq.s32.totalorder %s25, 0
    %p241 = por %p239, %p240
    %s243 = sadd.s32 %s242, 1
    %p246 = scmp.eq.s32.totalorder %s19, 1
    %p247 = scmp.ne.s32.totalorder %s242, %s244
    %p248 = scmp.eq.s32.totalorder %s19, 0
    %p249 = por %p247, %p248
    %p250 = scmp.ne.s32.totalorder %s242, %s244
    %p251 = scmp.eq.s32.totalorder %s24, 1
    %p252 = por %p250, %p251
    %p253 = scmp.ne.s32.totalorder %s244, %s245
    %p254 = scmp.eq.s32.totalorder %s24, 0
    %p255 = por %p253, %p254
    %p256 = scmp.ne.s32.totalorder %s244, %s245
    %p257 = scmp.eq.s32.totalorder %s25, 1
    %p258 = por %p256, %p257
    %p260 = scmp.ne.s32.totalorder %s245, %s259
    %p261 = scmp.eq.s32.totalorder %s25, 0
    %p262 = por %p260, %p261
    %s264 = sadd.s32 %s263, 1
    %p267 = scmp.eq.s32.totalorder %s19, 1
    %p268 = scmp.ne.s32.totalorder %s263, %s265
    %p269 = scmp.eq.s32.totalorder %s19, 0
    %p270 = por %p268, %p269
    %p271 = scmp.ne.s32.totalorder %s263, %s265
    %p272 = scmp.eq.s32.totalorder %s24, 1
    %p273 = por %p271, %p272
    %p274 = scmp.ne.s32.totalorder %s265, %s266
    %p275 = scmp.eq.s32.totalorder %s24, 0
    %p276 = por %p274, %p275
    %p277 = scmp.ne.s32.totalorder %s265, %s266
    %p278 = scmp.eq.s32.totalorder %s25, 1
    %p279 = por %p277, %p278
    %p281 = scmp.ne.s32.totalorder %s266, %s280
    %p282 = scmp.eq.s32.totalorder %s25, 0
    %p283 = por %p281, %p282
    %s285 = sadd.s32 %s284, 1
    %p288 = scmp.eq.s32.totalorder %s19, 1
    %p289 = scmp.ne.s32.totalorder %s284, %s286
    %p290 = scmp.eq.s32.totalorder %s19, 0
    %p291 = por %p289, %p290
    %p292 = scmp.ne.s32.totalorder %s284, %s286
    %p293 = scmp.eq.s32.totalorder %s24, 1
    %p294 = por %p292, %p293
    %p295 = scmp.ne.s32.totalorder %s286, %s287
    %p296 = scmp.eq.s32.totalorder %s24, 0
    %p297 = por %p295, %p296
    %p298 = scmp.ne.s32.totalorder %s286, %s287
    %p299 = scmp.eq.s32.totalorder %s25, 1
    %p300 = por %p298, %p299
    %p302 = scmp.ne.s32.totalorder %s287, %s301
    %p303 = scmp.eq.s32.totalorder %s25, 0
    %p304 = por %p302, %p303
    %s305 = ssub.s32 %s19, %s26
    %p306 = scmp.eq.s32.totalorder %s305, 0
    %s308 = sadd.s32 %s307, 1
    %s309 = scalar_select %p306, %s307, %s308
    %p312 = pneg %p306
    %p313 = scmp.eq.s32.totalorder %s19, 1
    %p314 = por %p312, %p313
    %p315 = scmp.ne.s32.totalorder %s307, %s310
    %p316 = scmp.eq.s32.totalorder %s19, 0
    %p317 = por %p315, %p316
    %p318 = scmp.ne.s32.totalorder %s307, %s310
    %p319 = scmp.eq.s32.totalorder %s24, 1
    %p320 = por %p318, %p319
    %p321 = scmp.ne.s32.totalorder %s310, %s311
    %p322 = scmp.eq.s32.totalorder %s24, 0
    %p323 = por %p321, %p322
    %p324 = scmp.ne.s32.totalorder %s310, %s311
    %p325 = scmp.eq.s32.totalorder %s25, 1
    %p326 = por %p324, %p325
    %p328 = scmp.ne.s32.totalorder %s311, %s327
    %p329 = scmp.eq.s32.totalorder %s25, 0
    %p330 = por %p328, %p329
    %p331 = scmp.le.s32.totalorder 1, %s19
    %p332 = scmp.lt.s32.totalorder %s19, 3
    %p333 = pnand %p331, %p332
    %p334 = pneg %p333
    // Predicated region
    $region9: #{network_forward.1} parent=5 // pred_check
      _
    $region10: #{network_forward.1} parent=5 // pred_check_branch
      %336 = sbr.rel (%p333) target = $region12
    $region11: #{network_forward.1} parent=5 // pred_region
      %s337 = ssub.s32 %s19, 1
      // Predicated region
      $region13: #{network_forward.1} parent=11 // pred_check
        %p338 = pneg %p66
      $region14: #{network_forward.1} parent=11 // pred_check_branch
        %340 = sbr.rel (%p338) target = $region16
      $region15: #{network_forward.1} parent=11 // pred_region
        _
      $region16: #{network_forward.1} parent=11 // pred_fallthru
        _
      // Predicated region
      $region17: #{network_forward.1} parent=11 // pred_check
        %p341 = pneg %p87
      $region18: #{network_forward.1} parent=11 // pred_check_branch
        %343 = sbr.rel (%p341) target = $region20
      $region19: #{network_forward.1} parent=11 // pred_region
        _
      $region20: #{network_forward.1} parent=11 // pred_fallthru
        _
      // Predicated region
      $region21: #{network_forward.1} parent=11 // pred_check
        %p344 = pneg %p108
      $region22: #{network_forward.1} parent=11 // pred_check_branch
        %346 = sbr.rel (%p344) target = $region24
      $region23: #{network_forward.1} parent=11 // pred_region
        _
      $region24: #{network_forward.1} parent=11 // pred_fallthru
        _
      // Predicated region
      $region25: #{network_forward.1} parent=11 // pred_check
        %p347 = pneg %p129
      $region26: #{network_forward.1} parent=11 // pred_check_branch
        %349 = sbr.rel (%p347) target = $region28
      $region27: #{network_forward.1} parent=11 // pred_region
        _
      $region28: #{network_forward.1} parent=11 // pred_fallthru
        _
      // Predicated region
      $region29: #{network_forward.1} parent=11 // pred_check
        %p350 = pneg %p150
      $region30: #{network_forward.1} parent=11 // pred_check_branch
        %352 = sbr.rel (%p350) target = $region32
      $region31: #{network_forward.1} parent=11 // pred_region
        _
      $region32: #{network_forward.1} parent=11 // pred_fallthru
        _
      // Predicated region
      $region33: #{network_forward.1} parent=11 // pred_check
        %p353 = pneg %p171
      $region34: #{network_forward.1} parent=11 // pred_check_branch
        %355 = sbr.rel (%p353) target = $region36
      $region35: #{network_forward.1} parent=11 // pred_region
        _
      $region36: #{network_forward.1} parent=11 // pred_fallthru
        _
      // Predicated region
      $region37: #{network_forward.1} parent=11 // pred_check
        %p356 = pneg %p192
      $region38: #{network_forward.1} parent=11 // pred_check_branch
        %358 = sbr.rel (%p356) target = $region40
      $region39: #{network_forward.1} parent=11 // pred_region
        _
      $region40: #{network_forward.1} parent=11 // pred_fallthru
        _
      // Predicated region
      $region41: #{network_forward.1} parent=11 // pred_check
        %p359 = pneg %p213
      $region42: #{network_forward.1} parent=11 // pred_check_branch
        %361 = sbr.rel (%p359) target = $region44
      $region43: #{network_forward.1} parent=11 // pred_region
        _
      $region44: #{network_forward.1} parent=11 // pred_fallthru
        _
      // Predicated region
      $region45: #{network_forward.1} parent=11 // pred_check
        %p362 = pneg %p234
      $region46: #{network_forward.1} parent=11 // pred_check_branch
        %364 = sbr.rel (%p362) target = $region48
      $region47: #{network_forward.1} parent=11 // pred_region
        _
      $region48: #{network_forward.1} parent=11 // pred_fallthru
        _
      // Predicated region
      $region49: #{network_forward.1} parent=11 // pred_check
        %p365 = pneg %p255
      $region50: #{network_forward.1} parent=11 // pred_check_branch
        %367 = sbr.rel (%p365) target = $region52
      $region51: #{network_forward.1} parent=11 // pred_region
        _
      $region52: #{network_forward.1} parent=11 // pred_fallthru
        _
      // Predicated region
      $region53: #{network_forward.1} parent=11 // pred_check
        %p368 = pneg %p276
      $region54: #{network_forward.1} parent=11 // pred_check_branch
        %370 = sbr.rel (%p368) target = $region56
      $region55: #{network_forward.1} parent=11 // pred_region
        _
      $region56: #{network_forward.1} parent=11 // pred_fallthru
        _
      // Predicated region
      $region57: #{network_forward.1} parent=11 // pred_check
        %p371 = pneg %p297
      $region58: #{network_forward.1} parent=11 // pred_check_branch
        %373 = sbr.rel (%p371) target = $region60
      $region59: #{network_forward.1} parent=11 // pred_region
        _
      $region60: #{network_forward.1} parent=11 // pred_fallthru
        _
    $region12: #{network_forward.1} parent=5 // pred_fallthru
      _
    %p374 = scmp.lt.s32.totalorder %s19, 2
    // Predicated region
    $region61: #{network_forward.1} parent=5 // pred_check
      %p375 = pneg %p374
    $region62: #{network_forward.1} parent=5 // pred_check_branch
      %377 = sbr.rel (%p375) target = $region64
    $region63: #{network_forward.1} parent=5 // pred_region
      // Predicated region
      $region65: #{network_forward.1} parent=63 // pred_check
        %p378 = pneg %p39
      $region66: #{network_forward.1} parent=63 // pred_check_branch
        %380 = sbr.rel (%p378) target = $region68
      $region67: #{network_forward.1} parent=63 // pred_region
        %s381 = smul.u32 4, %s19
        %p382 = scmp.lt.s32.totalorder %s381, 7
        %s383 = scalar_select %p382, %s381, 7
        %s384 = smul.addr %s383, 8
        %s385 = scalar_lea.vmem %s0, %s384
        %s386 = smul.u32 4, %s19
      $region68: #{network_forward.1} parent=63 // pred_fallthru
        _
    $region64: #{network_forward.1} parent=5 // pred_fallthru
      _
    %p387 = scmp.le.s32.totalorder 1, %s19
    %p388 = scmp.lt.s32.totalorder %s19, 3
    %p389 = pnand %p387, %p388
    %p390 = pneg %p389
    // Predicated region
    $region69: #{network_forward.1} parent=5 // pred_check
      _
    $region70: #{network_forward.1} parent=5 // pred_check_branch
      %392 = sbr.rel (%p389) target = $region72
    $region71: #{network_forward.1} parent=5 // pred_region
      %s393 = ssub.s32 %s19, 1
      %s394 = smul.u32 4, %s24
      %p395 = scmp.lt.s32.totalorder %s394, 7
      %s396 = scalar_select %p395, %s394, 7
      %s397 = smul.addr %s396, 8
      %s398 = scalar_lea.vmem %s0, %s397
      %p399 = pneg %p45
      %p400 = pneg %p42
      %p401 = pneg %p66
      %p402 = pneg %p63
      %p403 = pneg %p87
      %p404 = pneg %p84
      %p405 = pneg %p108
      %p406 = pneg %p105
      %p407 = pneg %p129
      %p408 = pneg %p126
      %p409 = pneg %p150
      %p410 = pneg %p147
      %p411 = pneg %p171
      %p412 = pneg %p168
      %p413 = pneg %p192
      %p414 = pneg %p189
      %p415 = pneg %p213
      %p416 = pneg %p210
      %p417 = pneg %p234
      %p418 = pneg %p231
      %p419 = pneg %p255
      %p420 = pneg %p252
      %p421 = pneg %p276
      %p422 = pneg %p273
      %p423 = pneg %p297
      %p424 = pneg %p294
      %p425 = pneg %p323
      %p426 = pneg %p320
      %s427 = smul.u32 4, %s24
      %p428 = scmp.lt.s32.totalorder %s427, 7
      %s429 = scalar_select %p428, %s427, 7
      %s430 = smul.addr %s429, 8
      %s431 = scalar_lea.vmem %s13, %s430
      %s432 = smul.u32 4, %s24
      %p433 = scmp.lt.s32.totalorder %s432, 7
      %s434 = scalar_select %p433, %s432, 7
      %s435 = smul.addr %s434, 8
      %s436 = scalar_lea.vmem %s0, %s435
      %s437 = smul.u32 4, %s24
      %s438 = smul.u32 4, %s24
      %p439 = scmp.lt.s32.totalorder %s438, 7
      %s440 = scalar_select %p439, %s438, 7
      %s441 = smul.addr %s440, 8
      %s442 = scalar_lea.vmem %s13, %s441
      %s443 = smul.u32 4, %s24
      %v445 = vld [vmem:[%s436] sm:$0xff]
      %v446 = vld [vmem:[%s436 + $0x8] sm:$0xff]
      %v447 = vld [vmem:[%s436 + $0x10] sm:$0xff]
      %v448 = vld [vmem:[%s436 + $0x18] sm:$0xff]
      %v449 = vpack.c.bf16 %v446, %v445
      %v450 = vpack.c.bf16 %v448, %v447
      %v451 = vld [vmem:[%s1] sm:$0xf]
      %v452 = vld [vmem:[%s1 + $0x4] sm:$0xf]
      %v453 = vld [vmem:[%s1 + $0x8] sm:$0xf]
      %v454 = vld [vmem:[%s1 + $0xc] sm:$0xf]
      %v455 = vld [vmem:[%s1 + $0x10] sm:$0xf]
      %v456 = vld [vmem:[%s1 + $0x14] sm:$0xf]
      %v457 = vld [vmem:[%s1 + $0x18] sm:$0xf]
      %v458 = vld [vmem:[%s1 + $0x1c] sm:$0xf]
      %v459 = vld [vmem:[%s1 + $0x20] sm:$0xf]
      %v460 = vld [vmem:[%s1 + $0x24] sm:$0xf]
      %v461 = vld [vmem:[%s1 + $0x28] sm:$0xf]
      %v462 = vld [vmem:[%s1 + $0x2c] sm:$0xf]
      %v463 = vld [vmem:[%s1 + $0x30] sm:$0xf]
      %v464 = vld [vmem:[%s1 + $0x34] sm:$0xf]
      %v465 = vld [vmem:[%s1 + $0x38] sm:$0xf]
      %v466 = vld [vmem:[%s1 + $0x3c] sm:$0xf]
      %v467 = vld [vmem:[%s2] sm:$0x1]
      %v469 = vlaneseq
      %v470 = vshrl.u32 %v469, 7
      %v471 = vsub.s32 0, %v470
      %v472 = vrot.slane %v467, %v471
      %v490 = vunpack.c.l.b16 %v451
      %v491 = vunpack.c.l.b16 %v452
      %v492 = vunpack.c.l.b16 %v453
      %v493 = vunpack.c.l.b16 %v454
      %v494 = vunpack.c.l.b16 %v455
      %v495 = vunpack.c.l.b16 %v456
      %v496 = vunpack.c.l.b16 %v457
      %v497 = vunpack.c.l.b16 %v458
      %v498 = vunpack.c.l.b16 %v459
      %v499 = vunpack.c.l.b16 %v460
      %v500 = vunpack.c.l.b16 %v461
      %v501 = vunpack.c.l.b16 %v462
      %v502 = vunpack.c.l.b16 %v463
      %v503 = vunpack.c.l.b16 %v464
      %v504 = vunpack.c.l.b16 %v465
      %v505 = vunpack.c.l.b16 %v466
      %v506 = vpack.c.b16 %v491, %v490
      %v507 = vpack.c.b16 %v493, %v492
      %v508 = vpack.c.b16 %v495, %v494
      %v509 = vpack.c.b16 %v497, %v496
      %v510 = vpack.c.b16 %v499, %v498
      %v511 = vpack.c.b16 %v501, %v500
      %v512 = vpack.c.b16 %v503, %v502
      %v513 = vpack.c.b16 %v505, %v504
      %522 = vmatprep.subr.bf16.mxu0 0
      %523 = vmatpush1.bf16.msra.mxu0 %v513
      %524 = vmatprep.subr.bf16.mxu0 0
      %525 = vmatpush1.bf16.msra.mxu0 %v512
      %526 = vmatprep.subr.bf16.mxu0 0
      %527 = vmatpush1.bf16.msra.mxu0 %v511
      %528 = vmatprep.subr.bf16.mxu0 0
      %529 = vmatpush1.bf16.msra.mxu0 %v510
      %530 = vmatprep.subr.bf16.mxu0 0
      %531 = vmatpush1.bf16.msra.mxu0 %v509
      %532 = vmatprep.subr.bf16.mxu0 0
      %533 = vmatpush1.bf16.msra.mxu0 %v508
      %534 = vmatprep.subr.bf16.mxu0 0
      %535 = vmatpush1.bf16.msra.mxu0 %v507
      %536 = vmatprep.subr.bf16.mxu0 0
      %537 = vmatpush1.bf16.msra.mxu0 %v506
      %538 = vmatprep.subr.bf16.mxu0 0
      %539 = vmatpush2.bf16.msra.mxu0 0
      %540 = vmatprep.subr.bf16.mxu0 0
      %541 = vmatpush2.bf16.msra.mxu0 0
      %542 = vmatprep.subr.bf16.mxu0 0
      %543 = vmatpush2.bf16.msra.mxu0 0
      %544 = vmatprep.subr.bf16.mxu0 0
      %545 = vmatpush2.bf16.msra.mxu0 0
      %546 = vmatprep.subr.bf16.mxu0 0
      %547 = vmatpush2.bf16.msra.mxu0 0
      %548 = vmatprep.subr.bf16.mxu0 0
      %549 = vmatpush2.bf16.msra.mxu0 0
      %550 = vmatprep.subr.bf16.mxu0 0
      %551 = vmatpush2.bf16.msra.mxu0 0
      %552 = vmatprep.subr.bf16.mxu0 0
      %553 = vmatpush2.bf16.msra.mxu0 0
      %554 = vmatprep.mubr.bf16.mxu0 0
      %555 = vmatmul.mubr.bf16.gmra.mxu0 %v449
      %v556 = vpop.f32.mrf.mxu0
      %v557 = vadd.f32 %v472, %v556
      %v558 = vpop.f32.mrf.mxu0
      %v559 = vpop.f32.mrf.mxu0
      %v560 = vadd.f32 %v472, %v559
      %v561 = vpop.f32.mrf.mxu0
      %562 = vmatprep.mubr.bf16.mxu0 0
      %563 = vmatmul.mubr.bf16.gmra.mxu0 %v450
      %v564 = vpop.f32.mrf.mxu0
      %v565 = vadd.f32 %v472, %v564
      %v566 = vpop.f32.mrf.mxu0
      %v567 = vpop.f32.mrf.mxu0
      %v568 = vadd.f32 %v472, %v567
      %v569 = vpop.f32.mrf.mxu0
      %570 = vdwg.mxu0
      %v571 = vsub.f32 0.0, %v557
      %v572 = vsub.f32 0.0, %v560
      %v573 = vsub.f32 0.0, %v565
      %v574 = vsub.f32 0.0, %v568
      %v575 = vmul.f32 %v571, 1.442695
      %v576 = vpow.pop %v575
      %v577 = vmul.f32 %v572, 1.442695
      %v578 = vpow.pop %v577
      %v579 = vmul.f32 %v573, 1.442695
      %v580 = vpow.pop %v579
      %v581 = vmul.f32 %v574, 1.442695
      %v582 = vpow.pop %v581
      %v583 = vadd.f32 %v576, 1.0
      %v584 = vadd.f32 %v578, 1.0
      %v585 = vadd.f32 %v580, 1.0
      %v586 = vadd.f32 %v582, 1.0
      %v587 = vrcp.pop %v583
      %v588 = vrcp.pop %v584
      %v589 = vrcp.pop %v585
      %v590 = vrcp.pop %v586
      %v591 = vmul.f32 %v557, %v587
      %v592 = vmul.f32 %v560, %v588
      %v593 = vmul.f32 %v565, %v589
      %v594 = vmul.f32 %v568, %v590
      %v595 = vpack.c.bf16 %v592, %v591
      %v596 = vpack.c.bf16 %v594, %v593
      %v597 = vld [vmem:[%s3] sm:$0xff]
      %v598 = vld [vmem:[%s3 + $0x8] sm:$0xff]
      %v599 = vld [vmem:[%s3 + $0x10] sm:$0xff]
      %v600 = vld [vmem:[%s3 + $0x18] sm:$0xff]
      %v601 = vld [vmem:[%s3 + $0x20] sm:$0xff]
      %v602 = vld [vmem:[%s3 + $0x28] sm:$0xff]
      %v603 = vld [vmem:[%s3 + $0x30] sm:$0xff]
      %v604 = vld [vmem:[%s3 + $0x38] sm:$0xff]
      %v605 = vld [vmem:[%s3 + $0x40] sm:$0xff]
      %v606 = vld [vmem:[%s3 + $0x48] sm:$0xff]
      %v607 = vld [vmem:[%s3 + $0x50] sm:$0xff]
      %v608 = vld [vmem:[%s3 + $0x58] sm:$0xff]
      %v609 = vld [vmem:[%s3 + $0x60] sm:$0xff]
      %v610 = vld [vmem:[%s3 + $0x68] sm:$0xff]
      %v611 = vld [vmem:[%s3 + $0x70] sm:$0xff]
      %v612 = vld [vmem:[%s3 + $0x78] sm:$0xff]
      %v613 = vld [vmem:[%s4] sm:$0x3]
      %v615 = vlaneseq
      %v616 = vshrl.u32 %v615, 7
      %v617 = vsub.s32 0, %v616
      %v618 = vrot.slane %v613, %v617
      %v619 = vlaneseq
      %v620 = vshrl.u32 %v619, 7
      %v621 = vsub.s32 1, %v620
      %v622 = vrot.slane %v613, %v621
      %v641 = vunpack.c.l.b16 %v597
      %v642 = vunpack.c.h.b16 %v597
      %v643 = vunpack.c.l.b16 %v598
      %v644 = vunpack.c.h.b16 %v598
      %v645 = vunpack.c.l.b16 %v599
      %v646 = vunpack.c.h.b16 %v599
      %v647 = vunpack.c.l.b16 %v600
      %v648 = vunpack.c.h.b16 %v600
      %v649 = vunpack.c.l.b16 %v601
      %v650 = vunpack.c.h.b16 %v601
      %v651 = vunpack.c.l.b16 %v602
      %v652 = vunpack.c.h.b16 %v602
      %v653 = vunpack.c.l.b16 %v603
      %v654 = vunpack.c.h.b16 %v603
      %v655 = vunpack.c.l.b16 %v604
      %v656 = vunpack.c.h.b16 %v604
      %v657 = vunpack.c.l.b16 %v605
      %v658 = vunpack.c.h.b16 %v605
      %v659 = vunpack.c.l.b16 %v606
      %v660 = vunpack.c.h.b16 %v606
      %v661 = vunpack.c.l.b16 %v607
      %v662 = vunpack.c.h.b16 %v607
      %v663 = vunpack.c.l.b16 %v608
      %v664 = vunpack.c.h.b16 %v608
      %v665 = vunpack.c.l.b16 %v609
      %v666 = vunpack.c.h.b16 %v609
      %v667 = vunpack.c.l.b16 %v610
      %v668 = vunpack.c.h.b16 %v610
      %v669 = vunpack.c.l.b16 %v611
      %v670 = vunpack.c.h.b16 %v611
      %v671 = vunpack.c.l.b16 %v612
      %v672 = vunpack.c.h.b16 %v612
      %v673 = vpack.c.b16 %v643, %v641
      %v674 = vpack.c.b16 %v644, %v642
      %v675 = vpack.c.b16 %v647, %v645
      %v676 = vpack.c.b16 %v648, %v646
      %v677 = vpack.c.b16 %v651, %v649
      %v678 = vpack.c.b16 %v652, %v650
      %v679 = vpack.c.b16 %v655, %v653
      %v680 = vpack.c.b16 %v656, %v654
      %v681 = vpack.c.b16 %v659, %v657
      %v682 = vpack.c.b16 %v660, %v658
      %v683 = vpack.c.b16 %v663, %v661
      %v684 = vpack.c.b16 %v664, %v662
      %v685 = vpack.c.b16 %v667, %v665
      %v686 = vpack.c.b16 %v668, %v666
      %v687 = vpack.c.b16 %v671, %v669
      %v688 = vpack.c.b16 %v672, %v670
      %705 = vmatprep.subr.bf16.mxu0 %v688
      %706 = vmatpush1.bf16.msra.mxu0 %v687
      %707 = vmatprep.subr.bf16.mxu0 %v686
      %708 = vmatpush1.bf16.msra.mxu0 %v685
      %709 = vmatprep.subr.bf16.mxu0 %v684
      %710 = vmatpush1.bf16.msra.mxu0 %v683
      %711 = vmatprep.subr.bf16.mxu0 %v682
      %712 = vmatpush1.bf16.msra.mxu0 %v681
      %713 = vmatprep.subr.bf16.mxu0 %v680
      %714 = vmatpush1.bf16.msra.mxu0 %v679
      %715 = vmatprep.subr.bf16.mxu0 %v678
      %716 = vmatpush1.bf16.msra.mxu0 %v677
      %717 = vmatprep.subr.bf16.mxu0 %v676
      %718 = vmatpush1.bf16.msra.mxu0 %v675
      %719 = vmatprep.subr.bf16.mxu0 %v674
      %720 = vmatpush1.bf16.msra.mxu0 %v673
      %721 = vmatprep.subr.bf16.mxu0 0
      %722 = vmatpush2.bf16.msra.mxu0 0
      %723 = vmatprep.subr.bf16.mxu0 0
      %724 = vmatpush2.bf16.msra.mxu0 0
      %725 = vmatprep.subr.bf16.mxu0 0
      %726 = vmatpush2.bf16.msra.mxu0 0
      %727 = vmatprep.subr.bf16.mxu0 0
      %728 = vmatpush2.bf16.msra.mxu0 0
      %729 = vmatprep.subr.bf16.mxu0 0
      %730 = vmatpush2.bf16.msra.mxu0 0
      %731 = vmatprep.subr.bf16.mxu0 0
      %732 = vmatpush2.bf16.msra.mxu0 0
      %733 = vmatprep.subr.bf16.mxu0 0
      %734 = vmatpush2.bf16.msra.mxu0 0
      %735 = vmatprep.subr.bf16.mxu0 0
      %736 = vmatpush2.bf16.msra.mxu0 0
      %737 = vmatprep.mubr.bf16.mxu0 0
      %738 = vmatmul.mubr.bf16.gmra.mxu0 %v595
      %v739 = vpop.f32.mrf.mxu0
      %v740 = vadd.f32 %v618, %v739
      %v741 = vpop.f32.mrf.mxu0
      %v742 = vadd.f32 %v622, %v741
      %v743 = vpop.f32.mrf.mxu0
      %v744 = vadd.f32 %v618, %v743
      %v745 = vpop.f32.mrf.mxu0
      %v746 = vadd.f32 %v622, %v745
      %747 = vmatprep.mubr.bf16.mxu0 0
      %748 = vmatmul.mubr.bf16.gmra.mxu0 %v596
      %v749 = vpop.f32.mrf.mxu0
      %v750 = vadd.f32 %v618, %v749
      %v751 = vpop.f32.mrf.mxu0
      %v752 = vadd.f32 %v622, %v751
      %v753 = vpop.f32.mrf.mxu0
      %v754 = vadd.f32 %v618, %v753
      %v755 = vpop.f32.mrf.mxu0
      %v756 = vadd.f32 %v622, %v755
      %757 = vdwg.mxu0
      %v758 = vsub.f32 0.0, %v740
      %v759 = vsub.f32 0.0, %v742
      %v760 = vsub.f32 0.0, %v744
      %v761 = vsub.f32 0.0, %v746
      %v762 = vsub.f32 0.0, %v750
      %v763 = vsub.f32 0.0, %v752
      %v764 = vsub.f32 0.0, %v754
      %v765 = vsub.f32 0.0, %v756
      %v766 = vmul.f32 %v758, 1.442695
      %v767 = vpow.pop %v766
      %v768 = vmul.f32 %v759, 1.442695
      %v769 = vpow.pop %v768
      %v770 = vmul.f32 %v760, 1.442695
      %v771 = vpow.pop %v770
      %v772 = vmul.f32 %v761, 1.442695
      %v773 = vpow.pop %v772
      %v774 = vmul.f32 %v762, 1.442695
      %v775 = vpow.pop %v774
      %v776 = vmul.f32 %v763, 1.442695
      %v777 = vpow.pop %v776
      %v778 = vmul.f32 %v764, 1.442695
      %v779 = vpow.pop %v778
      %v780 = vmul.f32 %v765, 1.442695
      %v781 = vpow.pop %v780
      %v782 = vadd.f32 %v767, 1.0
      %v783 = vadd.f32 %v769, 1.0
      %v784 = vadd.f32 %v771, 1.0
      %v785 = vadd.f32 %v773, 1.0
      %v786 = vadd.f32 %v775, 1.0
      %v787 = vadd.f32 %v777, 1.0
      %v788 = vadd.f32 %v779, 1.0
      %v789 = vadd.f32 %v781, 1.0
      %v790 = vrcp.pop %v782
      %v791 = vrcp.pop %v783
      %v792 = vrcp.pop %v784
      %v793 = vrcp.pop %v785
      %v794 = vrcp.pop %v786
      %v795 = vrcp.pop %v787
      %v796 = vrcp.pop %v788
      %v797 = vrcp.pop %v789
      %v798 = vmul.f32 %v740, %v790
      %v799 = vmul.f32 %v742, %v791
      %v800 = vmul.f32 %v744, %v792
      %v801 = vmul.f32 %v746, %v793
      %v802 = vmul.f32 %v750, %v794
      %v803 = vmul.f32 %v752, %v795
      %v804 = vmul.f32 %v754, %v796
      %v805 = vmul.f32 %v756, %v797
      %v806 = vpack.c.bf16 %v800, %v798
      %v807 = vpack.c.bf16 %v801, %v799
      %v808 = vpack.c.bf16 %v804, %v802
      %v809 = vpack.c.bf16 %v805, %v803
      %v810 = vld [vmem:[%s5] sm:$0xf]
      %v811 = vld [vmem:[%s5 + $0x4] sm:$0xf]
      %v812 = vld [vmem:[%s5 + $0x8] sm:$0xf]
      %v813 = vld [vmem:[%s5 + $0xc] sm:$0xf]
      %v814 = vld [vmem:[%s5 + $0x10] sm:$0xf]
      %v815 = vld [vmem:[%s5 + $0x14] sm:$0xf]
      %v816 = vld [vmem:[%s5 + $0x18] sm:$0xf]
      %v817 = vld [vmem:[%s5 + $0x1c] sm:$0xf]
      %v818 = vld [vmem:[%s5 + $0x20] sm:$0xf]
      %v819 = vld [vmem:[%s5 + $0x24] sm:$0xf]
      %v820 = vld [vmem:[%s5 + $0x28] sm:$0xf]
      %v821 = vld [vmem:[%s5 + $0x2c] sm:$0xf]
      %v822 = vld [vmem:[%s5 + $0x30] sm:$0xf]
      %v823 = vld [vmem:[%s5 + $0x34] sm:$0xf]
      %v824 = vld [vmem:[%s5 + $0x38] sm:$0xf]
      %v825 = vld [vmem:[%s5 + $0x3c] sm:$0xf]
      %v826 = vld [vmem:[%s5 + $0x40] sm:$0xf]
      %v827 = vld [vmem:[%s5 + $0x44] sm:$0xf]
      %v828 = vld [vmem:[%s5 + $0x48] sm:$0xf]
      %v829 = vld [vmem:[%s5 + $0x4c] sm:$0xf]
      %v830 = vld [vmem:[%s5 + $0x50] sm:$0xf]
      %v831 = vld [vmem:[%s5 + $0x54] sm:$0xf]
      %v832 = vld [vmem:[%s5 + $0x58] sm:$0xf]
      %v833 = vld [vmem:[%s5 + $0x5c] sm:$0xf]
      %v834 = vld [vmem:[%s5 + $0x60] sm:$0xf]
      %v835 = vld [vmem:[%s5 + $0x64] sm:$0xf]
      %v836 = vld [vmem:[%s5 + $0x68] sm:$0xf]
      %v837 = vld [vmem:[%s5 + $0x6c] sm:$0xf]
      %v838 = vld [vmem:[%s5 + $0x70] sm:$0xf]
      %v839 = vld [vmem:[%s5 + $0x74] sm:$0xf]
      %v840 = vld [vmem:[%s5 + $0x78] sm:$0xf]
      %v841 = vld [vmem:[%s5 + $0x7c] sm:$0xf]
      %v842 = vld [vmem:[%s6] sm:$0x1]
      %v844 = vlaneseq
      %v845 = vshrl.u32 %v844, 7
      %v846 = vsub.s32 0, %v845
      %v847 = vrot.slane %v842, %v846
      %v881 = vunpack.c.l.b16 %v810
      %v882 = vunpack.c.l.b16 %v811
      %v883 = vunpack.c.l.b16 %v812
      %v884 = vunpack.c.l.b16 %v813
      %v885 = vunpack.c.l.b16 %v814
      %v886 = vunpack.c.l.b16 %v815
      %v887 = vunpack.c.l.b16 %v816
      %v888 = vunpack.c.l.b16 %v817
      %v889 = vunpack.c.l.b16 %v818
      %v890 = vunpack.c.l.b16 %v819
      %v891 = vunpack.c.l.b16 %v820
      %v892 = vunpack.c.l.b16 %v821
      %v893 = vunpack.c.l.b16 %v822
      %v894 = vunpack.c.l.b16 %v823
      %v895 = vunpack.c.l.b16 %v824
      %v896 = vunpack.c.l.b16 %v825
      %v897 = vunpack.c.l.b16 %v826
      %v898 = vunpack.c.l.b16 %v827
      %v899 = vunpack.c.l.b16 %v828
      %v900 = vunpack.c.l.b16 %v829
      %v901 = vunpack.c.l.b16 %v830
      %v902 = vunpack.c.l.b16 %v831
      %v903 = vunpack.c.l.b16 %v832
      %v904 = vunpack.c.l.b16 %v833
      %v905 = vunpack.c.l.b16 %v834
      %v906 = vunpack.c.l.b16 %v835
      %v907 = vunpack.c.l.b16 %v836
      %v908 = vunpack.c.l.b16 %v837
      %v909 = vunpack.c.l.b16 %v838
      %v910 = vunpack.c.l.b16 %v839
      %v911 = vunpack.c.l.b16 %v840
      %v912 = vunpack.c.l.b16 %v841
      %v913 = vpack.c.b16 %v882, %v881
      %v914 = vpack.c.b16 %v884, %v883
      %v915 = vpack.c.b16 %v886, %v885
      %v916 = vpack.c.b16 %v888, %v887
      %v917 = vpack.c.b16 %v890, %v889
      %v918 = vpack.c.b16 %v892, %v891
      %v919 = vpack.c.b16 %v894, %v893
      %v920 = vpack.c.b16 %v896, %v895
      %v921 = vpack.c.b16 %v898, %v897
      %v922 = vpack.c.b16 %v900, %v899
      %v923 = vpack.c.b16 %v902, %v901
      %v924 = vpack.c.b16 %v904, %v903
      %v925 = vpack.c.b16 %v906, %v905
      %v926 = vpack.c.b16 %v908, %v907
      %v927 = vpack.c.b16 %v910, %v909
      %v928 = vpack.c.b16 %v912, %v911
      %945 = vmatprep.subr.bf16.mxu0 0
      %946 = vmatpush1.bf16.msra.mxu0 %v920
      %947 = vmatprep.subr.bf16.mxu0 0
      %948 = vmatpush1.bf16.msra.mxu0 %v919
      %949 = vmatprep.subr.bf16.mxu0 0
      %950 = vmatpush1.bf16.msra.mxu0 %v918
      %951 = vmatprep.subr.bf16.mxu0 0
      %952 = vmatpush1.bf16.msra.mxu0 %v917
      %953 = vmatprep.subr.bf16.mxu0 0
      %954 = vmatpush1.bf16.msra.mxu0 %v916
      %955 = vmatprep.subr.bf16.mxu0 0
      %956 = vmatpush1.bf16.msra.mxu0 %v915
      %957 = vmatprep.subr.bf16.mxu0 0
      %958 = vmatpush1.bf16.msra.mxu0 %v914
      %959 = vmatprep.subr.bf16.mxu0 0
      %960 = vmatpush1.bf16.msra.mxu0 %v913
      %961 = vmatprep.subr.bf16.mxu0 0
      %962 = vmatpush2.bf16.msra.mxu0 %v928
      %963 = vmatprep.subr.bf16.mxu0 0
      %964 = vmatpush2.bf16.msra.mxu0 %v927
      %965 = vmatprep.subr.bf16.mxu0 0
      %966 = vmatpush2.bf16.msra.mxu0 %v926
      %967 = vmatprep.subr.bf16.mxu0 0
      %968 = vmatpush2.bf16.msra.mxu0 %v925
      %969 = vmatprep.subr.bf16.mxu0 0
      %970 = vmatpush2.bf16.msra.mxu0 %v924
      %971 = vmatprep.subr.bf16.mxu0 0
      %972 = vmatpush2.bf16.msra.mxu0 %v923
      %973 = vmatprep.subr.bf16.mxu0 0
      %974 = vmatpush2.bf16.msra.mxu0 %v922
      %975 = vmatprep.subr.bf16.mxu0 0
      %976 = vmatpush2.bf16.msra.mxu0 %v921
      %977 = vmatprep.mubr.bf16.mxu0 %v807
      %978 = vmatmul.mubr.bf16.gmra.mxu0 %v806
      %v979 = vpop.f32.mrf.mxu0
      %v980 = vadd.f32 %v847, %v979
      %v981 = vpop.f32.mrf.mxu0
      %v982 = vpop.f32.mrf.mxu0
      %v983 = vadd.f32 %v847, %v982
      %v984 = vpop.f32.mrf.mxu0
      %985 = vmatprep.mubr.bf16.mxu0 %v809
      %986 = vmatmul.mubr.bf16.gmra.mxu0 %v808
      %v987 = vpop.f32.mrf.mxu0
      %v988 = vadd.f32 %v847, %v987
      %v989 = vpop.f32.mrf.mxu0
      %v990 = vpop.f32.mrf.mxu0
      %v991 = vadd.f32 %v847, %v990
      %v992 = vpop.f32.mrf.mxu0
      %993 = vdwg.mxu0
      %v994 = vsub.f32 0.0, %v980
      %v995 = vsub.f32 0.0, %v983
      %v996 = vsub.f32 0.0, %v988
      %v997 = vsub.f32 0.0, %v991
      %v998 = vmul.f32 %v994, 1.442695
      %v999 = vpow.pop %v998
      %v1000 = vmul.f32 %v995, 1.442695
      %v1001 = vpow.pop %v1000
      %v1002 = vmul.f32 %v996, 1.442695
      %v1003 = vpow.pop %v1002
      %v1004 = vmul.f32 %v997, 1.442695
      %v1005 = vpow.pop %v1004
      %v1006 = vadd.f32 %v999, 1.0
      %v1007 = vadd.f32 %v1001, 1.0
      %v1008 = vadd.f32 %v1003, 1.0
      %v1009 = vadd.f32 %v1005, 1.0
      %v1010 = vrcp.pop %v1006
      %v1011 = vrcp.pop %v1007
      %v1012 = vrcp.pop %v1008
      %v1013 = vrcp.pop %v1009
      %v1014 = vmul.f32 %v980, %v1010
      %v1015 = vmul.f32 %v983, %v1011
      %v1016 = vmul.f32 %v988, %v1012
      %v1017 = vmul.f32 %v991, %v1013
      %v1018 = vpack.c.bf16 %v1015, %v1014
      %v1019 = vpack.c.bf16 %v1017, %v1016
      %v1020 = vld [vmem:[%s7] sm:$0xf]
      %v1021 = vld [vmem:[%s7 + $0x4] sm:$0xf]
      %v1022 = vld [vmem:[%s7 + $0x8] sm:$0xf]
      %v1023 = vld [vmem:[%s7 + $0xc] sm:$0xf]
      %v1024 = vld [vmem:[%s7 + $0x10] sm:$0xf]
      %v1025 = vld [vmem:[%s7 + $0x14] sm:$0xf]
      %v1026 = vld [vmem:[%s7 + $0x18] sm:$0xf]
      %v1027 = vld [vmem:[%s7 + $0x1c] sm:$0xf]
      %v1028 = vld [vmem:[%s7 + $0x20] sm:$0xf]
      %v1029 = vld [vmem:[%s7 + $0x24] sm:$0xf]
      %v1030 = vld [vmem:[%s7 + $0x28] sm:$0xf]
      %v1031 = vld [vmem:[%s7 + $0x2c] sm:$0xf]
      %v1032 = vld [vmem:[%s7 + $0x30] sm:$0xf]
      %v1033 = vld [vmem:[%s7 + $0x34] sm:$0xf]
      %v1034 = vld [vmem:[%s7 + $0x38] sm:$0xf]
      %v1035 = vld [vmem:[%s7 + $0x3c] sm:$0xf]
      %v1036 = vld [vmem:[%s8] sm:$0x1]
      %v1038 = vlaneseq
      %v1039 = vshrl.u32 %v1038, 7
      %v1040 = vsub.s32 0, %v1039
      %v1041 = vrot.slane %v1036, %v1040
      %v1059 = vunpack.c.l.b16 %v1020
      %v1060 = vunpack.c.l.b16 %v1021
      %v1061 = vunpack.c.l.b16 %v1022
      %v1062 = vunpack.c.l.b16 %v1023
      %v1063 = vunpack.c.l.b16 %v1024
      %v1064 = vunpack.c.l.b16 %v1025
      %v1065 = vunpack.c.l.b16 %v1026
      %v1066 = vunpack.c.l.b16 %v1027
      %v1067 = vunpack.c.l.b16 %v1028
      %v1068 = vunpack.c.l.b16 %v1029
      %v1069 = vunpack.c.l.b16 %v1030
      %v1070 = vunpack.c.l.b16 %v1031
      %v1071 = vunpack.c.l.b16 %v1032
      %v1072 = vunpack.c.l.b16 %v1033
      %v1073 = vunpack.c.l.b16 %v1034
      %v1074 = vunpack.c.l.b16 %v1035
      %v1075 = vpack.c.b16 %v1060, %v1059
      %v1076 = vpack.c.b16 %v1062, %v1061
      %v1077 = vpack.c.b16 %v1064, %v1063
      %v1078 = vpack.c.b16 %v1066, %v1065
      %v1079 = vpack.c.b16 %v1068, %v1067
      %v1080 = vpack.c.b16 %v1070, %v1069
      %v1081 = vpack.c.b16 %v1072, %v1071
      %v1082 = vpack.c.b16 %v1074, %v1073
      %1091 = vmatprep.subr.bf16.mxu0 0
      %1092 = vmatpush1.bf16.msra.mxu0 %v1082
      %1093 = vmatprep.subr.bf16.mxu0 0
      %1094 = vmatpush1.bf16.msra.mxu0 %v1081
      %1095 = vmatprep.subr.bf16.mxu0 0
      %1096 = vmatpush1.bf16.msra.mxu0 %v1080
      %1097 = vmatprep.subr.bf16.mxu0 0
      %1098 = vmatpush1.bf16.msra.mxu0 %v1079
      %1099 = vmatprep.subr.bf16.mxu0 0
      %1100 = vmatpush1.bf16.msra.mxu0 %v1078
      %1101 = vmatprep.subr.bf16.mxu0 0
      %1102 = vmatpush1.bf16.msra.mxu0 %v1077
      %1103 = vmatprep.subr.bf16.mxu0 0
      %1104 = vmatpush1.bf16.msra.mxu0 %v1076
      %1105 = vmatprep.subr.bf16.mxu0 0
      %1106 = vmatpush1.bf16.msra.mxu0 %v1075
      %1107 = vmatprep.subr.bf16.mxu0 0
      %1108 = vmatpush2.bf16.msra.mxu0 0
      %1109 = vmatprep.subr.bf16.mxu0 0
      %1110 = vmatpush2.bf16.msra.mxu0 0
      %1111 = vmatprep.subr.bf16.mxu0 0
      %1112 = vmatpush2.bf16.msra.mxu0 0
      %1113 = vmatprep.subr.bf16.mxu0 0
      %1114 = vmatpush2.bf16.msra.mxu0 0
      %1115 = vmatprep.subr.bf16.mxu0 0
      %1116 = vmatpush2.bf16.msra.mxu0 0
      %1117 = vmatprep.subr.bf16.mxu0 0
      %1118 = vmatpush2.bf16.msra.mxu0 0
      %1119 = vmatprep.subr.bf16.mxu0 0
      %1120 = vmatpush2.bf16.msra.mxu0 0
      %1121 = vmatprep.subr.bf16.mxu0 0
      %1122 = vmatpush2.bf16.msra.mxu0 0
      %1123 = vmatprep.mubr.bf16.mxu0 0
      %1124 = vmatmul.mubr.bf16.gmra.mxu0 %v1018
      %v1125 = vpop.f32.mrf.mxu0
      %v1126 = vadd.f32 %v1041, %v1125
      %v1127 = vpop.f32.mrf.mxu0
      %v1128 = vpop.f32.mrf.mxu0
      %v1129 = vadd.f32 %v1041, %v1128
      %v1130 = vpop.f32.mrf.mxu0
      %1131 = vmatprep.mubr.bf16.mxu0 0
      %1132 = vmatmul.mubr.bf16.gmra.mxu0 %v1019
      %v1133 = vpop.f32.mrf.mxu0
      %v1134 = vadd.f32 %v1041, %v1133
      %v1135 = vpop.f32.mrf.mxu0
      %v1136 = vpop.f32.mrf.mxu0
      %v1137 = vadd.f32 %v1041, %v1136
      %v1138 = vpop.f32.mrf.mxu0
      %1139 = vdwg.mxu0
      %v1140 = vsub.f32 0.0, %v1126
      %v1141 = vsub.f32 0.0, %v1129
      %v1142 = vsub.f32 0.0, %v1134
      %v1143 = vsub.f32 0.0, %v1137
      %v1144 = vmul.f32 %v1140, 1.442695
      %v1145 = vpow.pop %v1144
      %v1146 = vmul.f32 %v1141, 1.442695
      %v1147 = vpow.pop %v1146
      %v1148 = vmul.f32 %v1142, 1.442695
      %v1149 = vpow.pop %v1148
      %v1150 = vmul.f32 %v1143, 1.442695
      %v1151 = vpow.pop %v1150
      %v1152 = vadd.f32 %v1145, 1.0
      %v1153 = vadd.f32 %v1147, 1.0
      %v1154 = vadd.f32 %v1149, 1.0
      %v1155 = vadd.f32 %v1151, 1.0
      %v1156 = vrcp.pop %v1152
      %v1157 = vrcp.pop %v1153
      %v1158 = vrcp.pop %v1154
      %v1159 = vrcp.pop %v1155
      %v1160 = vmul.f32 %v1126, %v1156
      %v1161 = vmul.f32 %v1129, %v1157
      %v1162 = vmul.f32 %v1134, %v1158
      %v1163 = vmul.f32 %v1137, %v1159
      %v1164 = vpack.c.bf16 %v1161, %v1160
      %v1165 = vpack.c.bf16 %v1163, %v1162
      %v1166 = vld [vmem:[%s9] sm:$0xf]
      %v1167 = vld [vmem:[%s9 + $0x4] sm:$0xf]
      %v1168 = vld [vmem:[%s9 + $0x8] sm:$0xf]
      %v1169 = vld [vmem:[%s9 + $0xc] sm:$0xf]
      %v1170 = vld [vmem:[%s9 + $0x10] sm:$0xf]
      %v1171 = vld [vmem:[%s9 + $0x14] sm:$0xf]
      %v1172 = vld [vmem:[%s9 + $0x18] sm:$0xf]
      %v1173 = vld [vmem:[%s9 + $0x1c] sm:$0xf]
      %v1174 = vld [vmem:[%s9 + $0x20] sm:$0xf]
      %v1175 = vld [vmem:[%s9 + $0x24] sm:$0xf]
      %v1176 = vld [vmem:[%s9 + $0x28] sm:$0xf]
      %v1177 = vld [vmem:[%s9 + $0x2c] sm:$0xf]
      %v1178 = vld [vmem:[%s9 + $0x30] sm:$0xf]
      %v1179 = vld [vmem:[%s9 + $0x34] sm:$0xf]
      %v1180 = vld [vmem:[%s9 + $0x38] sm:$0xf]
      %v1181 = vld [vmem:[%s9 + $0x3c] sm:$0xf]
      %v1182 = vld [vmem:[%s10] sm:$0x1]
      %v1184 = vlaneseq
      %v1185 = vshrl.u32 %v1184, 7
      %v1186 = vsub.s32 0, %v1185
      %v1187 = vrot.slane %v1182, %v1186
      %v1205 = vunpack.c.l.b16 %v1166
      %v1206 = vunpack.c.l.b16 %v1167
      %v1207 = vunpack.c.l.b16 %v1168
      %v1208 = vunpack.c.l.b16 %v1169
      %v1209 = vunpack.c.l.b16 %v1170
      %v1210 = vunpack.c.l.b16 %v1171
      %v1211 = vunpack.c.l.b16 %v1172
      %v1212 = vunpack.c.l.b16 %v1173
      %v1213 = vunpack.c.l.b16 %v1174
      %v1214 = vunpack.c.l.b16 %v1175
      %v1215 = vunpack.c.l.b16 %v1176
      %v1216 = vunpack.c.l.b16 %v1177
      %v1217 = vunpack.c.l.b16 %v1178
      %v1218 = vunpack.c.l.b16 %v1179
      %v1219 = vunpack.c.l.b16 %v1180
      %v1220 = vunpack.c.l.b16 %v1181
      %v1221 = vpack.c.b16 %v1206, %v1205
      %v1222 = vpack.c.b16 %v1208, %v1207
      %v1223 = vpack.c.b16 %v1210, %v1209
      %v1224 = vpack.c.b16 %v1212, %v1211
      %v1225 = vpack.c.b16 %v1214, %v1213
      %v1226 = vpack.c.b16 %v1216, %v1215
      %v1227 = vpack.c.b16 %v1218, %v1217
      %v1228 = vpack.c.b16 %v1220, %v1219
      %1237 = vmatprep.subr.bf16.mxu0 0
      %1238 = vmatpush1.bf16.msra.mxu0 %v1228
      %1239 = vmatprep.subr.bf16.mxu0 0
      %1240 = vmatpush1.bf16.msra.mxu0 %v1227
      %1241 = vmatprep.subr.bf16.mxu0 0
      %1242 = vmatpush1.bf16.msra.mxu0 %v1226
      %1243 = vmatprep.subr.bf16.mxu0 0
      %1244 = vmatpush1.bf16.msra.mxu0 %v1225
      %1245 = vmatprep.subr.bf16.mxu0 0
      %1246 = vmatpush1.bf16.msra.mxu0 %v1224
      %1247 = vmatprep.subr.bf16.mxu0 0
      %1248 = vmatpush1.bf16.msra.mxu0 %v1223
      %1249 = vmatprep.subr.bf16.mxu0 0
      %1250 = vmatpush1.bf16.msra.mxu0 %v1222
      %1251 = vmatprep.subr.bf16.mxu0 0
      %1252 = vmatpush1.bf16.msra.mxu0 %v1221
      %1253 = vmatprep.subr.bf16.mxu0 0
      %1254 = vmatpush2.bf16.msra.mxu0 0
      %1255 = vmatprep.subr.bf16.mxu0 0
      %1256 = vmatpush2.bf16.msra.mxu0 0
      %1257 = vmatprep.subr.bf16.mxu0 0
      %1258 = vmatpush2.bf16.msra.mxu0 0
      %1259 = vmatprep.subr.bf16.mxu0 0
      %1260 = vmatpush2.bf16.msra.mxu0 0
      %1261 = vmatprep.subr.bf16.mxu0 0
      %1262 = vmatpush2.bf16.msra.mxu0 0
      %1263 = vmatprep.subr.bf16.mxu0 0
      %1264 = vmatpush2.bf16.msra.mxu0 0
      %1265 = vmatprep.subr.bf16.mxu0 0
      %1266 = vmatpush2.bf16.msra.mxu0 0
      %1267 = vmatprep.subr.bf16.mxu0 0
      %1268 = vmatpush2.bf16.msra.mxu0 0
      %1269 = vmatprep.mubr.bf16.mxu0 0
      %1270 = vmatmul.mubr.bf16.gmra.mxu0 %v1164
      %v1271 = vpop.f32.mrf.mxu0
      %v1272 = vadd.f32 %v1187, %v1271
      %v1273 = vpop.f32.mrf.mxu0
      %v1274 = vpop.f32.mrf.mxu0
      %v1275 = vadd.f32 %v1187, %v1274
      %v1276 = vpop.f32.mrf.mxu0
      %1277 = vmatprep.mubr.bf16.mxu0 0
      %1278 = vmatmul.mubr.bf16.gmra.mxu0 %v1165
      %v1279 = vpop.f32.mrf.mxu0
      %v1280 = vadd.f32 %v1187, %v1279
      %v1281 = vpop.f32.mrf.mxu0
      %v1282 = vpop.f32.mrf.mxu0
      %v1283 = vadd.f32 %v1187, %v1282
      %v1284 = vpop.f32.mrf.mxu0
      %1285 = vdwg.mxu0
      %v1286 = vsub.f32 0.0, %v1272
      %v1287 = vsub.f32 0.0, %v1275
      %v1288 = vsub.f32 0.0, %v1280
      %v1289 = vsub.f32 0.0, %v1283
      %v1290 = vmul.f32 %v1286, 1.442695
      %v1291 = vpow.pop %v1290
      %v1292 = vmul.f32 %v1287, 1.442695
      %v1293 = vpow.pop %v1292
      %v1294 = vmul.f32 %v1288, 1.442695
      %v1295 = vpow.pop %v1294
      %v1296 = vmul.f32 %v1289, 1.442695
      %v1297 = vpow.pop %v1296
      %v1298 = vadd.f32 %v1291, 1.0
      %v1299 = vadd.f32 %v1293, 1.0
      %v1300 = vadd.f32 %v1295, 1.0
      %v1301 = vadd.f32 %v1297, 1.0
      %v1302 = vrcp.pop %v1298
      %v1303 = vrcp.pop %v1299
      %v1304 = vrcp.pop %v1300
      %v1305 = vrcp.pop %v1301
      %v1306 = vmul.f32 %v1272, %v1302
      %v1307 = vmul.f32 %v1275, %v1303
      %v1308 = vmul.f32 %v1280, %v1304
      %v1309 = vmul.f32 %v1283, %v1305
      %v1310 = vpack.c.bf16 %v1307, %v1306
      %v1311 = vpack.c.bf16 %v1309, %v1308
      %v1312 = vld [vmem:[%s11] sm:$0xf]
      %v1313 = vld [vmem:[%s11 + $0x4] sm:$0xf]
      %v1314 = vld [vmem:[%s11 + $0x8] sm:$0xf]
      %v1315 = vld [vmem:[%s11 + $0xc] sm:$0xf]
      %v1316 = vld [vmem:[%s11 + $0x10] sm:$0xf]
      %v1317 = vld [vmem:[%s11 + $0x14] sm:$0xf]
      %v1318 = vld [vmem:[%s11 + $0x18] sm:$0xf]
      %v1319 = vld [vmem:[%s11 + $0x1c] sm:$0xf]
      %v1320 = vld [vmem:[%s11 + $0x20] sm:$0xf]
      %v1321 = vld [vmem:[%s11 + $0x24] sm:$0xf]
      %v1322 = vld [vmem:[%s11 + $0x28] sm:$0xf]
      %v1323 = vld [vmem:[%s11 + $0x2c] sm:$0xf]
      %v1324 = vld [vmem:[%s11 + $0x30] sm:$0xf]
      %v1325 = vld [vmem:[%s11 + $0x34] sm:$0xf]
      %v1326 = vld [vmem:[%s11 + $0x38] sm:$0xf]
      %v1327 = vld [vmem:[%s11 + $0x3c] sm:$0xf]
      %v1328 = vld [vmem:[%s12] sm:$0x1]
      %v1330 = vlaneseq
      %v1331 = vshrl.u32 %v1330, 7
      %v1332 = vsub.s32 0, %v1331
      %v1333 = vrot.slane %v1328, %v1332
      %v1351 = vunpack.c.l.b16 %v1312
      %v1352 = vunpack.c.l.b16 %v1313
      %v1353 = vunpack.c.l.b16 %v1314
      %v1354 = vunpack.c.l.b16 %v1315
      %v1355 = vunpack.c.l.b16 %v1316
      %v1356 = vunpack.c.l.b16 %v1317
      %v1357 = vunpack.c.l.b16 %v1318
      %v1358 = vunpack.c.l.b16 %v1319
      %v1359 = vunpack.c.l.b16 %v1320
      %v1360 = vunpack.c.l.b16 %v1321
      %v1361 = vunpack.c.l.b16 %v1322
      %v1362 = vunpack.c.l.b16 %v1323
      %v1363 = vunpack.c.l.b16 %v1324
      %v1364 = vunpack.c.l.b16 %v1325
      %v1365 = vunpack.c.l.b16 %v1326
      %v1366 = vunpack.c.l.b16 %v1327
      %v1367 = vpack.c.b16 %v1352, %v1351
      %v1368 = vpack.c.b16 %v1354, %v1353
      %v1369 = vpack.c.b16 %v1356, %v1355
      %v1370 = vpack.c.b16 %v1358, %v1357
      %v1371 = vpack.c.b16 %v1360, %v1359
      %v1372 = vpack.c.b16 %v1362, %v1361
      %v1373 = vpack.c.b16 %v1364, %v1363
      %v1374 = vpack.c.b16 %v1366, %v1365
      %1383 = vmatprep.subr.bf16.mxu0 0
      %1384 = vmatpush1.bf16.msra.mxu0 %v1374
      %1385 = vmatprep.subr.bf16.mxu0 0
      %1386 = vmatpush1.bf16.msra.mxu0 %v1373
      %1387 = vmatprep.subr.bf16.mxu0 0
      %1388 = vmatpush1.bf16.msra.mxu0 %v1372
      %1389 = vmatprep.subr.bf16.mxu0 0
      %1390 = vmatpush1.bf16.msra.mxu0 %v1371
      %1391 = vmatprep.subr.bf16.mxu0 0
      %1392 = vmatpush1.bf16.msra.mxu0 %v1370
      %1393 = vmatprep.subr.bf16.mxu0 0
      %1394 = vmatpush1.bf16.msra.mxu0 %v1369
      %1395 = vmatprep.subr.bf16.mxu0 0
      %1396 = vmatpush1.bf16.msra.mxu0 %v1368
      %1397 = vmatprep.subr.bf16.mxu0 0
      %1398 = vmatpush1.bf16.msra.mxu0 %v1367
      %1399 = vmatprep.subr.bf16.mxu0 0
      %1400 = vmatpush2.bf16.msra.mxu0 0
      %1401 = vmatprep.subr.bf16.mxu0 0
      %1402 = vmatpush2.bf16.msra.mxu0 0
      %1403 = vmatprep.subr.bf16.mxu0 0
      %1404 = vmatpush2.bf16.msra.mxu0 0
      %1405 = vmatprep.subr.bf16.mxu0 0
      %1406 = vmatpush2.bf16.msra.mxu0 0
      %1407 = vmatprep.subr.bf16.mxu0 0
      %1408 = vmatpush2.bf16.msra.mxu0 0
      %1409 = vmatprep.subr.bf16.mxu0 0
      %1410 = vmatpush2.bf16.msra.mxu0 0
      %1411 = vmatprep.subr.bf16.mxu0 0
      %1412 = vmatpush2.bf16.msra.mxu0 0
      %1413 = vmatprep.subr.bf16.mxu0 0
      %1414 = vmatpush2.bf16.msra.mxu0 0
      %1415 = vmatprep.mubr.bf16.mxu0 0
      %1416 = vmatmul.mubr.bf16.gmra.mxu0 %v1310
      %v1417 = vpop.f32.mrf.mxu0
      %v1418 = vadd.f32 %v1333, %v1417
      %v1419 = vpop.f32.mrf.mxu0
      %v1420 = vpop.f32.mrf.mxu0
      %v1421 = vadd.f32 %v1333, %v1420
      %v1422 = vpop.f32.mrf.mxu0
      %1423 = vmatprep.mubr.bf16.mxu0 0
      %1424 = vmatmul.mubr.bf16.gmra.mxu0 %v1311
      %v1425 = vpop.f32.mrf.mxu0
      %v1426 = vadd.f32 %v1333, %v1425
      %v1427 = vpop.f32.mrf.mxu0
      %v1428 = vpop.f32.mrf.mxu0
      %v1429 = vadd.f32 %v1333, %v1428
      %v1430 = vpop.f32.mrf.mxu0
      %1431 = vdwg.mxu0
      %v1432 = vsub.f32 0.0, %v1418
      %v1433 = vsub.f32 0.0, %v1421
      %v1434 = vsub.f32 0.0, %v1426
      %v1435 = vsub.f32 0.0, %v1429
      %v1436 = vmul.f32 %v1432, 1.442695
      %v1437 = vpow.pop %v1436
      %v1438 = vmul.f32 %v1433, 1.442695
      %v1439 = vpow.pop %v1438
      %v1440 = vmul.f32 %v1434, 1.442695
      %v1441 = vpow.pop %v1440
      %v1442 = vmul.f32 %v1435, 1.442695
      %v1443 = vpow.pop %v1442
      %v1444 = vadd.f32 %v1437, 1.0
      %v1445 = vadd.f32 %v1439, 1.0
      %v1446 = vadd.f32 %v1441, 1.0
      %v1447 = vadd.f32 %v1443, 1.0
      %v1448 = vrcp.pop %v1444
      %v1449 = vrcp.pop %v1445
      %v1450 = vrcp.pop %v1446
      %v1451 = vrcp.pop %v1447
      %v1452 = vmul.f32 %v1418, %v1448
      %v1453 = vmul.f32 %v1421, %v1449
      %v1454 = vmul.f32 %v1426, %v1450
      %v1455 = vmul.f32 %v1429, %v1451
      %1456 = vst [vmem:[%s442] sm:$0xff] %v1452
      %1457 = vst [vmem:[%s442 + $0x8] sm:$0xff] %v1453
      %1458 = vst [vmem:[%s442 + $0x10] sm:$0xff] %v1454
      %1459 = vst [vmem:[%s442 + $0x18] sm:$0xff] %v1455
      %s1460 = smul.u32 4, %s24
      %p1461 = scmp.lt.s32.totalorder %s1460, 7
      %s1462 = scalar_select %p1461, %s1460, 7
      %s1463 = smul.addr %s1462, 8
      %s1464 = scalar_lea.vmem %s13, %s1463
      // Predicated region
      $region73: #{network_forward.1} parent=71 // pred_check
        %p1465 = pneg %p320
      $region74: #{network_forward.1} parent=71 // pred_check_branch
        %1467 = sbr.rel (%p1465) target = $region76
      $region75: #{network_forward.1} parent=71 // pred_region
        %s1468 = smul.u32 4, %s24
      $region76: #{network_forward.1} parent=71 // pred_fallthru
        _
    $region72: #{network_forward.1} parent=5 // pred_fallthru
      _
    %p1469 = scmp.le.s32.totalorder 2, %s19
    // Predicated region
    $region77: #{network_forward.1} parent=5 // pred_check
      %p1470 = pneg %p1469
    $region78: #{network_forward.1} parent=5 // pred_check_branch
      %1472 = sbr.rel (%p1470) target = $region80
    $region79: #{network_forward.1} parent=5 // pred_region
      %s1473 = ssub.s32 %s19, 2
      // Predicated region
      $region81: #{network_forward.1} parent=79 // pred_check
        %p1474 = pneg %p326
      $region82: #{network_forward.1} parent=79 // pred_check_branch
        %1476 = sbr.rel (%p1474) target = $region84
      $region83: #{network_forward.1} parent=79 // pred_region
        %s1477 = smul.u32 4, %s25
        %p1478 = scmp.lt.s32.totalorder %s1477, 7
        %s1479 = scalar_select %p1478, %s1477, 7
        %s1480 = smul.addr %s1479, 8
        %s1481 = scalar_lea.vmem %s13, %s1480
      $region84: #{network_forward.1} parent=79 // pred_fallthru
        _
    $region80: #{network_forward.1} parent=5 // pred_fallthru
      _
  $region6: #{network_forward.1} parent=0 // loop_footer
    %s23 = sadd.s32 1, %s19
  $region7: #{network_forward.1} parent=0 // loop_footer_branch
    %18 = sbr.rel target = $region3
  $region8: #{network_forward.1} parent=0 // loop_exit
    _

</llo_original>
